<compile_context>
chip_gen: v7x
topology: tpu7x:2x2x1
jax: 0.10.0
libtpu: 0.0.40
codegen_flags: <defaults>
</compile_context>

<pallas_src>
import numpy as np
import jax
import jax.numpy as jnp
from jax.experimental import pallas as pl
from jax.experimental.pallas import tpu as pltpu

C_OUT = 16                     # conv output channels
IMG = 64                       # input spatial size (required by Linear(16*32*32, 128))
POOL = IMG // 2                # 32 after MaxPool2d(2)
OUT_W = POOL * (POOL + 1)      # 1056: pooled map flattened with row stride 33 (col 32 is dead)
FLAT = C_OUT * POOL * POOL     # 16384 (PyTorch flatten size)
K_HEAD = C_OUT * OUT_W         # 16896 head contraction length (dead columns hit zero w1 rows)
HID_IMG = 128
ALPHA_IN = 30
HID_ALPHA = 8
N_CLASSES = 964
TK = K_HEAD // 4               # 4224 = 33*128, head K tile (4 grid steps)


# ----------------------------------------------------------------------------
# Kernel 1: fused Conv2d(1->16,3x3,pad=1) + MaxPool2d(2) + ELU for ONE image.
#   rows_ref : (16, 1056) bf16  rows indexed rid = 8u+4v+2dr+dc with
#              Row[rid][r*33+q] = xpad[2(r+dr)+u, 2(q+dc)+v]
#   wph_ref  : (4, 16, 16) bf16 per-pool-phase folding of the 3x3 conv taps onto rids
#   bias_ref : (16, 1)     f32
#   out_ref  : (16, 1056)  bf16 ELU(maxpool(conv)+b) in the (ch, r*33+c) layout
# Max-pool before bias/ELU is exact (bias constant over the window, ELU monotone).
# ----------------------------------------------------------------------------
def _conv_pool_elu_kernel(rows_ref, wph_ref, bias_ref, out_ref):
    rhs = rows_ref[...]                                               # (16, 1056)
    pooled = jnp.dot(wph_ref[0], rhs, preferred_element_type=jnp.float32)
    for ph in range(1, 4):                                            # max over 2x2 pool phases
        pooled = jnp.maximum(
            pooled, jnp.dot(wph_ref[ph], rhs, preferred_element_type=jnp.float32))
    pooled = pooled + bias_ref[...]
    # exp(x)-1 kept (known-good lowering); expm1 would only be a tiny accuracy nicety.
    act = jnp.where(pooled > 0.0, pooled, jnp.exp(jnp.minimum(pooled, 0.0)) - 1.0)
    out_ref[...] = act.astype(out_ref.dtype)


# ----------------------------------------------------------------------------
# Kernel 2: head — Linear(16896->128) K-tiled bf16 x bf16 matmul with f32 VMEM
# accumulator, Linear(30,8)+ELU, and concat-classifier as split-weight matmuls.
# ----------------------------------------------------------------------------
def _head_kernel(img_ref, w1t_ref, b1_ref, xa_ref, w2t_ref, b2_ref,
                 w3at_ref, w3bt_ref, b3_ref, out_ref, acc_ref):
    k = pl.program_id(0)

    @pl.when(k == 0)
    def _():
        acc_ref[...] = jnp.zeros_like(acc_ref)

    acc_ref[...] += jnp.dot(img_ref[...], w1t_ref[...],
                            preferred_element_type=jnp.float32)

    @pl.when(k == pl.num_programs(0) - 1)
    def _():
        img_feat = acc_ref[...] + b1_ref[...]                              # (B, 128)
        ah = jnp.dot(xa_ref[...], w2t_ref[...],
                     preferred_element_type=jnp.float32) + b2_ref[...]     # (B, 8)
        alpha_feat = jnp.where(ah > 0.0, ah, jnp.exp(jnp.minimum(ah, 0.0)) - 1.0)
        out_ref[...] = (jnp.dot(img_feat.astype(jnp.bfloat16), w3at_ref[...],
                                preferred_element_type=jnp.float32)
                        + jnp.dot(alpha_feat.astype(jnp.bfloat16), w3bt_ref[...],
                                  preferred_element_type=jnp.float32)
                        + b3_ref[...])


# ----------------------------------------------------------------------------
# One-time weight plumbing (kept OUT of the jitted forward).
# ----------------------------------------------------------------------------
def prepare_params(params):
    w_conv, b_conv, w1, b1, w2, b2, w3, b3 = params

    # Fold conv tap (di,dj) of pool phase (a,b) onto parity/shift row
    # rid = 8u+4v+2dr+dc where u=(a+di)%2, dr=(a+di)//2, v=(b+dj)%2, dc=(b+dj)//2.
    wc = np.asarray(w_conv, np.float32).reshape(C_OUT, 3, 3)
    m = np.zeros((4, C_OUT, 16), np.float32)
    for a in range(2):
        for b_ in range(2):
            ph = 2 * a + b_
            for di in range(3):
                for dj in range(3):
                    u, dr = (a + di) % 2, (a + di) // 2
                    v, dc = (b_ + dj) % 2, (b_ + dj) // 2
                    m[ph, :, 8 * u + 4 * v + 2 * dr + dc] += wc[:, di, dj]
    w_phase = jnp.asarray(m, jnp.bfloat16)                               # (4, 16, 16)

    # w1 rows permuted into the kernel's (ch, r*33+c) activation layout; zero rows at c==32
    # make the dead stride-33 columns exact no-ops.
    w1_r = jnp.pad(w1.reshape(HID_IMG, C_OUT, POOL, POOL),
                   ((0, 0), (0, 0), (0, 0), (0, 1)))                     # (128,16,32,33)
    w1_head = w1_r.reshape(HID_IMG, K_HEAD).T.astype(jnp.bfloat16)       # (16896, 128)

    return dict(
        w_phase=w_phase,
        b_conv=b_conv.reshape(C_OUT, 1).astype(jnp.float32),
        w1_head=w1_head,
        b1=b1.reshape(1, -1).astype(jnp.float32),
        w2t=w2.T.astype(jnp.float32),
        b2=b2.reshape(1, -1).astype(jnp.float32),
        w3at=w3[:, :HID_IMG].T.astype(jnp.bfloat16),                     # (128, 964)
        w3bt=w3[:, HID_IMG:].T.astype(jnp.bfloat16),                     # (8, 964)
        b3=b3.reshape(1, -1).astype(jnp.float32),
    )


def two_input_net_forward(x_image, x_alphabet, prep):
    B = x_image.shape[0]

    # --- glue: parity/shift row decomposition of the zero-padded image (bf16) -------------
    # 16 rows x 1056 per image (~36 KiB/img) instead of the 36-tap im2col (~256 KiB/img).
    xpad = jnp.pad(x_image[:, 0].astype(jnp.float32), ((0, 0), (1, 1), (1, 3)))  # (B,66,68)
    rows = []
    for u in range(2):
        for v in range(2):
            for dr in range(2):
                for dc in range(2):
                    r0, c0 = u + 2 * dr, v + 2 * dc
                    sl = xpad[:, r0:r0 + 63:2, c0:c0 + 65:2]              # (B, 32, 33)
                    rows.append(sl.reshape(B, OUT_W))
    rows16 = jnp.stack(rows, axis=1).astype(jnp.bfloat16)                 # (B, 16, 1056)

    # --- conv + pool + ELU: one image per (parallel) grid step -> >=2 steps for megacore ---
    # (For very large batches several images per step would amortize the ~0.35us/step cost.)
    act = pl.pallas_call(
        _conv_pool_elu_kernel,
        out_shape=jax.ShapeDtypeStruct((B, C_OUT, OUT_W), jnp.bfloat16),
        grid_spec=pltpu.PrefetchScalarGridSpec(
            num_scalar_prefetch=0,
            grid=(B,),
            in_specs=[
                pl.BlockSpec((None, 16, OUT_W), lambda g: (g, 0, 0)),
                pl.BlockSpec((4, C_OUT, 16), lambda g: (0, 0, 0)),
                pl.BlockSpec((C_OUT, 1), lambda g: (0, 0)),
            ],
            out_specs=pl.BlockSpec((None, C_OUT, OUT_W), lambda g: (g, 0, 0)),
        ),
        compiler_params=pltpu.CompilerParams(dimension_semantics=("parallel",)),
    )(rows16, prep["w_phase"], prep["b_conv"])

    # The single remaining XLA relayout: lane-flatten the small bf16 activation for the
    # K-tiled head matmul (in-kernel flattening would need tiled-dim reshapes).
    act_flat = act.reshape(B, K_HEAD)                                     # (B, 16896) bf16

    # --- head: K-tiled image Linear + alphabet MLP + split-weight concat classifier -------
    # VMEM/step ~ 2 x 1.06 MiB (w1 tile) + small; for B >~ 256 add a batch-tile grid axis.
    logits = pl.pallas_call(
        _head_kernel,
        out_shape=jax.ShapeDtypeStruct((B, N_CLASSES), jnp.float32),
        grid_spec=pltpu.PrefetchScalarGridSpec(
            num_scalar_prefetch=0,
            grid=(K_HEAD // TK,),
            in_specs=[
                pl.BlockSpec((B, TK), lambda k: (0, k)),
                pl.BlockSpec((TK, HID_IMG), lambda k: (k, 0)),
                pl.BlockSpec((1, HID_IMG), lambda k: (0, 0)),
                pl.BlockSpec((B, ALPHA_IN), lambda k: (0, 0)),
                pl.BlockSpec((ALPHA_IN, HID_ALPHA), lambda k: (0, 0)),
                pl.BlockSpec((1, HID_ALPHA), lambda k: (0, 0)),
                pl.BlockSpec((HID_IMG, N_CLASSES), lambda k: (0, 0)),
                pl.BlockSpec((HID_ALPHA, N_CLASSES), lambda k: (0, 0)),
                pl.BlockSpec((1, N_CLASSES), lambda k: (0, 0)),
            ],
            out_specs=pl.BlockSpec((B, N_CLASSES), lambda k: (0, 0)),
            scratch_shapes=[pltpu.VMEM((B, HID_IMG), jnp.float32)],
        ),
        compiler_params=pltpu.CompilerParams(dimension_semantics=("arbitrary",)),
    )(act_flat, prep["w1_head"], prep["b1"], x_alphabet.astype(jnp.float32),
      prep["w2t"], prep["b2"], prep["w3at"], prep["w3bt"], prep["b3"])

    return logits


# ----------------------------------------------------------------------------
# Pure-JAX f32 reference (same math as the PyTorch forward).
# ----------------------------------------------------------------------------
def reference_forward(x_image, x_alphabet, params):
    w_conv, b_conv, w1, b1, w2, b2, w3, b3 = params
    B = x_image.shape[0]
    conv = jax.lax.conv_general_dilated(
        x_image.astype(jnp.float32), w_conv, (1, 1), "SAME",
        dimension_numbers=("NCHW", "OIHW", "NCHW")) + b_conv.reshape(1, -1, 1, 1)
    pooled = jax.lax.reduce_window(conv, -jnp.inf, jax.lax.max,
                                   (1, 1, 2, 2), (1, 1, 2, 2), "VALID")
    act = jnp.where(pooled > 0.0, pooled, jnp.exp(jnp.minimum(pooled, 0.0)) - 1.0)
    img_feat = act.reshape(B, -1) @ w1.T + b1
    ah = x_alphabet.astype(jnp.float32) @ w2.T + b2
    alpha_feat = jnp.where(ah > 0.0, ah, jnp.exp(jnp.minimum(ah, 0.0)) - 1.0)
    cat = jnp.concatenate([img_feat, alpha_feat], axis=1)
    return cat @ w3.T + b3


def init_params(key):
    ks = jax.random.split(key, 8)

    def u(k, shape, fan_in):
        bound = 1.0 / np.sqrt(fan_in)
        return jax.random.uniform(k, shape, jnp.float32, -bound, bound)

    w_conv = u(ks[0], (C_OUT, 1, 3, 3), 9)
    b_conv = u(ks[1], (C_OUT,), 9)
    w1 = u(ks[2], (HID_IMG, FLAT), FLAT)
    b1 = u(ks[3], (HID_IMG,), FLAT)
    w2 = u(ks[4], (HID_ALPHA, ALPHA_IN), ALPHA_IN)
    b2 = u(ks[5], (HID_ALPHA,), ALPHA_IN)
    w3 = u(ks[6], (N_CLASSES, HID_IMG + HID_ALPHA), HID_IMG + HID_ALPHA)
    b3 = u(ks[7], (N_CLASSES,), HID_IMG + HID_ALPHA)
    return (w_conv, b_conv, w1, b1, w2, b2, w3, b3)


if __name__ == "__main__":
    key = jax.random.PRNGKey(0)
    k_params, k_img, k_alpha = jax.random.split(key, 3)

    B = 2
    params = init_params(k_params)
    x_image = jax.random.normal(k_img, (B, 1, IMG, IMG), jnp.float32)
    x_alphabet = jax.random.normal(k_alpha, (B, ALPHA_IN), jnp.float32)

    prep = prepare_params(params)          # one-time weight plumbing, outside the jit
    fwd = jax.jit(two_input_net_forward)
    out = jax.block_until_ready(fwd(x_image, x_alphabet, prep))

    ref = jax.block_until_ready(reference_forward(x_image, x_alphabet, params))
    assert out.shape == (B, N_CLASSES), out.shape
    # bf16 storage of conv inputs/weights/activations, w1 and w3 (f32 accumulation) costs
    # ~0.3-0.7% relative error vs. the f32 reference.
    err = float(jnp.max(jnp.abs(out - ref)) / (jnp.max(jnp.abs(ref)) + 1e-6))
    assert err < 2e-2, f"relative error too large: {err}"

    print("KERNEL_OK")
</pallas_src>

<mosaic_0001>
module attributes {stable_mosaic.version = 11 : i64} {
  func.func @_conv_pool_elu_kernel(%arg0: i32, %arg1: memref<1x16x1056xbf16, #tpu.memory_space<vmem>>, %arg2: memref<4x16x16xbf16, #tpu.memory_space<vmem>>, %arg3: memref<16x1xf32, #tpu.memory_space<vmem>>, %arg4: memref<1x16x1056xbf16, #tpu.memory_space<vmem>>) attributes {dimension_semantics = [#tpu.dimension_semantics<parallel>], iteration_bounds = array<i64: 2>, scalar_prefetch = 0 : i64, scratch_operands = 0 : i64, tpu.core_type = #tpu.core_type<tc>, window_params = [{transform_indices = @transform_0, window_bounds = array<i64: 1, 16, 1056>}, {pipeline_mode = #tpu.pipeline_mode<synchronous>, transform_indices = @transform_1, window_bounds = array<i64: 4, 16, 16>}, {pipeline_mode = #tpu.pipeline_mode<synchronous>, transform_indices = @transform_2, window_bounds = array<i64: 16, 1>}, {transform_indices = @transform_3, window_bounds = array<i64: 1, 16, 1056>}]} {
    %c0 = arith.constant 0 : index
    %c0_0 = arith.constant 0 : index
    %c0_1 = arith.constant 0 : index
    %0 = vector.load %arg1[%c0, %c0_0, %c0_1] : memref<1x16x1056xbf16, #tpu.memory_space<vmem>>, vector<1x16x1056xbf16>
    %1 = vector.shape_cast %0 : vector<1x16x1056xbf16> to vector<16x1056xbf16>
    %c0_2 = arith.constant 0 : index
    %c0_3 = arith.constant 0 : index
    %c0_4 = arith.constant 0 : index
    %2 = vector.load %arg2[%c0_2, %c0_3, %c0_4] : memref<4x16x16xbf16, #tpu.memory_space<vmem>>, vector<1x16x16xbf16>
    %3 = vector.shape_cast %2 : vector<1x16x16xbf16> to vector<16x16xbf16>
    %cst = arith.constant dense<0.000000e+00> : vector<16x1056xf32>
    %4 = tpu.matmul %3, %1, %cst {dimension_numbers = #tpu.dot_dimension_numbers<[1], [0], [0], [1], [0, 0, 1, 1], [], []>} : vector<16x16xbf16>, vector<16x1056xbf16>, vector<16x1056xf32> -> vector<16x1056xf32>
    %c1 = arith.constant 1 : index
    %c0_5 = arith.constant 0 : index
    %c0_6 = arith.constant 0 : index
    %5 = vector.load %arg2[%c1, %c0_5, %c0_6] : memref<4x16x16xbf16, #tpu.memory_space<vmem>>, vector<1x16x16xbf16>
    %6 = vector.shape_cast %5 : vector<1x16x16xbf16> to vector<16x16xbf16>
    %cst_7 = arith.constant dense<0.000000e+00> : vector<16x1056xf32>
    %7 = tpu.matmul %6, %1, %cst_7 {dimension_numbers = #tpu.dot_dimension_numbers<[1], [0], [0], [1], [0, 0, 1, 1], [], []>} : vector<16x16xbf16>, vector<16x1056xbf16>, vector<16x1056xf32> -> vector<16x1056xf32>
    %8 = arith.maximumf %4, %7 : vector<16x1056xf32>
    %c2 = arith.constant 2 : index
    %c0_8 = arith.constant 0 : index
    %c0_9 = arith.constant 0 : index
    %9 = vector.load %arg2[%c2, %c0_8, %c0_9] : memref<4x16x16xbf16, #tpu.memory_space<vmem>>, vector<1x16x16xbf16>
    %10 = vector.shape_cast %9 : vector<1x16x16xbf16> to vector<16x16xbf16>
    %cst_10 = arith.constant dense<0.000000e+00> : vector<16x1056xf32>
    %11 = tpu.matmul %10, %1, %cst_10 {dimension_numbers = #tpu.dot_dimension_numbers<[1], [0], [0], [1], [0, 0, 1, 1], [], []>} : vector<16x16xbf16>, vector<16x1056xbf16>, vector<16x1056xf32> -> vector<16x1056xf32>
    %12 = arith.maximumf %8, %11 : vector<16x1056xf32>
    %c3 = arith.constant 3 : index
    %c0_11 = arith.constant 0 : index
    %c0_12 = arith.constant 0 : index
    %13 = vector.load %arg2[%c3, %c0_11, %c0_12] : memref<4x16x16xbf16, #tpu.memory_space<vmem>>, vector<1x16x16xbf16>
    %14 = vector.shape_cast %13 : vector<1x16x16xbf16> to vector<16x16xbf16>
    %cst_13 = arith.constant dense<0.000000e+00> : vector<16x1056xf32>
    %15 = tpu.matmul %14, %1, %cst_13 {dimension_numbers = #tpu.dot_dimension_numbers<[1], [0], [0], [1], [0, 0, 1, 1], [], []>} : vector<16x16xbf16>, vector<16x1056xbf16>, vector<16x1056xf32> -> vector<16x1056xf32>
    %16 = arith.maximumf %12, %15 : vector<16x1056xf32>
    %c0_14 = arith.constant 0 : index
    %c0_15 = arith.constant 0 : index
    %17 = vector.load %arg3[%c0_14, %c0_15] : memref<16x1xf32, #tpu.memory_space<vmem>>, vector<16x1xf32>
    %18 = vector.broadcast %17 : vector<16x1xf32> to vector<16x1056xf32>
    %19 = arith.addf %16, %18 : vector<16x1056xf32>
    %cst_16 = arith.constant 0.000000e+00 : f32
    %20 = vector.broadcast %cst_16 : f32 to vector<16x1056xf32>
    %21 = arith.cmpf ogt, %19, %20 : vector<16x1056xf32>
    %cst_17 = arith.constant 0.000000e+00 : f32
    %22 = vector.broadcast %cst_17 : f32 to vector<16x1056xf32>
    %23 = arith.minimumf %19, %22 : vector<16x1056xf32>
    %24 = math.exp %23 : vector<16x1056xf32>
    %cst_18 = arith.constant 1.000000e+00 : f32
    %25 = vector.broadcast %cst_18 : f32 to vector<16x1056xf32>
    %26 = arith.subf %24, %25 : vector<16x1056xf32>
    %27 = arith.select %21, %19, %26 : vector<16x1056xi1>, vector<16x1056xf32>
    %28 = arith.truncf %27 : vector<16x1056xf32> to vector<16x1056xbf16>
    %c0_19 = arith.constant 0 : index
    %c0_20 = arith.constant 0 : index
    %c0_21 = arith.constant 0 : index
    %29 = vector.load %arg4[%c0_19, %c0_20, %c0_21] : memref<1x16x1056xbf16, #tpu.memory_space<vmem>>, vector<1x16x1056xbf16>
    %30 = vector.shape_cast %29 : vector<1x16x1056xbf16> to vector<16x1056xbf16>
    %31 = vector.shape_cast %28 : vector<16x1056xbf16> to vector<1x16x1056xbf16>
    tpu.vector_store %arg4[%c0_19, %c0_20, %c0_21], %31 {strides = array<i32>} : memref<1x16x1056xbf16, #tpu.memory_space<vmem>>, vector<1x16x1056xbf16>,
    return
  }
  func.func @transform_0(%arg0: i32) -> (i32, i32, i32) {
    %c0_i32 = arith.constant 0 : i32
    %c0_i32_0 = arith.constant 0 : i32
    %c0_i32_1 = arith.constant 0 : i32
    return %arg0, %c0_i32, %c0_i32_0 : i32, i32, i32
  }
  func.func @transform_1(%arg0: i32) -> (i32, i32, i32) {
    %c0_i32 = arith.constant 0 : i32
    %c0_i32_0 = arith.constant 0 : i32
    %c0_i32_1 = arith.constant 0 : i32
    %c0_i32_2 = arith.constant 0 : i32
    return %c0_i32, %c0_i32_0, %c0_i32_1 : i32, i32, i32
  }
  func.func @transform_2(%arg0: i32) -> (i32, i32) {
    %c0_i32 = arith.constant 0 : i32
    %c0_i32_0 = arith.constant 0 : i32
    %c0_i32_1 = arith.constant 0 : i32
    return %c0_i32, %c0_i32_0 : i32, i32
  }
  func.func @transform_3(%arg0: i32) -> (i32, i32, i32) {
    %c0_i32 = arith.constant 0 : i32
    %c0_i32_0 = arith.constant 0 : i32
    %c0_i32_1 = arith.constant 0 : i32
    return %arg0, %c0_i32, %c0_i32_0 : i32, i32, i32
  }
}

module attributes {stable_mosaic.version = 11 : i64} {
  func.func @_head_kernel(%arg0: i32, %arg1: memref<2x4224xbf16, #tpu.memory_space<vmem>>, %arg2: memref<4224x128xbf16, #tpu.memory_space<vmem>>, %arg3: memref<1x128xf32, #tpu.memory_space<vmem>>, %arg4: memref<2x30xf32, #tpu.memory_space<vmem>>, %arg5: memref<30x8xf32, #tpu.memory_space<vmem>>, %arg6: memref<1x8xf32, #tpu.memory_space<vmem>>, %arg7: memref<128x964xbf16, #tpu.memory_space<vmem>>, %arg8: memref<8x964xbf16, #tpu.memory_space<vmem>>, %arg9: memref<1x964xf32, #tpu.memory_space<vmem>>, %arg10: memref<2x964xf32, #tpu.memory_space<vmem>>, %arg11: memref<2x128xf32, #tpu.memory_space<vmem>>) attributes {dimension_semantics = [#tpu.dimension_semantics<arbitrary>], iteration_bounds = array<i64: 4>, scalar_prefetch = 0 : i64, scratch_operands = 1 : i64, tpu.core_type = #tpu.core_type<tc>, window_params = [{transform_indices = @transform_0, window_bounds = array<i64: 2, 4224>}, {transform_indices = @transform_1, window_bounds = array<i64: 4224, 128>}, {pipeline_mode = #tpu.pipeline_mode<synchronous>, transform_indices = @transform_2, window_bounds = array<i64: 1, 128>}, {pipeline_mode = #tpu.pipeline_mode<synchronous>, transform_indices = @transform_3, window_bounds = array<i64: 2, 30>}, {pipeline_mode = #tpu.pipeline_mode<synchronous>, transform_indices = @transform_4, window_bounds = array<i64: 30, 8>}, {pipeline_mode = #tpu.pipeline_mode<synchronous>, transform_indices = @transform_5, window_bounds = array<i64: 1, 8>}, {pipeline_mode = #tpu.pipeline_mode<synchronous>, transform_indices = @transform_6, window_bounds = array<i64: 128, 964>}, {pipeline_mode = #tpu.pipeline_mode<synchronous>, transform_indices = @transform_7, window_bounds = array<i64: 8, 964>}, {pipeline_mode = #tpu.pipeline_mode<synchronous>, transform_indices = @transform_8, window_bounds = array<i64: 1, 964>}, {pipeline_mode = #tpu.pipeline_mode<synchronous>, transform_indices = @transform_9, window_bounds = array<i64: 2, 964>}]} {
    %c0_i32 = arith.constant 0 : i32
    %0 = arith.cmpi eq, %arg0, %c0_i32 : i32
    %1 = arith.extui %0 : i1 to i32
    %c0_i32_0 = arith.constant 0 : i32
    %2 = arith.cmpi ne, %1, %c0_i32_0 : i32
    scf.if %2 {
      %cst_9 = arith.constant 0.000000e+00 : f32
      %12 = vector.broadcast %cst_9 : f32 to vector<2x128xf32>
      %c0_10 = arith.constant 0 : index
      %c0_11 = arith.constant 0 : index
      %13 = vector.load %arg11[%c0_10, %c0_11] : memref<2x128xf32, #tpu.memory_space<vmem>>, vector<2x128xf32>
      tpu.vector_store %arg11[%c0_10, %c0_11], %12 {strides = array<i32>} : memref<2x128xf32, #tpu.memory_space<vmem>>, vector<2x128xf32>,
    } else {
    }
    %c0 = arith.constant 0 : index
    %c0_1 = arith.constant 0 : index
    %3 = vector.load %arg11[%c0, %c0_1] : memref<2x128xf32, #tpu.memory_space<vmem>>, vector<2x128xf32>
    %c0_2 = arith.constant 0 : index
    %c0_3 = arith.constant 0 : index
    %4 = vector.load %arg1[%c0_2, %c0_3] : memref<2x4224xbf16, #tpu.memory_space<vmem>>, vector<2x4224xbf16>
    %c0_4 = arith.constant 0 : index
    %c0_5 = arith.constant 0 : index
    %5 = vector.load %arg2[%c0_4, %c0_5] : memref<4224x128xbf16, #tpu.memory_space<vmem>>, vector<4224x128xbf16>
    %cst = arith.constant dense<0.000000e+00> : vector<2x128xf32>
    %6 = tpu.matmul %4, %5, %cst {dimension_numbers = #tpu.dot_dimension_numbers<[1], [0], [0], [1], [0, 0, 1, 1], [], []>} : vector<2x4224xbf16>, vector<4224x128xbf16>, vector<2x128xf32> -> vector<2x128xf32>
    %7 = arith.addf %3, %6 : vector<2x128xf32>
    %c0_6 = arith.constant 0 : index
    %c0_7 = arith.constant 0 : index
    %8 = vector.load %arg11[%c0_6, %c0_7] : memref<2x128xf32, #tpu.memory_space<vmem>>, vector<2x128xf32>
    tpu.vector_store %arg11[%c0_6, %c0_7], %7 {strides = array<i32>} : memref<2x128xf32, #tpu.memory_space<vmem>>, vector<2x128xf32>,
    %c3_i32 = arith.constant 3 : i32
    %9 = arith.cmpi eq, %arg0, %c3_i32 : i32
    %10 = arith.extui %9 : i1 to i32
    %c0_i32_8 = arith.constant 0 : i32
    %11 = arith.cmpi ne, %10, %c0_i32_8 : i32
    scf.if %11 {
      %c0_9 = arith.constant 0 : index
      %c0_10 = arith.constant 0 : index
      %12 = vector.load %arg11[%c0_9, %c0_10] : memref<2x128xf32, #tpu.memory_space<vmem>>, vector<2x128xf32>
      %c0_11 = arith.constant 0 : index
      %c0_12 = arith.constant 0 : index
      %13 = vector.load %arg3[%c0_11, %c0_12] : memref<1x128xf32, #tpu.memory_space<vmem>>, vector<1x128xf32>
      %14 = vector.broadcast %13 : vector<1x128xf32> to vector<2x128xf32>
      %15 = arith.addf %12, %14 : vector<2x128xf32>
      %c0_13 = arith.constant 0 : index
      %c0_14 = arith.constant 0 : index
      %16 = vector.load %arg4[%c0_13, %c0_14] : memref<2x30xf32, #tpu.memory_space<vmem>>, vector<2x30xf32>
      %c0_15 = arith.constant 0 : index
      %c0_16 = arith.constant 0 : index
      %17 = vector.load %arg5[%c0_15, %c0_16] : memref<30x8xf32, #tpu.memory_space<vmem>>, vector<30x8xf32>
      %cst_17 = arith.constant dense<0.000000e+00> : vector<2x8xf32>
      %18 = tpu.matmul %16, %17, %cst_17 {dimension_numbers = #tpu.dot_dimension_numbers<[1], [0], [0], [1], [0, 0, 1, 1], [], []>} : vector<2x30xf32>, vector<30x8xf32>, vector<2x8xf32> -> vector<2x8xf32>
      %c0_18 = arith.constant 0 : index
      %c0_19 = arith.constant 0 : index
      %19 = vector.load %arg6[%c0_18, %c0_19] : memref<1x8xf32, #tpu.memory_space<vmem>>, vector<1x8xf32>
      %20 = vector.broadcast %19 : vector<1x8xf32> to vector<2x8xf32>
      %21 = arith.addf %18, %20 : vector<2x8xf32>
      %cst_20 = arith.constant 0.000000e+00 : f32
      %22 = vector.broadcast %cst_20 : f32 to vector<2x8xf32>
      %23 = arith.cmpf ogt, %21, %22 : vector<2x8xf32>
      %cst_21 = arith.constant 0.000000e+00 : f32
      %24 = vector.broadcast %cst_21 : f32 to vector<2x8xf32>
      %25 = arith.minimumf %21, %24 : vector<2x8xf32>
      %26 = math.exp %25 : vector<2x8xf32>
      %cst_22 = arith.constant 1.000000e+00 : f32
      %27 = vector.broadcast %cst_22 : f32 to vector<2x8xf32>
      %28 = arith.subf %26, %27 : vector<2x8xf32>
      %29 = arith.select %23, %21, %28 : vector<2x8xi1>, vector<2x8xf32>
      %30 = arith.truncf %15 : vector<2x128xf32> to vector<2x128xbf16>
      %c0_23 = arith.constant 0 : index
      %c0_24 = arith.constant 0 : index
      %31 = vector.load %arg7[%c0_23, %c0_24] : memref<128x964xbf16, #tpu.memory_space<vmem>>, vector<128x964xbf16>
      %cst_25 = arith.constant dense<0.000000e+00> : vector<2x964xf32>
      %32 = tpu.matmul %30, %31, %cst_25 {dimension_numbers = #tpu.dot_dimension_numbers<[1], [0], [0], [1], [0, 0, 1, 1], [], []>} : vector<2x128xbf16>, vector<128x964xbf16>, vector<2x964xf32> -> vector<2x964xf32>
      %33 = arith.truncf %29 : vector<2x8xf32> to vector<2x8xbf16>
      %c0_26 = arith.constant 0 : index
      %c0_27 = arith.constant 0 : index
      %34 = vector.load %arg8[%c0_26, %c0_27] : memref<8x964xbf16, #tpu.memory_space<vmem>>, vector<8x964xbf16>
      %cst_28 = arith.constant dense<0.000000e+00> : vector<2x964xf32>
      %35 = tpu.matmul %33, %34, %cst_28 {dimension_numbers = #tpu.dot_dimension_numbers<[1], [0], [0], [1], [0, 0, 1, 1], [], []>} : vector<2x8xbf16>, vector<8x964xbf16>, vector<2x964xf32> -> vector<2x964xf32>
      %36 = arith.addf %32, %35 : vector<2x964xf32>
      %c0_29 = arith.constant 0 : index
      %c0_30 = arith.constant 0 : index
      %37 = vector.load %arg9[%c0_29, %c0_30] : memref<1x964xf32, #tpu.memory_space<vmem>>, vector<1x964xf32>
      %38 = vector.broadcast %37 : vector<1x964xf32> to vector<2x964xf32>
      %39 = arith.addf %36, %38 : vector<2x964xf32>
      %c0_31 = arith.constant 0 : index
      %c0_32 = arith.constant 0 : index
      %40 = vector.load %arg10[%c0_31, %c0_32] : memref<2x964xf32, #tpu.memory_space<vmem>>, vector<2x964xf32>
      tpu.vector_store %arg10[%c0_31, %c0_32], %39 {strides = array<i32>} : memref<2x964xf32, #tpu.memory_space<vmem>>, vector<2x964xf32>,
    } else {
    }
    return
  }
  func.func @transform_0(%arg0: i32) -> (i32, i32) {
    %c0_i32 = arith.constant 0 : i32
    %c0_i32_0 = arith.constant 0 : i32
    return %c0_i32, %arg0 : i32, i32
  }
  func.func @transform_1(%arg0: i32) -> (i32, i32) {
    %c0_i32 = arith.constant 0 : i32
    %c0_i32_0 = arith.constant 0 : i32
    return %arg0, %c0_i32 : i32, i32
  }
  func.func @transform_2(%arg0: i32) -> (i32, i32) {
    %c0_i32 = arith.constant 0 : i32
    %c0_i32_0 = arith.constant 0 : i32
    %c0_i32_1 = arith.constant 0 : i32
    return %c0_i32, %c0_i32_0 : i32, i32
  }
  func.func @transform_3(%arg0: i32) -> (i32, i32) {
    %c0_i32 = arith.constant 0 : i32
    %c0_i32_0 = arith.constant 0 : i32
    %c0_i32_1 = arith.constant 0 : i32
    return %c0_i32, %c0_i32_0 : i32, i32
  }
  func.func @transform_4(%arg0: i32) -> (i32, i32) {
    %c0_i32 = arith.constant 0 : i32
    %c0_i32_0 = arith.constant 0 : i32
    %c0_i32_1 = arith.constant 0 : i32
    return %c0_i32, %c0_i32_0 : i32, i32
  }
  func.func @transform_5(%arg0: i32) -> (i32, i32) {
    %c0_i32 = arith.constant 0 : i32
    %c0_i32_0 = arith.constant 0 : i32
    %c0_i32_1 = arith.constant 0 : i32
    return %c0_i32, %c0_i32_0 : i32, i32
  }
  func.func @transform_6(%arg0: i32) -> (i32, i32) {
    %c0_i32 = arith.constant 0 : i32
    %c0_i32_0 = arith.constant 0 : i32
    %c0_i32_1 = arith.constant 0 : i32
    return %c0_i32, %c0_i32_0 : i32, i32
  }
  func.func @transform_7(%arg0: i32) -> (i32, i32) {
    %c0_i32 = arith.constant 0 : i32
    %c0_i32_0 = arith.constant 0 : i32
    %c0_i32_1 = arith.constant 0 : i32
    return %c0_i32, %c0_i32_0 : i32, i32
  }
  func.func @transform_8(%arg0: i32) -> (i32, i32) {
    %c0_i32 = arith.constant 0 : i32
    %c0_i32_0 = arith.constant 0 : i32
    %c0_i32_1 = arith.constant 0 : i32
    return %c0_i32, %c0_i32_0 : i32, i32
  }
  func.func @transform_9(%arg0: i32) -> (i32, i32) {
    %c0_i32 = arith.constant 0 : i32
    %c0_i32_0 = arith.constant 0 : i32
    %c0_i32_1 = arith.constant 0 : i32
    return %c0_i32, %c0_i32_0 : i32, i32
  }
}

</mosaic_0001>

<llo_original>
// kernel: two_input_net_forward.2
$region0: #{two_input_net_forward.2}
  #allocation0 [shape = 'u32[]', space=smem, size = 0x4, offset = 0x4, fixed_abs, tag = 'smem constant byte address 0x4 - core index']
  #allocation1 [shape = 'u32[144,128]{1,0:T(1,128)}', space=vmem, size = 0x12000, scoped, tag = 'internal scratch']
  %s0 = inlined_call_operand.vmem [shape: bf16[2,16,1056], index: 0, kind: input, shape index: {}]
  %s1 = inlined_call_operand.hbm [shape: bf16[4,16,16], index: 1, kind: input, shape index: {}]
  %s2 = inlined_call_operand.vmem [shape: f32[16,1], index: 2, kind: input, shape index: {}]
  %s3 = inlined_call_operand.vmem [shape: bf16[2,16,1056], index: 3, kind: output, shape index: {}]
  %s4 = sld [smem:[#allocation0]]
  $region49: #{two_input_net_forward.2} parent=0
    _
  %s6 = ssub.s32 1, %s4
  %s7 = scalar_select 0, %s6, %s4
  $region1: #{two_input_net_forward.2} parent=0
    #allocation2 [shape = 'u8[16384]{0}', space=vmem, size = 0x4000, scoped, tag = 'input window, operand 1, single buffered']
    #allocation3 [shape = 's32[2]{0}', space=sflag, size = 0x8, scoped, tag = 'scoped memory for two_input_net_forward.2']
    %8 = vsyncpa [#allocation3], 0
    loop: start=0, step=1, limit=4
    $region2: #{two_input_net_forward.2} parent=1 // loop_pre_header
      _
    $region3: #{two_input_net_forward.2} parent=1 // loop_header
      %s10 = sphi 0, %s14
      %p11 = scmp.ge.s32.totalorder %s10, 4
      %s20 = sphi 0, %s22
      %s23 = sphi 0, %s20
      %s24 = sphi 0, %s23
      %s40 = sphi 0, %s24
      %s44 = sphi 0, %s44
      %s46 = sphi 0, %s44
      %s47 = sphi 0, %s46
      %s61 = sphi 0, %s47
      %s65 = sphi 0, %s65
      %s67 = sphi 0, %s65
      %s68 = sphi 0, %s67
      %s82 = sphi 0, %s68
      %s88 = sphi 0, %s90
      %s91 = sphi 0, %s88
      %s92 = sphi 0, %s91
      %s108 = sphi 0, %s92
    $region4: #{two_input_net_forward.2} parent=1 // loop_header_branch
      %13 = sbr.rel (%p11) target = $region8
    $region5: #{two_input_net_forward.2} parent=1 // loop_body
      %s15 = ssub.s32 %s10, 1
      %s16 = ssub.s32 %s10, 2
      %s17 = sadd.s32 %s10, 1
      %s18 = ssub.s32 %s10, %s17
      %p19 = scmp.eq.s32.totalorder %s18, 0
      %s21 = sadd.s32 %s20, 1
      %s22 = scalar_select %p19, %s20, %s21
      %p25 = pneg %p19
      %p26 = scmp.eq.s32.totalorder %s10, 1
      %p27 = por %p25, %p26
      %p28 = scmp.ne.s32.totalorder %s20, %s23
      %p29 = scmp.eq.s32.totalorder %s10, 0
      %p30 = por %p28, %p29
      %p31 = scmp.ne.s32.totalorder %s20, %s23
      %p32 = scmp.eq.s32.totalorder %s15, 1
      %p33 = por %p31, %p32
      %p34 = scmp.ne.s32.totalorder %s23, %s24
      %p35 = scmp.eq.s32.totalorder %s15, 0
      %p36 = por %p34, %p35
      %p37 = scmp.ne.s32.totalorder %s23, %s24
      %p38 = scmp.eq.s32.totalorder %s16, 1
      %p39 = por %p37, %p38
      %p41 = scmp.ne.s32.totalorder %s24, %s40
      %p42 = scmp.eq.s32.totalorder %s16, 0
      %p43 = por %p41, %p42
      %s45 = sadd.s32 %s44, 1
      %p48 = scmp.eq.s32.totalorder %s10, 1
      %p49 = scmp.ne.s32.totalorder %s44, %s46
      %p50 = scmp.eq.s32.totalorder %s10, 0
      %p51 = por %p49, %p50
      %p52 = scmp.ne.s32.totalorder %s44, %s46
      %p53 = scmp.eq.s32.totalorder %s15, 1
      %p54 = por %p52, %p53
      %p55 = scmp.ne.s32.totalorder %s46, %s47
      %p56 = scmp.eq.s32.totalorder %s15, 0
      %p57 = por %p55, %p56
      %p58 = scmp.ne.s32.totalorder %s46, %s47
      %p59 = scmp.eq.s32.totalorder %s16, 1
      %p60 = por %p58, %p59
      %p62 = scmp.ne.s32.totalorder %s47, %s61
      %p63 = scmp.eq.s32.totalorder %s16, 0
      %p64 = por %p62, %p63
      %s66 = sadd.s32 %s65, 1
      %p69 = scmp.eq.s32.totalorder %s10, 1
      %p70 = scmp.ne.s32.totalorder %s65, %s67
      %p71 = scmp.eq.s32.totalorder %s10, 0
      %p72 = por %p70, %p71
      %p73 = scmp.ne.s32.totalorder %s65, %s67
      %p74 = scmp.eq.s32.totalorder %s15, 1
      %p75 = por %p73, %p74
      %p76 = scmp.ne.s32.totalorder %s67, %s68
      %p77 = scmp.eq.s32.totalorder %s15, 0
      %p78 = por %p76, %p77
      %p79 = scmp.ne.s32.totalorder %s67, %s68
      %p80 = scmp.eq.s32.totalorder %s16, 1
      %p81 = por %p79, %p80
      %p83 = scmp.ne.s32.totalorder %s68, %s82
      %p84 = scmp.eq.s32.totalorder %s16, 0
      %p85 = por %p83, %p84
      %s86 = ssub.s32 %s10, %s17
      %p87 = scmp.eq.s32.totalorder %s86, 0
      %s89 = sadd.s32 %s88, 1
      %s90 = scalar_select %p87, %s88, %s89
      %p93 = pneg %p87
      %p94 = scmp.eq.s32.totalorder %s10, 1
      %p95 = por %p93, %p94
      %p96 = scmp.ne.s32.totalorder %s88, %s91
      %p97 = scmp.eq.s32.totalorder %s10, 0
      %p98 = por %p96, %p97
      %p99 = scmp.ne.s32.totalorder %s88, %s91
      %p100 = scmp.eq.s32.totalorder %s15, 1
      %p101 = por %p99, %p100
      %p102 = scmp.ne.s32.totalorder %s91, %s92
      %p103 = scmp.eq.s32.totalorder %s15, 0
      %p104 = por %p102, %p103
      %p105 = scmp.ne.s32.totalorder %s91, %s92
      %p106 = scmp.eq.s32.totalorder %s16, 1
      %p107 = por %p105, %p106
      %p109 = scmp.ne.s32.totalorder %s92, %s108
      %p110 = scmp.eq.s32.totalorder %s16, 0
      %p111 = por %p109, %p110
      %p112 = scmp.le.s32.totalorder 1, %s10
      %p113 = scmp.lt.s32.totalorder %s10, 3
      %p114 = pnand %p112, %p113
      %p115 = pneg %p114
      // Predicated region
      $region9: #{two_input_net_forward.2} parent=5 // pred_check
        _
      $region10: #{two_input_net_forward.2} parent=5 // pred_check_branch
        %117 = sbr.rel (%p114) target = $region12
      $region11: #{two_input_net_forward.2} parent=5 // pred_region
        %s118 = ssub.s32 %s10, 1
        // Predicated region
        $region13: #{two_input_net_forward.2} parent=11 // pred_check
          %p119 = pneg %p57
        $region14: #{two_input_net_forward.2} parent=11 // pred_check_branch
          %121 = sbr.rel (%p119) target = $region16
        $region15: #{two_input_net_forward.2} parent=11 // pred_region
          %s123 = ssub.s32 512, 512
          %124 = vsyncadd [#allocation3], %s123
          %s125 = sshll.u32 [#allocation2], 4
          %s126 = int_to_ptr.vmem [resolvable:$true] %s125
          %131 = dma.hbm_to_vmem [thread:$0]  %s1, 512, %s126, [#allocation3], 64, 64, 4
        $region16: #{two_input_net_forward.2} parent=11 // pred_fallthru
          _
        // Predicated region
        $region17: #{two_input_net_forward.2} parent=11 // pred_check
          %p132 = pneg %p78
        $region18: #{two_input_net_forward.2} parent=11 // pred_check_branch
          %134 = sbr.rel (%p132) target = $region20
        $region19: #{two_input_net_forward.2} parent=11 // pred_region
          _
        $region20: #{two_input_net_forward.2} parent=11 // pred_fallthru
          _
      $region12: #{two_input_net_forward.2} parent=5 // pred_fallthru
        _
      %p135 = scmp.lt.s32.totalorder %s10, 2
      // Predicated region
      $region21: #{two_input_net_forward.2} parent=5 // pred_check
        %p136 = pneg %p135
      $region22: #{two_input_net_forward.2} parent=5 // pred_check_branch
        %138 = sbr.rel (%p136) target = $region24
      $region23: #{two_input_net_forward.2} parent=5 // pred_region
        // Predicated region
        $region25: #{two_input_net_forward.2} parent=23 // pred_check
          %p139 = pneg %p30
        $region26: #{two_input_net_forward.2} parent=23 // pred_check_branch
          %141 = sbr.rel (%p139) target = $region28
        $region27: #{two_input_net_forward.2} parent=23 // pred_region
          %p142 = scmp.lt.s32.totalorder %s10, 1
          %s143 = scalar_select %p142, %s10, 1
          %s144 = smul.addr %s143, 18
          %s145 = smul.addr %s144, 4
          %s146 = scalar_lea.vmem %s0, %s145
        $region28: #{two_input_net_forward.2} parent=23 // pred_fallthru
          _
      $region24: #{two_input_net_forward.2} parent=5 // pred_fallthru
        _
      %p147 = scmp.le.s32.totalorder 1, %s10
      %p148 = scmp.lt.s32.totalorder %s10, 3
      %p149 = pnand %p147, %p148
      %p150 = pneg %p149
      // Predicated region
      $region29: #{two_input_net_forward.2} parent=5 // pred_check
        _
      $region30: #{two_input_net_forward.2} parent=5 // pred_check_branch
        %152 = sbr.rel (%p149) target = $region32
      $region31: #{two_input_net_forward.2} parent=5 // pred_region
        %s153 = ssub.s32 %s10, 1
        // Predicated region
        $region33: #{two_input_net_forward.2} parent=31 // pred_check
          %p154 = pneg %p57
        $region34: #{two_input_net_forward.2} parent=31 // pred_check_branch
          %156 = sbr.rel (%p154) target = $region36
        $region35: #{two_input_net_forward.2} parent=31 // pred_region
          %157 = dma.done [#allocation3], 512
        $region36: #{two_input_net_forward.2} parent=31 // pred_fallthru
          _
        %p158 = scmp.lt.s32.totalorder %s15, 1
        %s159 = scalar_select %p158, %s15, 1
        %s160 = smul.addr %s159, 18
        %s161 = smul.addr %s160, 4
        %s162 = scalar_lea.vmem %s0, %s161
        %p163 = pneg %p36
        %p164 = pneg %p33
        %p165 = pneg %p57
        %p166 = pneg %p54
        %p167 = pneg %p78
        %p168 = pneg %p75
        %p169 = pneg %p104
        %p170 = pneg %p101
        %p171 = scmp.lt.s32.totalorder %s15, 1
        %s172 = scalar_select %p171, %s15, 1
        %s173 = smul.addr %s172, 18
        %s174 = smul.addr %s173, 4
        %s175 = scalar_lea.vmem %s3, %s174
        %p176 = scmp.lt.s32.totalorder %s15, 1
        %s177 = scalar_select %p176, %s15, 1
        %s178 = smul.addr %s177, 18
        %s179 = smul.addr %s178, 4
        %s180 = scalar_lea.vmem %s0, %s179
        %p181 = scmp.lt.s32.totalorder %s15, 1
        %s182 = scalar_select %p181, %s15, 1
        %s183 = smul.addr %s182, 18
        %s184 = smul.addr %s183, 4
        %s185 = scalar_lea.vmem %s3, %s184
        %v187 = vld [vmem:[%s180] sm:$0xff]
        %v188 = vld [vmem:[%s180 + $0x8] sm:$0xff]
        %v189 = vld [vmem:[%s180 + $0x10] sm:$0xff]
        %v190 = vld [vmem:[%s180 + $0x18] sm:$0xff]
        %v191 = vld [vmem:[%s180 + $0x20] sm:$0xf]
        %v192 = vld [vmem:[%s180 + $0x24] sm:$0xff]
        %v193 = vld [vmem:[%s180 + $0x2c] sm:$0xff]
        %v194 = vld [vmem:[%s180 + $0x34] sm:$0xff]
        %v195 = vld [vmem:[%s180 + $0x3c] sm:$0xff]
        %v196 = vld [vmem:[%s180 + $0x44] sm:$0xf]
        %v197 = vld [vmem:[#allocation2] sm:$0xf]
        %v198 = vld [vmem:[#allocation2 + $0x4] sm:$0xf]
        %v201 = vunpack.c.l.b16 %v197
        %v202 = vunpack.c.l.b16 %v198
        %v203 = vpack.c.b16 %v202, %v201
        %v214 = vunpack.c.l.b16 %v187
        %v215 = vunpack.c.h.b16 %v187
        %v216 = vunpack.c.l.b16 %v188
        %v217 = vunpack.c.h.b16 %v188
        %v218 = vunpack.c.l.b16 %v189
        %v219 = vunpack.c.h.b16 %v189
        %v220 = vunpack.c.l.b16 %v190
        %v221 = vunpack.c.h.b16 %v190
        %v222 = vunpack.c.l.b16 %v191
        %v223 = vunpack.c.l.b16 %v192
        %v224 = vunpack.c.h.b16 %v192
        %v225 = vunpack.c.l.b16 %v193
        %v226 = vunpack.c.h.b16 %v193
        %v227 = vunpack.c.l.b16 %v194
        %v228 = vunpack.c.h.b16 %v194
        %v229 = vunpack.c.l.b16 %v195
        %v230 = vunpack.c.h.b16 %v195
        %v231 = vunpack.c.l.b16 %v196
        %v232 = vpack.c.b16 %v223, %v214
        %v233 = vpack.c.b16 %v224, %v215
        %v234 = vpack.c.b16 %v225, %v216
        %v235 = vpack.c.b16 %v226, %v217
        %v236 = vpack.c.b16 %v227, %v218
        %v237 = vpack.c.b16 %v228, %v219
        %v238 = vpack.c.b16 %v229, %v220
        %v239 = vpack.c.b16 %v230, %v221
        %v240 = vpack.c.b16 %v231, %v222
        %vm250 = vcmask 130048
        %v252 = vsel %vm250, %v203, 0
        %254 = vmatprep.subr.bf16.mxu0 %v233
        %255 = vmatpush1.bf16.msra.mxu0 %v232
        %256 = vmatprep.subr.bf16.mxu0 0
        %257 = vmatpush1.bf16.msra.mxu0 0
        %258 = vmatprep.subr.bf16.mxu0 0
        %259 = vmatpush1.bf16.msra.mxu0 0
        %260 = vmatprep.subr.bf16.mxu0 0
        %261 = vmatpush1.bf16.msra.mxu0 0
        %262 = vmatprep.subr.bf16.mxu0 0
        %263 = vmatpush1.bf16.msra.mxu0 0
        %264 = vmatprep.subr.bf16.mxu0 0
        %265 = vmatpush1.bf16.msra.mxu0 0
        %266 = vmatprep.subr.bf16.mxu0 0
        %267 = vmatpush1.bf16.msra.mxu0 0
        %268 = vmatprep.subr.bf16.mxu0 0
        %269 = vmatpush1.bf16.msra.mxu0 0
        %270 = vmatprep.subr.bf16.mxu0 0
        %271 = vmatpush1.bf16.msra.mxu0 0
        %272 = vmatprep.subr.bf16.mxu0 0
        %273 = vmatpush1.bf16.msra.mxu0 0
        %274 = vmatprep.subr.bf16.mxu0 0
        %275 = vmatpush1.bf16.msra.mxu0 0
        %276 = vmatprep.subr.bf16.mxu0 0
        %277 = vmatpush1.bf16.msra.mxu0 0
        %278 = vmatprep.subr.bf16.mxu0 0
        %279 = vmatpush1.bf16.msra.mxu0 0
        %280 = vmatprep.subr.bf16.mxu0 0
        %281 = vmatpush1.bf16.msra.mxu0 0
        %282 = vmatprep.subr.bf16.mxu0 0
        %283 = vmatpush1.bf16.msra.mxu0 0
        %284 = vmatprep.subr.bf16.mxu0 0
        %285 = vmatpush1.bf16.msra.mxu0 0
        %286 = vmatprep.mubr.bf16.mxu0 0
        %287 = vmatmul.mubr.bf16.gmra.mrb[0].mxu0 %v252
        %v288 = vpop.f32.mrb[0].mxu0
        %v289 = vadd.f32 0.0, %v288
        %v290 = vpop.f32.mrb[0].mxu0
        %v291 = vadd.f32 0.0, %v290
        %v292 = vpop.f32.mrb[0].mxu0
        %v293 = vadd.f32 0.0, %v292
        %v294 = vpop.f32.mrb[0].mxu0
        %v295 = vadd.f32 0.0, %v294
        %296 = vdwg.mxu0
        %297 = vmatprep.subr.bf16.mxu0 %v235
        %298 = vmatpush1.bf16.msra.mxu0 %v234
        %299 = vmatprep.subr.bf16.mxu0 0
        %300 = vmatpush1.bf16.msra.mxu0 0
        %301 = vmatprep.subr.bf16.mxu0 0
        %302 = vmatpush1.bf16.msra.mxu0 0
        %303 = vmatprep.subr.bf16.mxu0 0
        %304 = vmatpush1.bf16.msra.mxu0 0
        %305 = vmatprep.subr.bf16.mxu0 0
        %306 = vmatpush1.bf16.msra.mxu0 0
        %307 = vmatprep.subr.bf16.mxu0 0
        %308 = vmatpush1.bf16.msra.mxu0 0
        %309 = vmatprep.subr.bf16.mxu0 0
        %310 = vmatpush1.bf16.msra.mxu0 0
        %311 = vmatprep.subr.bf16.mxu0 0
        %312 = vmatpush1.bf16.msra.mxu0 0
        %313 = vmatprep.subr.bf16.mxu0 0
        %314 = vmatpush1.bf16.msra.mxu0 0
        %315 = vmatprep.subr.bf16.mxu0 0
        %316 = vmatpush1.bf16.msra.mxu0 0
        %317 = vmatprep.subr.bf16.mxu0 0
        %318 = vmatpush1.bf16.msra.mxu0 0
        %319 = vmatprep.subr.bf16.mxu0 0
        %320 = vmatpush1.bf16.msra.mxu0 0
        %321 = vmatprep.subr.bf16.mxu0 0
        %322 = vmatpush1.bf16.msra.mxu0 0
        %323 = vmatprep.subr.bf16.mxu0 0
        %324 = vmatpush1.bf16.msra.mxu0 0
        %325 = vmatprep.subr.bf16.mxu0 0
        %326 = vmatpush1.bf16.msra.mxu0 0
        %327 = vmatprep.subr.bf16.mxu0 0
        %328 = vmatpush1.bf16.msra.mxu0 0
        %329 = vmatprep.mubr.bf16.mxu0 0
        %330 = vmatmul.mubr.bf16.gmra.mrb[0].mxu0 %v252
        %v331 = vpop.f32.mrb[0].mxu0
        %v332 = vadd.f32 0.0, %v331
        %v333 = vpop.f32.mrb[0].mxu0
        %v334 = vadd.f32 0.0, %v333
        %v335 = vpop.f32.mrb[0].mxu0
        %v336 = vadd.f32 0.0, %v335
        %v337 = vpop.f32.mrb[0].mxu0
        %v338 = vadd.f32 0.0, %v337
        %339 = vdwg.mxu0
        %340 = vmatprep.subr.bf16.mxu0 %v237
        %341 = vmatpush1.bf16.msra.mxu0 %v236
        %342 = vmatprep.subr.bf16.mxu0 0
        %343 = vmatpush1.bf16.msra.mxu0 0
        %344 = vmatprep.subr.bf16.mxu0 0
        %345 = vmatpush1.bf16.msra.mxu0 0
        %346 = vmatprep.subr.bf16.mxu0 0
        %347 = vmatpush1.bf16.msra.mxu0 0
        %348 = vmatprep.subr.bf16.mxu0 0
        %349 = vmatpush1.bf16.msra.mxu0 0
        %350 = vmatprep.subr.bf16.mxu0 0
        %351 = vmatpush1.bf16.msra.mxu0 0
        %352 = vmatprep.subr.bf16.mxu0 0
        %353 = vmatpush1.bf16.msra.mxu0 0
        %354 = vmatprep.subr.bf16.mxu0 0
        %355 = vmatpush1.bf16.msra.mxu0 0
        %356 = vmatprep.subr.bf16.mxu0 0
        %357 = vmatpush1.bf16.msra.mxu0 0
        %358 = vmatprep.subr.bf16.mxu0 0
        %359 = vmatpush1.bf16.msra.mxu0 0
        %360 = vmatprep.subr.bf16.mxu0 0
        %361 = vmatpush1.bf16.msra.mxu0 0
        %362 = vmatprep.subr.bf16.mxu0 0
        %363 = vmatpush1.bf16.msra.mxu0 0
        %364 = vmatprep.subr.bf16.mxu0 0
        %365 = vmatpush1.bf16.msra.mxu0 0
        %366 = vmatprep.subr.bf16.mxu0 0
        %367 = vmatpush1.bf16.msra.mxu0 0
        %368 = vmatprep.subr.bf16.mxu0 0
        %369 = vmatpush1.bf16.msra.mxu0 0
        %370 = vmatprep.subr.bf16.mxu0 0
        %371 = vmatpush1.bf16.msra.mxu0 0
        %372 = vmatprep.mubr.bf16.mxu0 0
        %373 = vmatmul.mubr.bf16.gmra.mrb[0].mxu0 %v252
        %v374 = vpop.f32.mrb[0].mxu0
        %v375 = vadd.f32 0.0, %v374
        %v376 = vpop.f32.mrb[0].mxu0
        %v377 = vadd.f32 0.0, %v376
        %v378 = vpop.f32.mrb[0].mxu0
        %v379 = vadd.f32 0.0, %v378
        %v380 = vpop.f32.mrb[0].mxu0
        %v381 = vadd.f32 0.0, %v380
        %382 = vdwg.mxu0
        %383 = vmatprep.subr.bf16.mxu0 %v239
        %384 = vmatpush1.bf16.msra.mxu0 %v238
        %385 = vmatprep.subr.bf16.mxu0 0
        %386 = vmatpush1.bf16.msra.mxu0 0
        %387 = vmatprep.subr.bf16.mxu0 0
        %388 = vmatpush1.bf16.msra.mxu0 0
        %389 = vmatprep.subr.bf16.mxu0 0
        %390 = vmatpush1.bf16.msra.mxu0 0
        %391 = vmatprep.subr.bf16.mxu0 0
        %392 = vmatpush1.bf16.msra.mxu0 0
        %393 = vmatprep.subr.bf16.mxu0 0
        %394 = vmatpush1.bf16.msra.mxu0 0
        %395 = vmatprep.subr.bf16.mxu0 0
        %396 = vmatpush1.bf16.msra.mxu0 0
        %397 = vmatprep.subr.bf16.mxu0 0
        %398 = vmatpush1.bf16.msra.mxu0 0
        %399 = vmatprep.subr.bf16.mxu0 0
        %400 = vmatpush1.bf16.msra.mxu0 0
        %401 = vmatprep.subr.bf16.mxu0 0
        %402 = vmatpush1.bf16.msra.mxu0 0
        %403 = vmatprep.subr.bf16.mxu0 0
        %404 = vmatpush1.bf16.msra.mxu0 0
        %405 = vmatprep.subr.bf16.mxu0 0
        %406 = vmatpush1.bf16.msra.mxu0 0
        %407 = vmatprep.subr.bf16.mxu0 0
        %408 = vmatpush1.bf16.msra.mxu0 0
        %409 = vmatprep.subr.bf16.mxu0 0
        %410 = vmatpush1.bf16.msra.mxu0 0
        %411 = vmatprep.subr.bf16.mxu0 0
        %412 = vmatpush1.bf16.msra.mxu0 0
        %413 = vmatprep.subr.bf16.mxu0 0
        %414 = vmatpush1.bf16.msra.mxu0 0
        %415 = vmatprep.mubr.bf16.mxu0 0
        %416 = vmatmul.mubr.bf16.gmra.mrb[0].mxu0 %v252
        %v417 = vpop.f32.mrb[0].mxu0
        %v418 = vadd.f32 0.0, %v417
        %v419 = vpop.f32.mrb[0].mxu0
        %v420 = vadd.f32 0.0, %v419
        %v421 = vpop.f32.mrb[0].mxu0
        %v422 = vadd.f32 0.0, %v421
        %v423 = vpop.f32.mrb[0].mxu0
        %v424 = vadd.f32 0.0, %v423
        %425 = vdwg.mxu0
        %426 = vmatprep.subr.bf16.mxu0 0
        %427 = vmatpush1.bf16.msra.mxu0 %v240
        %428 = vmatprep.subr.bf16.mxu0 0
        %429 = vmatpush1.bf16.msra.mxu0 0
        %430 = vmatprep.subr.bf16.mxu0 0
        %431 = vmatpush1.bf16.msra.mxu0 0
        %432 = vmatprep.subr.bf16.mxu0 0
        %433 = vmatpush1.bf16.msra.mxu0 0
        %434 = vmatprep.subr.bf16.mxu0 0
        %435 = vmatpush1.bf16.msra.mxu0 0
        %436 = vmatprep.subr.bf16.mxu0 0
        %437 = vmatpush1.bf16.msra.mxu0 0
        %438 = vmatprep.subr.bf16.mxu0 0
        %439 = vmatpush1.bf16.msra.mxu0 0
        %440 = vmatprep.subr.bf16.mxu0 0
        %441 = vmatpush1.bf16.msra.mxu0 0
        %442 = vmatprep.subr.bf16.mxu0 0
        %443 = vmatpush1.bf16.msra.mxu0 0
        %444 = vmatprep.subr.bf16.mxu0 0
        %445 = vmatpush1.bf16.msra.mxu0 0
        %446 = vmatprep.subr.bf16.mxu0 0
        %447 = vmatpush1.bf16.msra.mxu0 0
        %448 = vmatprep.subr.bf16.mxu0 0
        %449 = vmatpush1.bf16.msra.mxu0 0
        %450 = vmatprep.subr.bf16.mxu0 0
        %451 = vmatpush1.bf16.msra.mxu0 0
        %452 = vmatprep.subr.bf16.mxu0 0
        %453 = vmatpush1.bf16.msra.mxu0 0
        %454 = vmatprep.subr.bf16.mxu0 0
        %455 = vmatpush1.bf16.msra.mxu0 0
        %456 = vmatprep.subr.bf16.mxu0 0
        %457 = vmatpush1.bf16.msra.mxu0 0
        %458 = vmatprep.mubr.bf16.mxu0 0
        %459 = vmatmul.mubr.bf16.gmra.mrb[0].mxu0 %v252
        %v460 = vpop.f32.mrb[0].mxu0
        %v461 = vadd.f32 0.0, %v460
        %v462 = vpop.f32.mrb[0].mxu0
        %v463 = vpop.f32.mrb[0].mxu0
        %v464 = vadd.f32 0.0, %v463
        %v465 = vpop.f32.mrb[0].mxu0
        %466 = vdwg.mxu0
        %s467 = scalar_lea.vmem [#allocation2], 8
        %v468 = vld [vmem:[%s467] sm:$0xf]
        %v469 = vld [vmem:[%s467 + $0x4] sm:$0xf]
        %v472 = vunpack.c.l.b16 %v468
        %v473 = vunpack.c.l.b16 %v469
        %v474 = vpack.c.b16 %v473, %v472
        %v476 = vsel %vm250, %v474, 0
        %478 = vmatprep.subr.bf16.mxu0 %v233
        %479 = vmatpush1.bf16.msra.mxu0 %v232
        %480 = vmatprep.subr.bf16.mxu0 0
        %481 = vmatpush1.bf16.msra.mxu0 0
        %482 = vmatprep.subr.bf16.mxu0 0
        %483 = vmatpush1.bf16.msra.mxu0 0
        %484 = vmatprep.subr.bf16.mxu0 0
        %485 = vmatpush1.bf16.msra.mxu0 0
        %486 = vmatprep.subr.bf16.mxu0 0
        %487 = vmatpush1.bf16.msra.mxu0 0
        %488 = vmatprep.subr.bf16.mxu0 0
        %489 = vmatpush1.bf16.msra.mxu0 0
        %490 = vmatprep.subr.bf16.mxu0 0
        %491 = vmatpush1.bf16.msra.mxu0 0
        %492 = vmatprep.subr.bf16.mxu0 0
        %493 = vmatpush1.bf16.msra.mxu0 0
        %494 = vmatprep.subr.bf16.mxu0 0
        %495 = vmatpush1.bf16.msra.mxu0 0
        %496 = vmatprep.subr.bf16.mxu0 0
        %497 = vmatpush1.bf16.msra.mxu0 0
        %498 = vmatprep.subr.bf16.mxu0 0
        %499 = vmatpush1.bf16.msra.mxu0 0
        %500 = vmatprep.subr.bf16.mxu0 0
        %501 = vmatpush1.bf16.msra.mxu0 0
        %502 = vmatprep.subr.bf16.mxu0 0
        %503 = vmatpush1.bf16.msra.mxu0 0
        %504 = vmatprep.subr.bf16.mxu0 0
        %505 = vmatpush1.bf16.msra.mxu0 0
        %506 = vmatprep.subr.bf16.mxu0 0
        %507 = vmatpush1.bf16.msra.mxu0 0
        %508 = vmatprep.subr.bf16.mxu0 0
        %509 = vmatpush1.bf16.msra.mxu0 0
        %510 = vmatprep.mubr.bf16.mxu0 0
        %511 = vmatmul.mubr.bf16.gmra.mrb[0].mxu0 %v476
        %v512 = vpop.f32.mrb[0].mxu0
        %v513 = vadd.f32 0.0, %v512
        %v514 = vpop.f32.mrb[0].mxu0
        %v515 = vadd.f32 0.0, %v514
        %v516 = vpop.f32.mrb[0].mxu0
        %v517 = vadd.f32 0.0, %v516
        %v518 = vpop.f32.mrb[0].mxu0
        %v519 = vadd.f32 0.0, %v518
        %520 = vdwg.mxu0
        %521 = vmatprep.subr.bf16.mxu0 %v235
        %522 = vmatpush1.bf16.msra.mxu0 %v234
        %523 = vmatprep.subr.bf16.mxu0 0
        %524 = vmatpush1.bf16.msra.mxu0 0
        %525 = vmatprep.subr.bf16.mxu0 0
        %526 = vmatpush1.bf16.msra.mxu0 0
        %527 = vmatprep.subr.bf16.mxu0 0
        %528 = vmatpush1.bf16.msra.mxu0 0
        %529 = vmatprep.subr.bf16.mxu0 0
        %530 = vmatpush1.bf16.msra.mxu0 0
        %531 = vmatprep.subr.bf16.mxu0 0
        %532 = vmatpush1.bf16.msra.mxu0 0
        %533 = vmatprep.subr.bf16.mxu0 0
        %534 = vmatpush1.bf16.msra.mxu0 0
        %535 = vmatprep.subr.bf16.mxu0 0
        %536 = vmatpush1.bf16.msra.mxu0 0
        %537 = vmatprep.subr.bf16.mxu0 0
        %538 = vmatpush1.bf16.msra.mxu0 0
        %539 = vmatprep.subr.bf16.mxu0 0
        %540 = vmatpush1.bf16.msra.mxu0 0
        %541 = vmatprep.subr.bf16.mxu0 0
        %542 = vmatpush1.bf16.msra.mxu0 0
        %543 = vmatprep.subr.bf16.mxu0 0
        %544 = vmatpush1.bf16.msra.mxu0 0
        %545 = vmatprep.subr.bf16.mxu0 0
        %546 = vmatpush1.bf16.msra.mxu0 0
        %547 = vmatprep.subr.bf16.mxu0 0
        %548 = vmatpush1.bf16.msra.mxu0 0
        %549 = vmatprep.subr.bf16.mxu0 0
        %550 = vmatpush1.bf16.msra.mxu0 0
        %551 = vmatprep.subr.bf16.mxu0 0
        %552 = vmatpush1.bf16.msra.mxu0 0
        %553 = vmatprep.mubr.bf16.mxu0 0
        %554 = vmatmul.mubr.bf16.gmra.mrb[0].mxu0 %v476
        %v555 = vpop.f32.mrb[0].mxu0
        %v556 = vadd.f32 0.0, %v555
        %v557 = vpop.f32.mrb[0].mxu0
        %v558 = vadd.f32 0.0, %v557
        %v559 = vpop.f32.mrb[0].mxu0
        %v560 = vadd.f32 0.0, %v559
        %v561 = vpop.f32.mrb[0].mxu0
        %v562 = vadd.f32 0.0, %v561
        %563 = vdwg.mxu0
        %564 = vmatprep.subr.bf16.mxu0 %v237
        %565 = vmatpush1.bf16.msra.mxu0 %v236
        %566 = vmatprep.subr.bf16.mxu0 0
        %567 = vmatpush1.bf16.msra.mxu0 0
        %568 = vmatprep.subr.bf16.mxu0 0
        %569 = vmatpush1.bf16.msra.mxu0 0
        %570 = vmatprep.subr.bf16.mxu0 0
        %571 = vmatpush1.bf16.msra.mxu0 0
        %572 = vmatprep.subr.bf16.mxu0 0
        %573 = vmatpush1.bf16.msra.mxu0 0
        %574 = vmatprep.subr.bf16.mxu0 0
        %575 = vmatpush1.bf16.msra.mxu0 0
        %576 = vmatprep.subr.bf16.mxu0 0
        %577 = vmatpush1.bf16.msra.mxu0 0
        %578 = vmatprep.subr.bf16.mxu0 0
        %579 = vmatpush1.bf16.msra.mxu0 0
        %580 = vmatprep.subr.bf16.mxu0 0
        %581 = vmatpush1.bf16.msra.mxu0 0
        %582 = vmatprep.subr.bf16.mxu0 0
        %583 = vmatpush1.bf16.msra.mxu0 0
        %584 = vmatprep.subr.bf16.mxu0 0
        %585 = vmatpush1.bf16.msra.mxu0 0
        %586 = vmatprep.subr.bf16.mxu0 0
        %587 = vmatpush1.bf16.msra.mxu0 0
        %588 = vmatprep.subr.bf16.mxu0 0
        %589 = vmatpush1.bf16.msra.mxu0 0
        %590 = vmatprep.subr.bf16.mxu0 0
        %591 = vmatpush1.bf16.msra.mxu0 0
        %592 = vmatprep.subr.bf16.mxu0 0
        %593 = vmatpush1.bf16.msra.mxu0 0
        %594 = vmatprep.subr.bf16.mxu0 0
        %595 = vmatpush1.bf16.msra.mxu0 0
        %596 = vmatprep.mubr.bf16.mxu0 0
        %597 = vmatmul.mubr.bf16.gmra.mrb[0].mxu0 %v476
        %v598 = vpop.f32.mrb[0].mxu0
        %v599 = vadd.f32 0.0, %v598
        %v600 = vpop.f32.mrb[0].mxu0
        %v601 = vadd.f32 0.0, %v600
        %v602 = vpop.f32.mrb[0].mxu0
        %v603 = vadd.f32 0.0, %v602
        %v604 = vpop.f32.mrb[0].mxu0
        %v605 = vadd.f32 0.0, %v604
        %606 = vdwg.mxu0
        %607 = vmatprep.subr.bf16.mxu0 %v239
        %608 = vmatpush1.bf16.msra.mxu0 %v238
        %609 = vmatprep.subr.bf16.mxu0 0
        %610 = vmatpush1.bf16.msra.mxu0 0
        %611 = vmatprep.subr.bf16.mxu0 0
        %612 = vmatpush1.bf16.msra.mxu0 0
        %613 = vmatprep.subr.bf16.mxu0 0
        %614 = vmatpush1.bf16.msra.mxu0 0
        %615 = vmatprep.subr.bf16.mxu0 0
        %616 = vmatpush1.bf16.msra.mxu0 0
        %617 = vmatprep.subr.bf16.mxu0 0
        %618 = vmatpush1.bf16.msra.mxu0 0
        %619 = vmatprep.subr.bf16.mxu0 0
        %620 = vmatpush1.bf16.msra.mxu0 0
        %621 = vmatprep.subr.bf16.mxu0 0
        %622 = vmatpush1.bf16.msra.mxu0 0
        %623 = vmatprep.subr.bf16.mxu0 0
        %624 = vmatpush1.bf16.msra.mxu0 0
        %625 = vmatprep.subr.bf16.mxu0 0
        %626 = vmatpush1.bf16.msra.mxu0 0
        %627 = vmatprep.subr.bf16.mxu0 0
        %628 = vmatpush1.bf16.msra.mxu0 0
        %629 = vmatprep.subr.bf16.mxu0 0
        %630 = vmatpush1.bf16.msra.mxu0 0
        %631 = vmatprep.subr.bf16.mxu0 0
        %632 = vmatpush1.bf16.msra.mxu0 0
        %633 = vmatprep.subr.bf16.mxu0 0
        %634 = vmatpush1.bf16.msra.mxu0 0
        %635 = vmatprep.subr.bf16.mxu0 0
        %636 = vmatpush1.bf16.msra.mxu0 0
        %637 = vmatprep.subr.bf16.mxu0 0
        %638 = vmatpush1.bf16.msra.mxu0 0
        %639 = vmatprep.mubr.bf16.mxu0 0
        %640 = vmatmul.mubr.bf16.gmra.mrb[0].mxu0 %v476
        %v641 = vpop.f32.mrb[0].mxu0
        %v642 = vadd.f32 0.0, %v641
        %v643 = vpop.f32.mrb[0].mxu0
        %v644 = vadd.f32 0.0, %v643
        %v645 = vpop.f32.mrb[0].mxu0
        %v646 = vadd.f32 0.0, %v645
        %v647 = vpop.f32.mrb[0].mxu0
        %v648 = vadd.f32 0.0, %v647
        %649 = vdwg.mxu0
        %650 = vmatprep.subr.bf16.mxu0 0
        %651 = vmatpush1.bf16.msra.mxu0 %v240
        %652 = vmatprep.subr.bf16.mxu0 0
        %653 = vmatpush1.bf16.msra.mxu0 0
        %654 = vmatprep.subr.bf16.mxu0 0
        %655 = vmatpush1.bf16.msra.mxu0 0
        %656 = vmatprep.subr.bf16.mxu0 0
        %657 = vmatpush1.bf16.msra.mxu0 0
        %658 = vmatprep.subr.bf16.mxu0 0
        %659 = vmatpush1.bf16.msra.mxu0 0
        %660 = vmatprep.subr.bf16.mxu0 0
        %661 = vmatpush1.bf16.msra.mxu0 0
        %662 = vmatprep.subr.bf16.mxu0 0
        %663 = vmatpush1.bf16.msra.mxu0 0
        %664 = vmatprep.subr.bf16.mxu0 0
        %665 = vmatpush1.bf16.msra.mxu0 0
        %666 = vmatprep.subr.bf16.mxu0 0
        %667 = vmatpush1.bf16.msra.mxu0 0
        %668 = vmatprep.subr.bf16.mxu0 0
        %669 = vmatpush1.bf16.msra.mxu0 0
        %670 = vmatprep.subr.bf16.mxu0 0
        %671 = vmatpush1.bf16.msra.mxu0 0
        %672 = vmatprep.subr.bf16.mxu0 0
        %673 = vmatpush1.bf16.msra.mxu0 0
        %674 = vmatprep.subr.bf16.mxu0 0
        %675 = vmatpush1.bf16.msra.mxu0 0
        %676 = vmatprep.subr.bf16.mxu0 0
        %677 = vmatpush1.bf16.msra.mxu0 0
        %678 = vmatprep.subr.bf16.mxu0 0
        %679 = vmatpush1.bf16.msra.mxu0 0
        %680 = vmatprep.subr.bf16.mxu0 0
        %681 = vmatpush1.bf16.msra.mxu0 0
        %682 = vmatprep.mubr.bf16.mxu0 0
        %683 = vmatmul.mubr.bf16.gmra.mrb[0].mxu0 %v476
        %v684 = vpop.f32.mrb[0].mxu0
        %v685 = vadd.f32 0.0, %v684
        %v686 = vpop.f32.mrb[0].mxu0
        %v687 = vpop.f32.mrb[0].mxu0
        %v688 = vadd.f32 0.0, %v687
        %v689 = vpop.f32.mrb[0].mxu0
        %690 = vdwg.mxu0
        %v691 = vmax.f32 %v289, %v513
        %v692 = vmax.f32 %v291, %v515
        %v693 = vmax.f32 %v332, %v556
        %v694 = vmax.f32 %v334, %v558
        %v695 = vmax.f32 %v375, %v599
        %v696 = vmax.f32 %v377, %v601
        %v697 = vmax.f32 %v418, %v642
        %v698 = vmax.f32 %v420, %v644
        %v699 = vmax.f32 %v461, %v685
        %v700 = vmax.f32 %v293, %v517
        %v701 = vmax.f32 %v295, %v519
        %v702 = vmax.f32 %v336, %v560
        %v703 = vmax.f32 %v338, %v562
        %v704 = vmax.f32 %v379, %v603
        %v705 = vmax.f32 %v381, %v605
        %v706 = vmax.f32 %v422, %v646
        %v707 = vmax.f32 %v424, %v648
        %v708 = vmax.f32 %v464, %v688
        %s709 = scalar_lea.vmem [#allocation2], 16
        %v710 = vld [vmem:[%s709] sm:$0xf]
        %v711 = vld [vmem:[%s709 + $0x4] sm:$0xf]
        %v714 = vunpack.c.l.b16 %v710
        %v715 = vunpack.c.l.b16 %v711
        %v716 = vpack.c.b16 %v715, %v714
        %v718 = vsel %vm250, %v716, 0
        %720 = vmatprep.subr.bf16.mxu0 %v233
        %721 = vmatpush1.bf16.msra.mxu0 %v232
        %722 = vmatprep.subr.bf16.mxu0 0
        %723 = vmatpush1.bf16.msra.mxu0 0
        %724 = vmatprep.subr.bf16.mxu0 0
        %725 = vmatpush1.bf16.msra.mxu0 0
        %726 = vmatprep.subr.bf16.mxu0 0
        %727 = vmatpush1.bf16.msra.mxu0 0
        %728 = vmatprep.subr.bf16.mxu0 0
        %729 = vmatpush1.bf16.msra.mxu0 0
        %730 = vmatprep.subr.bf16.mxu0 0
        %731 = vmatpush1.bf16.msra.mxu0 0
        %732 = vmatprep.subr.bf16.mxu0 0
        %733 = vmatpush1.bf16.msra.mxu0 0
        %734 = vmatprep.subr.bf16.mxu0 0
        %735 = vmatpush1.bf16.msra.mxu0 0
        %736 = vmatprep.subr.bf16.mxu0 0
        %737 = vmatpush1.bf16.msra.mxu0 0
        %738 = vmatprep.subr.bf16.mxu0 0
        %739 = vmatpush1.bf16.msra.mxu0 0
        %740 = vmatprep.subr.bf16.mxu0 0
        %741 = vmatpush1.bf16.msra.mxu0 0
        %742 = vmatprep.subr.bf16.mxu0 0
        %743 = vmatpush1.bf16.msra.mxu0 0
        %744 = vmatprep.subr.bf16.mxu0 0
        %745 = vmatpush1.bf16.msra.mxu0 0
        %746 = vmatprep.subr.bf16.mxu0 0
        %747 = vmatpush1.bf16.msra.mxu0 0
        %748 = vmatprep.subr.bf16.mxu0 0
        %749 = vmatpush1.bf16.msra.mxu0 0
        %750 = vmatprep.subr.bf16.mxu0 0
        %751 = vmatpush1.bf16.msra.mxu0 0
        %752 = vmatprep.mubr.bf16.mxu0 0
        %753 = vmatmul.mubr.bf16.gmra.mrb[0].mxu0 %v718
        %v754 = vpop.f32.mrb[0].mxu0
        %v755 = vadd.f32 0.0, %v754
        %v756 = vpop.f32.mrb[0].mxu0
        %v757 = vadd.f32 0.0, %v756
        %v758 = vpop.f32.mrb[0].mxu0
        %v759 = vadd.f32 0.0, %v758
        %v760 = vpop.f32.mrb[0].mxu0
        %v761 = vadd.f32 0.0, %v760
        %762 = vdwg.mxu0
        %763 = vmatprep.subr.bf16.mxu0 %v235
        %764 = vmatpush1.bf16.msra.mxu0 %v234
        %765 = vmatprep.subr.bf16.mxu0 0
        %766 = vmatpush1.bf16.msra.mxu0 0
        %767 = vmatprep.subr.bf16.mxu0 0
        %768 = vmatpush1.bf16.msra.mxu0 0
        %769 = vmatprep.subr.bf16.mxu0 0
        %770 = vmatpush1.bf16.msra.mxu0 0
        %771 = vmatprep.subr.bf16.mxu0 0
        %772 = vmatpush1.bf16.msra.mxu0 0
        %773 = vmatprep.subr.bf16.mxu0 0
        %774 = vmatpush1.bf16.msra.mxu0 0
        %775 = vmatprep.subr.bf16.mxu0 0
        %776 = vmatpush1.bf16.msra.mxu0 0
        %777 = vmatprep.subr.bf16.mxu0 0
        %778 = vmatpush1.bf16.msra.mxu0 0
        %779 = vmatprep.subr.bf16.mxu0 0
        %780 = vmatpush1.bf16.msra.mxu0 0
        %781 = vmatprep.subr.bf16.mxu0 0
        %782 = vmatpush1.bf16.msra.mxu0 0
        %783 = vmatprep.subr.bf16.mxu0 0
        %784 = vmatpush1.bf16.msra.mxu0 0
        %785 = vmatprep.subr.bf16.mxu0 0
        %786 = vmatpush1.bf16.msra.mxu0 0
        %787 = vmatprep.subr.bf16.mxu0 0
        %788 = vmatpush1.bf16.msra.mxu0 0
        %789 = vmatprep.subr.bf16.mxu0 0
        %790 = vmatpush1.bf16.msra.mxu0 0
        %791 = vmatprep.subr.bf16.mxu0 0
        %792 = vmatpush1.bf16.msra.mxu0 0
        %793 = vmatprep.subr.bf16.mxu0 0
        %794 = vmatpush1.bf16.msra.mxu0 0
        %795 = vmatprep.mubr.bf16.mxu0 0
        %796 = vmatmul.mubr.bf16.gmra.mrb[0].mxu0 %v718
        %v797 = vpop.f32.mrb[0].mxu0
        %v798 = vadd.f32 0.0, %v797
        %v799 = vpop.f32.mrb[0].mxu0
        %v800 = vadd.f32 0.0, %v799
        %v801 = vpop.f32.mrb[0].mxu0
        %v802 = vadd.f32 0.0, %v801
        %v803 = vpop.f32.mrb[0].mxu0
        %v804 = vadd.f32 0.0, %v803
        %805 = vdwg.mxu0
        %806 = vmatprep.subr.bf16.mxu0 %v237
        %807 = vmatpush1.bf16.msra.mxu0 %v236
        %808 = vmatprep.subr.bf16.mxu0 0
        %809 = vmatpush1.bf16.msra.mxu0 0
        %810 = vmatprep.subr.bf16.mxu0 0
        %811 = vmatpush1.bf16.msra.mxu0 0
        %812 = vmatprep.subr.bf16.mxu0 0
        %813 = vmatpush1.bf16.msra.mxu0 0
        %814 = vmatprep.subr.bf16.mxu0 0
        %815 = vmatpush1.bf16.msra.mxu0 0
        %816 = vmatprep.subr.bf16.mxu0 0
        %817 = vmatpush1.bf16.msra.mxu0 0
        %818 = vmatprep.subr.bf16.mxu0 0
        %819 = vmatpush1.bf16.msra.mxu0 0
        %820 = vmatprep.subr.bf16.mxu0 0
        %821 = vmatpush1.bf16.msra.mxu0 0
        %822 = vmatprep.subr.bf16.mxu0 0
        %823 = vmatpush1.bf16.msra.mxu0 0
        %824 = vmatprep.subr.bf16.mxu0 0
        %825 = vmatpush1.bf16.msra.mxu0 0
        %826 = vmatprep.subr.bf16.mxu0 0
        %827 = vmatpush1.bf16.msra.mxu0 0
        %828 = vmatprep.subr.bf16.mxu0 0
        %829 = vmatpush1.bf16.msra.mxu0 0
        %830 = vmatprep.subr.bf16.mxu0 0
        %831 = vmatpush1.bf16.msra.mxu0 0
        %832 = vmatprep.subr.bf16.mxu0 0
        %833 = vmatpush1.bf16.msra.mxu0 0
        %834 = vmatprep.subr.bf16.mxu0 0
        %835 = vmatpush1.bf16.msra.mxu0 0
        %836 = vmatprep.subr.bf16.mxu0 0
        %837 = vmatpush1.bf16.msra.mxu0 0
        %838 = vmatprep.mubr.bf16.mxu0 0
        %839 = vmatmul.mubr.bf16.gmra.mrb[0].mxu0 %v718
        %v840 = vpop.f32.mrb[0].mxu0
        %v841 = vadd.f32 0.0, %v840
        %v842 = vpop.f32.mrb[0].mxu0
        %v843 = vadd.f32 0.0, %v842
        %v844 = vpop.f32.mrb[0].mxu0
        %v845 = vadd.f32 0.0, %v844
        %v846 = vpop.f32.mrb[0].mxu0
        %v847 = vadd.f32 0.0, %v846
        %848 = vdwg.mxu0
        %849 = vmatprep.subr.bf16.mxu0 %v239
        %850 = vmatpush1.bf16.msra.mxu0 %v238
        %851 = vmatprep.subr.bf16.mxu0 0
        %852 = vmatpush1.bf16.msra.mxu0 0
        %853 = vmatprep.subr.bf16.mxu0 0
        %854 = vmatpush1.bf16.msra.mxu0 0
        %855 = vmatprep.subr.bf16.mxu0 0
        %856 = vmatpush1.bf16.msra.mxu0 0
        %857 = vmatprep.subr.bf16.mxu0 0
        %858 = vmatpush1.bf16.msra.mxu0 0
        %859 = vmatprep.subr.bf16.mxu0 0
        %860 = vmatpush1.bf16.msra.mxu0 0
        %861 = vmatprep.subr.bf16.mxu0 0
        %862 = vmatpush1.bf16.msra.mxu0 0
        %863 = vmatprep.subr.bf16.mxu0 0
        %864 = vmatpush1.bf16.msra.mxu0 0
        %865 = vmatprep.subr.bf16.mxu0 0
        %866 = vmatpush1.bf16.msra.mxu0 0
        %867 = vmatprep.subr.bf16.mxu0 0
        %868 = vmatpush1.bf16.msra.mxu0 0
        %869 = vmatprep.subr.bf16.mxu0 0
        %870 = vmatpush1.bf16.msra.mxu0 0
        %871 = vmatprep.subr.bf16.mxu0 0
        %872 = vmatpush1.bf16.msra.mxu0 0
        %873 = vmatprep.subr.bf16.mxu0 0
        %874 = vmatpush1.bf16.msra.mxu0 0
        %875 = vmatprep.subr.bf16.mxu0 0
        %876 = vmatpush1.bf16.msra.mxu0 0
        %877 = vmatprep.subr.bf16.mxu0 0
        %878 = vmatpush1.bf16.msra.mxu0 0
        %879 = vmatprep.subr.bf16.mxu0 0
        %880 = vmatpush1.bf16.msra.mxu0 0
        %881 = vmatprep.mubr.bf16.mxu0 0
        %882 = vmatmul.mubr.bf16.gmra.mrb[0].mxu0 %v718
        %v883 = vpop.f32.mrb[0].mxu0
        %v884 = vadd.f32 0.0, %v883
        %v885 = vpop.f32.mrb[0].mxu0
        %v886 = vadd.f32 0.0, %v885
        %v887 = vpop.f32.mrb[0].mxu0
        %v888 = vadd.f32 0.0, %v887
        %v889 = vpop.f32.mrb[0].mxu0
        %v890 = vadd.f32 0.0, %v889
        %891 = vdwg.mxu0
        %892 = vmatprep.subr.bf16.mxu0 0
        %893 = vmatpush1.bf16.msra.mxu0 %v240
        %894 = vmatprep.subr.bf16.mxu0 0
        %895 = vmatpush1.bf16.msra.mxu0 0
        %896 = vmatprep.subr.bf16.mxu0 0
        %897 = vmatpush1.bf16.msra.mxu0 0
        %898 = vmatprep.subr.bf16.mxu0 0
        %899 = vmatpush1.bf16.msra.mxu0 0
        %900 = vmatprep.subr.bf16.mxu0 0
        %901 = vmatpush1.bf16.msra.mxu0 0
        %902 = vmatprep.subr.bf16.mxu0 0
        %903 = vmatpush1.bf16.msra.mxu0 0
        %904 = vmatprep.subr.bf16.mxu0 0
        %905 = vmatpush1.bf16.msra.mxu0 0
        %906 = vmatprep.subr.bf16.mxu0 0
        %907 = vmatpush1.bf16.msra.mxu0 0
        %908 = vmatprep.subr.bf16.mxu0 0
        %909 = vmatpush1.bf16.msra.mxu0 0
        %910 = vmatprep.subr.bf16.mxu0 0
        %911 = vmatpush1.bf16.msra.mxu0 0
        %912 = vmatprep.subr.bf16.mxu0 0
        %913 = vmatpush1.bf16.msra.mxu0 0
        %914 = vmatprep.subr.bf16.mxu0 0
        %915 = vmatpush1.bf16.msra.mxu0 0
        %916 = vmatprep.subr.bf16.mxu0 0
        %917 = vmatpush1.bf16.msra.mxu0 0
        %918 = vmatprep.subr.bf16.mxu0 0
        %919 = vmatpush1.bf16.msra.mxu0 0
        %920 = vmatprep.subr.bf16.mxu0 0
        %921 = vmatpush1.bf16.msra.mxu0 0
        %922 = vmatprep.subr.bf16.mxu0 0
        %923 = vmatpush1.bf16.msra.mxu0 0
        %924 = vmatprep.mubr.bf16.mxu0 0
        %925 = vmatmul.mubr.bf16.gmra.mrb[0].mxu0 %v718
        %v926 = vpop.f32.mrb[0].mxu0
        %v927 = vadd.f32 0.0, %v926
        %v928 = vpop.f32.mrb[0].mxu0
        %v929 = vpop.f32.mrb[0].mxu0
        %v930 = vadd.f32 0.0, %v929
        %v931 = vpop.f32.mrb[0].mxu0
        %932 = vdwg.mxu0
        %v933 = vmax.f32 %v691, %v755
        %v934 = vmax.f32 %v692, %v757
        %v935 = vmax.f32 %v693, %v798
        %v936 = vmax.f32 %v694, %v800
        %v937 = vmax.f32 %v695, %v841
        %v938 = vmax.f32 %v696, %v843
        %v939 = vmax.f32 %v697, %v884
        %v940 = vmax.f32 %v698, %v886
        %v941 = vmax.f32 %v699, %v927
        %v942 = vmax.f32 %v700, %v759
        %v943 = vmax.f32 %v701, %v761
        %v944 = vmax.f32 %v702, %v802
        %v945 = vmax.f32 %v703, %v804
        %v946 = vmax.f32 %v704, %v845
        %v947 = vmax.f32 %v705, %v847
        %v948 = vmax.f32 %v706, %v888
        %v949 = vmax.f32 %v707, %v890
        %v950 = vmax.f32 %v708, %v930
        %s951 = scalar_lea.vmem [#allocation2], 24
        %v952 = vld [vmem:[%s951] sm:$0xf]
        %v953 = vld [vmem:[%s951 + $0x4] sm:$0xf]
        %v956 = vunpack.c.l.b16 %v952
        %v957 = vunpack.c.l.b16 %v953
        %v958 = vpack.c.b16 %v957, %v956
        %v960 = vsel %vm250, %v958, 0
        %962 = vmatprep.subr.bf16.mxu0 %v233
        %963 = vmatpush1.bf16.msra.mxu0 %v232
        %964 = vmatprep.subr.bf16.mxu0 0
        %965 = vmatpush1.bf16.msra.mxu0 0
        %966 = vmatprep.subr.bf16.mxu0 0
        %967 = vmatpush1.bf16.msra.mxu0 0
        %968 = vmatprep.subr.bf16.mxu0 0
        %969 = vmatpush1.bf16.msra.mxu0 0
        %970 = vmatprep.subr.bf16.mxu0 0
        %971 = vmatpush1.bf16.msra.mxu0 0
        %972 = vmatprep.subr.bf16.mxu0 0
        %973 = vmatpush1.bf16.msra.mxu0 0
        %974 = vmatprep.subr.bf16.mxu0 0
        %975 = vmatpush1.bf16.msra.mxu0 0
        %976 = vmatprep.subr.bf16.mxu0 0
        %977 = vmatpush1.bf16.msra.mxu0 0
        %978 = vmatprep.subr.bf16.mxu0 0
        %979 = vmatpush1.bf16.msra.mxu0 0
        %980 = vmatprep.subr.bf16.mxu0 0
        %981 = vmatpush1.bf16.msra.mxu0 0
        %982 = vmatprep.subr.bf16.mxu0 0
        %983 = vmatpush1.bf16.msra.mxu0 0
        %984 = vmatprep.subr.bf16.mxu0 0
        %985 = vmatpush1.bf16.msra.mxu0 0
        %986 = vmatprep.subr.bf16.mxu0 0
        %987 = vmatpush1.bf16.msra.mxu0 0
        %988 = vmatprep.subr.bf16.mxu0 0
        %989 = vmatpush1.bf16.msra.mxu0 0
        %990 = vmatprep.subr.bf16.mxu0 0
        %991 = vmatpush1.bf16.msra.mxu0 0
        %992 = vmatprep.subr.bf16.mxu0 0
        %993 = vmatpush1.bf16.msra.mxu0 0
        %994 = vmatprep.mubr.bf16.mxu0 0
        %995 = vmatmul.mubr.bf16.gmra.mrb[0].mxu0 %v960
        %v996 = vpop.f32.mrb[0].mxu0
        %v997 = vadd.f32 0.0, %v996
        %v998 = vpop.f32.mrb[0].mxu0
        %v999 = vadd.f32 0.0, %v998
        %v1000 = vpop.f32.mrb[0].mxu0
        %v1001 = vadd.f32 0.0, %v1000
        %v1002 = vpop.f32.mrb[0].mxu0
        %v1003 = vadd.f32 0.0, %v1002
        %1004 = vdwg.mxu0
        %1005 = vmatprep.subr.bf16.mxu0 %v235
        %1006 = vmatpush1.bf16.msra.mxu0 %v234
        %1007 = vmatprep.subr.bf16.mxu0 0
        %1008 = vmatpush1.bf16.msra.mxu0 0
        %1009 = vmatprep.subr.bf16.mxu0 0
        %1010 = vmatpush1.bf16.msra.mxu0 0
        %1011 = vmatprep.subr.bf16.mxu0 0
        %1012 = vmatpush1.bf16.msra.mxu0 0
        %1013 = vmatprep.subr.bf16.mxu0 0
        %1014 = vmatpush1.bf16.msra.mxu0 0
        %1015 = vmatprep.subr.bf16.mxu0 0
        %1016 = vmatpush1.bf16.msra.mxu0 0
        %1017 = vmatprep.subr.bf16.mxu0 0
        %1018 = vmatpush1.bf16.msra.mxu0 0
        %1019 = vmatprep.subr.bf16.mxu0 0
        %1020 = vmatpush1.bf16.msra.mxu0 0
        %1021 = vmatprep.subr.bf16.mxu0 0
        %1022 = vmatpush1.bf16.msra.mxu0 0
        %1023 = vmatprep.subr.bf16.mxu0 0
        %1024 = vmatpush1.bf16.msra.mxu0 0
        %1025 = vmatprep.subr.bf16.mxu0 0
        %1026 = vmatpush1.bf16.msra.mxu0 0
        %1027 = vmatprep.subr.bf16.mxu0 0
        %1028 = vmatpush1.bf16.msra.mxu0 0
        %1029 = vmatprep.subr.bf16.mxu0 0
        %1030 = vmatpush1.bf16.msra.mxu0 0
        %1031 = vmatprep.subr.bf16.mxu0 0
        %1032 = vmatpush1.bf16.msra.mxu0 0
        %1033 = vmatprep.subr.bf16.mxu0 0
        %1034 = vmatpush1.bf16.msra.mxu0 0
        %1035 = vmatprep.subr.bf16.mxu0 0
        %1036 = vmatpush1.bf16.msra.mxu0 0
        %1037 = vmatprep.mubr.bf16.mxu0 0
        %1038 = vmatmul.mubr.bf16.gmra.mrb[0].mxu0 %v960
        %v1039 = vpop.f32.mrb[0].mxu0
        %v1040 = vadd.f32 0.0, %v1039
        %v1041 = vpop.f32.mrb[0].mxu0
        %v1042 = vadd.f32 0.0, %v1041
        %v1043 = vpop.f32.mrb[0].mxu0
        %v1044 = vadd.f32 0.0, %v1043
        %v1045 = vpop.f32.mrb[0].mxu0
        %v1046 = vadd.f32 0.0, %v1045
        %1047 = vdwg.mxu0
        %1048 = vmatprep.subr.bf16.mxu0 %v237
        %1049 = vmatpush1.bf16.msra.mxu0 %v236
        %1050 = vmatprep.subr.bf16.mxu0 0
        %1051 = vmatpush1.bf16.msra.mxu0 0
        %1052 = vmatprep.subr.bf16.mxu0 0
        %1053 = vmatpush1.bf16.msra.mxu0 0
        %1054 = vmatprep.subr.bf16.mxu0 0
        %1055 = vmatpush1.bf16.msra.mxu0 0
        %1056 = vmatprep.subr.bf16.mxu0 0
        %1057 = vmatpush1.bf16.msra.mxu0 0
        %1058 = vmatprep.subr.bf16.mxu0 0
        %1059 = vmatpush1.bf16.msra.mxu0 0
        %1060 = vmatprep.subr.bf16.mxu0 0
        %1061 = vmatpush1.bf16.msra.mxu0 0
        %1062 = vmatprep.subr.bf16.mxu0 0
        %1063 = vmatpush1.bf16.msra.mxu0 0
        %1064 = vmatprep.subr.bf16.mxu0 0
        %1065 = vmatpush1.bf16.msra.mxu0 0
        %1066 = vmatprep.subr.bf16.mxu0 0
        %1067 = vmatpush1.bf16.msra.mxu0 0
        %1068 = vmatprep.subr.bf16.mxu0 0
        %1069 = vmatpush1.bf16.msra.mxu0 0
        %1070 = vmatprep.subr.bf16.mxu0 0
        %1071 = vmatpush1.bf16.msra.mxu0 0
        %1072 = vmatprep.subr.bf16.mxu0 0
        %1073 = vmatpush1.bf16.msra.mxu0 0
        %1074 = vmatprep.subr.bf16.mxu0 0
        %1075 = vmatpush1.bf16.msra.mxu0 0
        %1076 = vmatprep.subr.bf16.mxu0 0
        %1077 = vmatpush1.bf16.msra.mxu0 0
        %1078 = vmatprep.subr.bf16.mxu0 0
        %1079 = vmatpush1.bf16.msra.mxu0 0
        %1080 = vmatprep.mubr.bf16.mxu0 0
        %1081 = vmatmul.mubr.bf16.gmra.mrb[0].mxu0 %v960
        %v1082 = vpop.f32.mrb[0].mxu0
        %v1083 = vadd.f32 0.0, %v1082
        %v1084 = vpop.f32.mrb[0].mxu0
        %v1085 = vadd.f32 0.0, %v1084
        %v1086 = vpop.f32.mrb[0].mxu0
        %v1087 = vadd.f32 0.0, %v1086
        %v1088 = vpop.f32.mrb[0].mxu0
        %v1089 = vadd.f32 0.0, %v1088
        %1090 = vdwg.mxu0
        %1091 = vmatprep.subr.bf16.mxu0 %v239
        %1092 = vmatpush1.bf16.msra.mxu0 %v238
        %1093 = vmatprep.subr.bf16.mxu0 0
        %1094 = vmatpush1.bf16.msra.mxu0 0
        %1095 = vmatprep.subr.bf16.mxu0 0
        %1096 = vmatpush1.bf16.msra.mxu0 0
        %1097 = vmatprep.subr.bf16.mxu0 0
        %1098 = vmatpush1.bf16.msra.mxu0 0
        %1099 = vmatprep.subr.bf16.mxu0 0
        %1100 = vmatpush1.bf16.msra.mxu0 0
        %1101 = vmatprep.subr.bf16.mxu0 0
        %1102 = vmatpush1.bf16.msra.mxu0 0
        %1103 = vmatprep.subr.bf16.mxu0 0
        %1104 = vmatpush1.bf16.msra.mxu0 0
        %1105 = vmatprep.subr.bf16.mxu0 0
        %1106 = vmatpush1.bf16.msra.mxu0 0
        %1107 = vmatprep.subr.bf16.mxu0 0
        %1108 = vmatpush1.bf16.msra.mxu0 0
        %1109 = vmatprep.subr.bf16.mxu0 0
        %1110 = vmatpush1.bf16.msra.mxu0 0
        %1111 = vmatprep.subr.bf16.mxu0 0
        %1112 = vmatpush1.bf16.msra.mxu0 0
        %1113 = vmatprep.subr.bf16.mxu0 0
        %1114 = vmatpush1.bf16.msra.mxu0 0
        %1115 = vmatprep.subr.bf16.mxu0 0
        %1116 = vmatpush1.bf16.msra.mxu0 0
        %1117 = vmatprep.subr.bf16.mxu0 0
        %1118 = vmatpush1.bf16.msra.mxu0 0
        %1119 = vmatprep.subr.bf16.mxu0 0
        %1120 = vmatpush1.bf16.msra.mxu0 0
        %1121 = vmatprep.subr.bf16.mxu0 0
        %1122 = vmatpush1.bf16.msra.mxu0 0
        %1123 = vmatprep.mubr.bf16.mxu0 0
        %1124 = vmatmul.mubr.bf16.gmra.mrb[0].mxu0 %v960
        %v1125 = vpop.f32.mrb[0].mxu0
        %v1126 = vadd.f32 0.0, %v1125
        %v1127 = vpop.f32.mrb[0].mxu0
        %v1128 = vadd.f32 0.0, %v1127
        %v1129 = vpop.f32.mrb[0].mxu0
        %v1130 = vadd.f32 0.0, %v1129
        %v1131 = vpop.f32.mrb[0].mxu0
        %v1132 = vadd.f32 0.0, %v1131
        %1133 = vdwg.mxu0
        %1134 = vmatprep.subr.bf16.mxu0 0
        %1135 = vmatpush1.bf16.msra.mxu0 %v240
        %1136 = vmatprep.subr.bf16.mxu0 0
        %1137 = vmatpush1.bf16.msra.mxu0 0
        %1138 = vmatprep.subr.bf16.mxu0 0
        %1139 = vmatpush1.bf16.msra.mxu0 0
        %1140 = vmatprep.subr.bf16.mxu0 0
        %1141 = vmatpush1.bf16.msra.mxu0 0
        %1142 = vmatprep.subr.bf16.mxu0 0
        %1143 = vmatpush1.bf16.msra.mxu0 0
        %1144 = vmatprep.subr.bf16.mxu0 0
        %1145 = vmatpush1.bf16.msra.mxu0 0
        %1146 = vmatprep.subr.bf16.mxu0 0
        %1147 = vmatpush1.bf16.msra.mxu0 0
        %1148 = vmatprep.subr.bf16.mxu0 0
        %1149 = vmatpush1.bf16.msra.mxu0 0
        %1150 = vmatprep.subr.bf16.mxu0 0
        %1151 = vmatpush1.bf16.msra.mxu0 0
        %1152 = vmatprep.subr.bf16.mxu0 0
        %1153 = vmatpush1.bf16.msra.mxu0 0
        %1154 = vmatprep.subr.bf16.mxu0 0
        %1155 = vmatpush1.bf16.msra.mxu0 0
        %1156 = vmatprep.subr.bf16.mxu0 0
        %1157 = vmatpush1.bf16.msra.mxu0 0
        %1158 = vmatprep.subr.bf16.mxu0 0
        %1159 = vmatpush1.bf16.msra.mxu0 0
        %1160 = vmatprep.subr.bf16.mxu0 0
        %1161 = vmatpush1.bf16.msra.mxu0 0
        %1162 = vmatprep.subr.bf16.mxu0 0
        %1163 = vmatpush1.bf16.msra.mxu0 0
        %1164 = vmatprep.subr.bf16.mxu0 0
        %1165 = vmatpush1.bf16.msra.mxu0 0
        %1166 = vmatprep.mubr.bf16.mxu0 0
        %1167 = vmatmul.mubr.bf16.gmra.mrb[0].mxu0 %v960
        %v1168 = vpop.f32.mrb[0].mxu0
        %v1169 = vadd.f32 0.0, %v1168
        %v1170 = vpop.f32.mrb[0].mxu0
        %v1171 = vpop.f32.mrb[0].mxu0
        %v1172 = vadd.f32 0.0, %v1171
        %v1173 = vpop.f32.mrb[0].mxu0
        %1174 = vdwg.mxu0
        %v1175 = vmax.f32 %v933, %v997
        %v1176 = vmax.f32 %v934, %v999
        %v1177 = vmax.f32 %v935, %v1040
        %v1178 = vmax.f32 %v936, %v1042
        %v1179 = vmax.f32 %v937, %v1083
        %v1180 = vmax.f32 %v938, %v1085
        %v1181 = vmax.f32 %v939, %v1126
        %v1182 = vmax.f32 %v940, %v1128
        %v1183 = vmax.f32 %v941, %v1169
        %v1184 = vmax.f32 %v942, %v1001
        %v1185 = vmax.f32 %v943, %v1003
        %v1186 = vmax.f32 %v944, %v1044
        %v1187 = vmax.f32 %v945, %v1046
        %v1188 = vmax.f32 %v946, %v1087
        %v1189 = vmax.f32 %v947, %v1089
        %v1190 = vmax.f32 %v948, %v1130
        %v1191 = vmax.f32 %v949, %v1132
        %v1192 = vmax.f32 %v950, %v1172
        %v1193 = vld [vmem:[%s2] sm:$0xff]
        %v1194 = vld [vmem:[%s2 + $0x8] sm:$0xff]
        %1196 = vset.pattern.permute.xlu0 0
        %1197 = vperm.xlu0 %1196, %v1193
        %v1198 = vpop.permute.xlu0 %1197
        %1201 = vset.pattern.permute.xlu0 0
        %1202 = vperm.xlu0 %1201, %v1194
        %v1203 = vpop.permute.xlu0 %1202
        %v1205 = vadd.f32 %v1175, %v1198
        %v1206 = vadd.f32 %v1176, %v1198
        %v1207 = vadd.f32 %v1177, %v1198
        %v1208 = vadd.f32 %v1178, %v1198
        %v1209 = vadd.f32 %v1179, %v1198
        %v1210 = vadd.f32 %v1180, %v1198
        %v1211 = vadd.f32 %v1181, %v1198
        %v1212 = vadd.f32 %v1182, %v1198
        %v1213 = vadd.f32 %v1183, %v1198
        %v1214 = vadd.f32 %v1184, %v1203
        %v1215 = vadd.f32 %v1185, %v1203
        %v1216 = vadd.f32 %v1186, %v1203
        %v1217 = vadd.f32 %v1187, %v1203
        %v1218 = vadd.f32 %v1188, %v1203
        %v1219 = vadd.f32 %v1189, %v1203
        %v1220 = vadd.f32 %v1190, %v1203
        %v1221 = vadd.f32 %v1191, %v1203
        %v1222 = vadd.f32 %v1192, %v1203
        %vm1223 = vcmp.gt.f32.partialorder %v1205, 0.0
        %vm1224 = vcmp.gt.f32.partialorder %v1206, 0.0
        %vm1225 = vcmp.gt.f32.partialorder %v1207, 0.0
        %vm1226 = vcmp.gt.f32.partialorder %v1208, 0.0
        %vm1227 = vcmp.gt.f32.partialorder %v1209, 0.0
        %vm1228 = vcmp.gt.f32.partialorder %v1210, 0.0
        %vm1229 = vcmp.gt.f32.partialorder %v1211, 0.0
        %vm1230 = vcmp.gt.f32.partialorder %v1212, 0.0
        %vm1231 = vcmp.gt.f32.partialorder %v1213, 0.0
        %vm1232 = vcmp.gt.f32.partialorder %v1214, 0.0
        %vm1233 = vcmp.gt.f32.partialorder %v1215, 0.0
        %vm1234 = vcmp.gt.f32.partialorder %v1216, 0.0
        %vm1235 = vcmp.gt.f32.partialorder %v1217, 0.0
        %vm1236 = vcmp.gt.f32.partialorder %v1218, 0.0
        %vm1237 = vcmp.gt.f32.partialorder %v1219, 0.0
        %vm1238 = vcmp.gt.f32.partialorder %v1220, 0.0
        %vm1239 = vcmp.gt.f32.partialorder %v1221, 0.0
        %vm1240 = vcmp.gt.f32.partialorder %v1222, 0.0
        %v1241 = vmin.f32 %v1205, 0.0
        %v1242 = vmin.f32 %v1206, 0.0
        %v1243 = vmin.f32 %v1207, 0.0
        %v1244 = vmin.f32 %v1208, 0.0
        %v1245 = vmin.f32 %v1209, 0.0
        %v1246 = vmin.f32 %v1210, 0.0
        %v1247 = vmin.f32 %v1211, 0.0
        %v1248 = vmin.f32 %v1212, 0.0
        %v1249 = vmin.f32 %v1213, 0.0
        %v1250 = vmin.f32 %v1214, 0.0
        %v1251 = vmin.f32 %v1215, 0.0
        %v1252 = vmin.f32 %v1216, 0.0
        %v1253 = vmin.f32 %v1217, 0.0
        %v1254 = vmin.f32 %v1218, 0.0
        %v1255 = vmin.f32 %v1219, 0.0
        %v1256 = vmin.f32 %v1220, 0.0
        %v1257 = vmin.f32 %v1221, 0.0
        %v1258 = vmin.f32 %v1222, 0.0
        %v1259 = vmul.f32 %v1241, 1.442695
        %v1260 = vpow.pop %v1259
        %v1261 = vmul.f32 %v1242, 1.442695
        %v1262 = vpow.pop %v1261
        %v1263 = vmul.f32 %v1243, 1.442695
        %v1264 = vpow.pop %v1263
        %v1265 = vmul.f32 %v1244, 1.442695
        %v1266 = vpow.pop %v1265
        %v1267 = vmul.f32 %v1245, 1.442695
        %v1268 = vpow.pop %v1267
        %v1269 = vmul.f32 %v1246, 1.442695
        %v1270 = vpow.pop %v1269
        %v1271 = vmul.f32 %v1247, 1.442695
        %v1272 = vpow.pop %v1271
        %v1273 = vmul.f32 %v1248, 1.442695
        %v1274 = vpow.pop %v1273
        %v1275 = vmul.f32 %v1249, 1.442695
        %v1276 = vpow.pop %v1275
        %v1277 = vmul.f32 %v1250, 1.442695
        %v1278 = vpow.pop %v1277
        %v1279 = vmul.f32 %v1251, 1.442695
        %v1280 = vpow.pop %v1279
        %v1281 = vmul.f32 %v1252, 1.442695
        %v1282 = vpow.pop %v1281
        %v1283 = vmul.f32 %v1253, 1.442695
        %v1284 = vpow.pop %v1283
        %v1285 = vmul.f32 %v1254, 1.442695
        %v1286 = vpow.pop %v1285
        %v1287 = vmul.f32 %v1255, 1.442695
        %v1288 = vpow.pop %v1287
        %v1289 = vmul.f32 %v1256, 1.442695
        %v1290 = vpow.pop %v1289
        %v1291 = vmul.f32 %v1257, 1.442695
        %v1292 = vpow.pop %v1291
        %v1293 = vmul.f32 %v1258, 1.442695
        %v1294 = vpow.pop %v1293
        %v1295 = vsub.f32 %v1260, 1.0
        %v1296 = vsub.f32 %v1262, 1.0
        %v1297 = vsub.f32 %v1264, 1.0
        %v1298 = vsub.f32 %v1266, 1.0
        %v1299 = vsub.f32 %v1268, 1.0
        %v1300 = vsub.f32 %v1270, 1.0
        %v1301 = vsub.f32 %v1272, 1.0
        %v1302 = vsub.f32 %v1274, 1.0
        %v1303 = vsub.f32 %v1276, 1.0
        %v1304 = vsub.f32 %v1278, 1.0
        %v1305 = vsub.f32 %v1280, 1.0
        %v1306 = vsub.f32 %v1282, 1.0
        %v1307 = vsub.f32 %v1284, 1.0
        %v1308 = vsub.f32 %v1286, 1.0
        %v1309 = vsub.f32 %v1288, 1.0
        %v1310 = vsub.f32 %v1290, 1.0
        %v1311 = vsub.f32 %v1292, 1.0
        %v1312 = vsub.f32 %v1294, 1.0
        %v1313 = vsel %vm1223, %v1205, %v1295
        %v1314 = vsel %vm1224, %v1206, %v1296
        %v1315 = vsel %vm1225, %v1207, %v1297
        %v1316 = vsel %vm1226, %v1208, %v1298
        %v1317 = vsel %vm1227, %v1209, %v1299
        %v1318 = vsel %vm1228, %v1210, %v1300
        %v1319 = vsel %vm1229, %v1211, %v1301
        %v1320 = vsel %vm1230, %v1212, %v1302
        %v1321 = vsel %vm1231, %v1213, %v1303
        %v1322 = vsel %vm1232, %v1214, %v1304
        %v1323 = vsel %vm1233, %v1215, %v1305
        %v1324 = vsel %vm1234, %v1216, %v1306
        %v1325 = vsel %vm1235, %v1217, %v1307
        %v1326 = vsel %vm1236, %v1218, %v1308
        %v1327 = vsel %vm1237, %v1219, %v1309
        %v1328 = vsel %vm1238, %v1220, %v1310
        %v1329 = vsel %vm1239, %v1221, %v1311
        %v1330 = vsel %vm1240, %v1222, %v1312
        %v1331 = vpack.c.bf16 %v1322, %v1313
        %v1332 = vpack.c.bf16 %v1323, %v1314
        %v1333 = vpack.c.bf16 %v1324, %v1315
        %v1334 = vpack.c.bf16 %v1325, %v1316
        %v1335 = vpack.c.bf16 %v1326, %v1317
        %v1336 = vpack.c.bf16 %v1327, %v1318
        %v1337 = vpack.c.bf16 %v1328, %v1319
        %v1338 = vpack.c.bf16 %v1329, %v1320
        %v1339 = vpack.c.bf16 %v1330, %v1321
        %v1349 = vunpack.c.l.b16 %v1331
        %v1350 = vunpack.c.l.b16 %v1332
        %v1351 = vunpack.c.l.b16 %v1333
        %v1352 = vunpack.c.l.b16 %v1334
        %v1353 = vunpack.c.l.b16 %v1335
        %v1354 = vunpack.c.l.b16 %v1336
        %v1355 = vunpack.c.l.b16 %v1337
        %v1356 = vunpack.c.l.b16 %v1338
        %v1357 = vunpack.c.l.b16 %v1339
        %v1358 = vunpack.c.h.b16 %v1331
        %v1359 = vunpack.c.h.b16 %v1332
        %v1360 = vunpack.c.h.b16 %v1333
        %v1361 = vunpack.c.h.b16 %v1334
        %v1362 = vunpack.c.h.b16 %v1335
        %v1363 = vunpack.c.h.b16 %v1336
        %v1364 = vunpack.c.h.b16 %v1337
        %v1365 = vunpack.c.h.b16 %v1338
        %v1366 = vunpack.c.h.b16 %v1339
        %v1367 = vpack.c.b16 %v1350, %v1349
        %v1368 = vpack.c.b16 %v1352, %v1351
        %v1369 = vpack.c.b16 %v1354, %v1353
        %v1370 = vpack.c.b16 %v1356, %v1355
        %v1371 = vpack.c.b16 %v1357, %v1357
        %v1372 = vpack.c.b16 %v1359, %v1358
        %v1373 = vpack.c.b16 %v1361, %v1360
        %v1374 = vpack.c.b16 %v1363, %v1362
        %v1375 = vpack.c.b16 %v1365, %v1364
        %v1376 = vpack.c.b16 %v1366, %v1366
        %1387 = vst [vmem:[%s185] sm:$0xff] %v1367
        %1388 = vst [vmem:[%s185 + $0x8] sm:$0xff] %v1368
        %1389 = vst [vmem:[%s185 + $0x10] sm:$0xff] %v1369
        %1390 = vst [vmem:[%s185 + $0x18] sm:$0xff] %v1370
        %vm1391 = vcmask 257024
        %1392 = vst.msk [vmem:[%s185 + $0x20] sm:$0xf] %vm1391, %v1371
        %1393 = vst [vmem:[%s185 + $0x24] sm:$0xff] %v1372
        %1394 = vst [vmem:[%s185 + $0x2c] sm:$0xff] %v1373
        %1395 = vst [vmem:[%s185 + $0x34] sm:$0xff] %v1374
        %1396 = vst [vmem:[%s185 + $0x3c] sm:$0xff] %v1375
        %1397 = vst.msk [vmem:[%s185 + $0x44] sm:$0xf] %vm1391, %v1376
        %p1398 = scmp.lt.s32.totalorder %s15, 1
        %s1399 = scalar_select %p1398, %s15, 1
        %s1400 = smul.addr %s1399, 18
        %s1401 = smul.addr %s1400, 4
        %s1402 = scalar_lea.vmem %s3, %s1401
        // Predicated region
        $region37: #{two_input_net_forward.2} parent=31 // pred_check
          %p1403 = pneg %p101
        $region38: #{two_input_net_forward.2} parent=31 // pred_check_branch
          %1405 = sbr.rel (%p1403) target = $region40
        $region39: #{two_input_net_forward.2} parent=31 // pred_region
          _
        $region40: #{two_input_net_forward.2} parent=31 // pred_fallthru
          _
      $region32: #{two_input_net_forward.2} parent=5 // pred_fallthru
        _
      %p1406 = scmp.le.s32.totalorder 2, %s10
      // Predicated region
      $region41: #{two_input_net_forward.2} parent=5 // pred_check
        %p1407 = pneg %p1406
      $region42: #{two_input_net_forward.2} parent=5 // pred_check_branch
        %1409 = sbr.rel (%p1407) target = $region44
      $region43: #{two_input_net_forward.2} parent=5 // pred_region
        %s1410 = ssub.s32 %s10, 2
        // Predicated region
        $region45: #{two_input_net_forward.2} parent=43 // pred_check
          %p1411 = pneg %p107
        $region46: #{two_input_net_forward.2} parent=43 // pred_check_branch
          %1413 = sbr.rel (%p1411) target = $region48
        $region47: #{two_input_net_forward.2} parent=43 // pred_region
          %p1414 = scmp.lt.s32.totalorder %s16, 1
          %s1415 = scalar_select %p1414, %s16, 1
          %s1416 = smul.addr %s1415, 18
          %s1417 = smul.addr %s1416, 4
          %s1418 = scalar_lea.vmem %s3, %s1417
        $region48: #{two_input_net_forward.2} parent=43 // pred_fallthru
          _
      $region44: #{two_input_net_forward.2} parent=5 // pred_fallthru
        _
    $region6: #{two_input_net_forward.2} parent=1 // loop_footer
      %s14 = sadd.s32 1, %s10
    $region7: #{two_input_net_forward.2} parent=1 // loop_footer_branch
      %9 = sbr.rel target = $region3
    $region8: #{two_input_net_forward.2} parent=1 // loop_exit
      _
    %1419 = vsyncpa [#allocation3], 1
    %s1420 = scalar_lea.sflag [#allocation3], 1
    %1421 = vsyncpa %s1420, 1

// kernel: two_input_net_forward.3
$region0: #{two_input_net_forward.3}
  #allocation0 [shape = 'u32[]', space=smem, size = 0x4, offset = 0x4, fixed_abs, tag = 'smem constant byte address 0x4 - core index']
  #allocation1 [shape = 'u32[144,128]{1,0:T(1,128)}', space=vmem, size = 0x12000, scoped, tag = 'internal scratch']
  #allocation2 [shape = 'f32[2,128]{1,0:T(2,128)}', space=vmem, size = 0x400, scoped, tag = 'scratch operand']
  %s0 = inlined_call_operand.vmem [shape: bf16[2,16896], index: 0, kind: input, shape index: {}]
  %s1 = inlined_call_operand.hbm [shape: bf16[16896,128], index: 1, kind: input, shape index: {}]
  %s2 = inlined_call_operand.hbm [shape: f32[1,128], index: 2, kind: input, shape index: {}]
  %s3 = inlined_call_operand.hbm [shape: f32[2,30], index: 3, kind: input, shape index: {}]
  %s4 = inlined_call_operand.vmem [shape: f32[30,8], index: 4, kind: input, shape index: {}]
  %s5 = inlined_call_operand.hbm [shape: f32[1,8], index: 5, kind: input, shape index: {}]
  %s6 = inlined_call_operand.vmem [shape: bf16[128,964], index: 6, kind: input, shape index: {}]
  %s7 = inlined_call_operand.hbm [shape: bf16[8,964], index: 7, kind: input, shape index: {}]
  %s8 = inlined_call_operand.hbm [shape: f32[1,964], index: 8, kind: input, shape index: {}]
  %s9 = inlined_call_operand.hbm [shape: f32[2,964], index: 9, kind: output, shape index: {}]
  %s10 = sld [smem:[#allocation0]]
  $region101: #{two_input_net_forward.3} parent=0
    _
  %s12 = ssub.s32 1, %s10
  %s13 = scalar_select 0, %s12, %s10
  $region1: #{two_input_net_forward.3} parent=0
    #allocation3 [shape = 'u8[2162688]{0}', space=vmem, size = 0x210000, scoped, tag = 'input window, operand 1']
    #allocation4 [shape = 's32[2]{0}', space=sflag, size = 0x8, scoped, tag = 'scoped memory for two_input_net_forward.3']
    #allocation5 [shape = 's32[2]{0}', space=sflag, size = 0x8, scoped, tag = 'scoped memory for two_input_net_forward.3']
    #allocation6 [shape = 'u8[512]{0}', space=vmem, size = 0x400, scoped, tag = 'input window, operand 2, single buffered']
    #allocation7 [shape = 's32[1]{0}', space=sflag, size = 0x4, scoped, tag = 'scoped memory for two_input_net_forward.3']
    #allocation8 [shape = 'u8[1024]{0}', space=vmem, size = 0x400, scoped, tag = 'input window, operand 3, single buffered']
    #allocation9 [shape = 'u8[512]{0}', space=vmem, size = 0x400, scoped, tag = 'input window, operand 5, single buffered']
    #allocation10 [shape = 's32[1]{0}', space=sflag, size = 0x4, scoped, tag = 'scoped memory for two_input_net_forward.3']
    #allocation11 [shape = 'u8[16384]{0}', space=vmem, size = 0x4000, scoped, tag = 'input window, operand 7, single buffered']
    #allocation12 [shape = 'u8[4096]{0}', space=vmem, size = 0x1000, scoped, tag = 'input window, operand 8, single buffered']
    #allocation13 [shape = 's32[1]{0}', space=sflag, size = 0x4, scoped, tag = 'scoped memory for two_input_net_forward.3']
    #allocation14 [shape = 'u8[8192]{0}', space=vmem, size = 0x2000, scoped, tag = 'output window, operand 0, single buffered']
    %14 = vsyncpa [#allocation4], 0
    %s15 = scalar_lea.sflag [#allocation4], 1
    %16 = vsyncpa %s15, 0
    %17 = vsyncpa [#allocation7], 0
    %18 = vsyncpa [#allocation10], 0
    %19 = vsyncpa [#allocation13], 0
    %20 = vsyncpa [#allocation5], 0
    loop: start=0, step=1, limit=6
    $region2: #{two_input_net_forward.3} parent=1 // loop_pre_header
      _
    $region3: #{two_input_net_forward.3} parent=1 // loop_header
      %s22 = sphi 0, %s26
      %p23 = scmp.ge.s32.totalorder %s22, 6
      %s32 = sphi 0, %s34
      %s35 = sphi 0, %s32
      %s36 = sphi 0, %s35
      %s52 = sphi 0, %s36
      %s58 = sphi 0, %s60
      %s61 = sphi 0, %s58
      %s62 = sphi 0, %s61
      %s78 = sphi 0, %s62
      %s82 = sphi 0, %s82
      %s84 = sphi 0, %s82
      %s85 = sphi 0, %s84
      %s99 = sphi 0, %s85
      %s103 = sphi 0, %s103
      %s105 = sphi 0, %s103
      %s106 = sphi 0, %s105
      %s120 = sphi 0, %s106
      %s124 = sphi 0, %s124
      %s126 = sphi 0, %s124
      %s127 = sphi 0, %s126
      %s141 = sphi 0, %s127
      %s145 = sphi 0, %s145
      %s147 = sphi 0, %s145
      %s148 = sphi 0, %s147
      %s162 = sphi 0, %s148
      %s166 = sphi 0, %s166
      %s168 = sphi 0, %s166
      %s169 = sphi 0, %s168
      %s183 = sphi 0, %s169
      %s187 = sphi 0, %s187
      %s189 = sphi 0, %s187
      %s190 = sphi 0, %s189
      %s204 = sphi 0, %s190
      %s208 = sphi 0, %s208
      %s210 = sphi 0, %s208
      %s211 = sphi 0, %s210
      %s225 = sphi 0, %s211
      %s229 = sphi 0, %s229
      %s231 = sphi 0, %s229
      %s232 = sphi 0, %s231
      %s246 = sphi 0, %s232
    $region4: #{two_input_net_forward.3} parent=1 // loop_header_branch
      %25 = sbr.rel (%p23) target = $region8
    $region5: #{two_input_net_forward.3} parent=1 // loop_body
      %s27 = ssub.s32 %s22, 1
      %s28 = ssub.s32 %s22, 2
      %s29 = sadd.s32 %s22, 1
      %s30 = ssub.s32 %s22, %s29
      %p31 = scmp.eq.s32.totalorder %s30, 0
      %s33 = sadd.s32 %s32, 1
      %s34 = scalar_select %p31, %s32, %s33
      %p37 = pneg %p31
      %p38 = scmp.eq.s32.totalorder %s22, 3
      %p39 = por %p37, %p38
      %p40 = scmp.ne.s32.totalorder %s32, %s35
      %p41 = scmp.eq.s32.totalorder %s22, 0
      %p42 = por %p40, %p41
      %p43 = scmp.ne.s32.totalorder %s32, %s35
      %p44 = scmp.eq.s32.totalorder %s27, 3
      %p45 = por %p43, %p44
      %p46 = scmp.ne.s32.totalorder %s35, %s36
      %p47 = scmp.eq.s32.totalorder %s27, 0
      %p48 = por %p46, %p47
      %p49 = scmp.ne.s32.totalorder %s35, %s36
      %p50 = scmp.eq.s32.totalorder %s28, 3
      %p51 = por %p49, %p50
      %p53 = scmp.ne.s32.totalorder %s36, %s52
      %p54 = scmp.eq.s32.totalorder %s28, 0
      %p55 = por %p53, %p54
      %s56 = ssub.s32 %s22, %s29
      %p57 = scmp.eq.s32.totalorder %s56, 0
      %s59 = sadd.s32 %s58, 1
      %s60 = scalar_select %p57, %s58, %s59
      %p63 = pneg %p57
      %p64 = scmp.eq.s32.totalorder %s22, 3
      %p65 = por %p63, %p64
      %p66 = scmp.ne.s32.totalorder %s58, %s61
      %p67 = scmp.eq.s32.totalorder %s22, 0
      %p68 = por %p66, %p67
      %p69 = scmp.ne.s32.totalorder %s58, %s61
      %p70 = scmp.eq.s32.totalorder %s27, 3
      %p71 = por %p69, %p70
      %p72 = scmp.ne.s32.totalorder %s61, %s62
      %p73 = scmp.eq.s32.totalorder %s27, 0
      %p74 = por %p72, %p73
      %p75 = scmp.ne.s32.totalorder %s61, %s62
      %p76 = scmp.eq.s32.totalorder %s28, 3
      %p77 = por %p75, %p76
      %p79 = scmp.ne.s32.totalorder %s62, %s78
      %p80 = scmp.eq.s32.totalorder %s28, 0
      %p81 = por %p79, %p80
      %s83 = sadd.s32 %s82, 1
      %p86 = scmp.eq.s32.totalorder %s22, 3
      %p87 = scmp.ne.s32.totalorder %s82, %s84
      %p88 = scmp.eq.s32.totalorder %s22, 0
      %p89 = por %p87, %p88
      %p90 = scmp.ne.s32.totalorder %s82, %s84
      %p91 = scmp.eq.s32.totalorder %s27, 3
      %p92 = por %p90, %p91
      %p93 = scmp.ne.s32.totalorder %s84, %s85
      %p94 = scmp.eq.s32.totalorder %s27, 0
      %p95 = por %p93, %p94
      %p96 = scmp.ne.s32.totalorder %s84, %s85
      %p97 = scmp.eq.s32.totalorder %s28, 3
      %p98 = por %p96, %p97
      %p100 = scmp.ne.s32.totalorder %s85, %s99
      %p101 = scmp.eq.s32.totalorder %s28, 0
      %p102 = por %p100, %p101
      %s104 = sadd.s32 %s103, 1
      %p107 = scmp.eq.s32.totalorder %s22, 3
      %p108 = scmp.ne.s32.totalorder %s103, %s105
      %p109 = scmp.eq.s32.totalorder %s22, 0
      %p110 = por %p108, %p109
      %p111 = scmp.ne.s32.totalorder %s103, %s105
      %p112 = scmp.eq.s32.totalorder %s27, 3
      %p113 = por %p111, %p112
      %p114 = scmp.ne.s32.totalorder %s105, %s106
      %p115 = scmp.eq.s32.totalorder %s27, 0
      %p116 = por %p114, %p115
      %p117 = scmp.ne.s32.totalorder %s105, %s106
      %p118 = scmp.eq.s32.totalorder %s28, 3
      %p119 = por %p117, %p118
      %p121 = scmp.ne.s32.totalorder %s106, %s120
      %p122 = scmp.eq.s32.totalorder %s28, 0
      %p123 = por %p121, %p122
      %s125 = sadd.s32 %s124, 1
      %p128 = scmp.eq.s32.totalorder %s22, 3
      %p129 = scmp.ne.s32.totalorder %s124, %s126
      %p130 = scmp.eq.s32.totalorder %s22, 0
      %p131 = por %p129, %p130
      %p132 = scmp.ne.s32.totalorder %s124, %s126
      %p133 = scmp.eq.s32.totalorder %s27, 3
      %p134 = por %p132, %p133
      %p135 = scmp.ne.s32.totalorder %s126, %s127
      %p136 = scmp.eq.s32.totalorder %s27, 0
      %p137 = por %p135, %p136
      %p138 = scmp.ne.s32.totalorder %s126, %s127
      %p139 = scmp.eq.s32.totalorder %s28, 3
      %p140 = por %p138, %p139
      %p142 = scmp.ne.s32.totalorder %s127, %s141
      %p143 = scmp.eq.s32.totalorder %s28, 0
      %p144 = por %p142, %p143
      %s146 = sadd.s32 %s145, 1
      %p149 = scmp.eq.s32.totalorder %s22, 3
      %p150 = scmp.ne.s32.totalorder %s145, %s147
      %p151 = scmp.eq.s32.totalorder %s22, 0
      %p152 = por %p150, %p151
      %p153 = scmp.ne.s32.totalorder %s145, %s147
      %p154 = scmp.eq.s32.totalorder %s27, 3
      %p155 = por %p153, %p154
      %p156 = scmp.ne.s32.totalorder %s147, %s148
      %p157 = scmp.eq.s32.totalorder %s27, 0
      %p158 = por %p156, %p157
      %p159 = scmp.ne.s32.totalorder %s147, %s148
      %p160 = scmp.eq.s32.totalorder %s28, 3
      %p161 = por %p159, %p160
      %p163 = scmp.ne.s32.totalorder %s148, %s162
      %p164 = scmp.eq.s32.totalorder %s28, 0
      %p165 = por %p163, %p164
      %s167 = sadd.s32 %s166, 1
      %p170 = scmp.eq.s32.totalorder %s22, 3
      %p171 = scmp.ne.s32.totalorder %s166, %s168
      %p172 = scmp.eq.s32.totalorder %s22, 0
      %p173 = por %p171, %p172
      %p174 = scmp.ne.s32.totalorder %s166, %s168
      %p175 = scmp.eq.s32.totalorder %s27, 3
      %p176 = por %p174, %p175
      %p177 = scmp.ne.s32.totalorder %s168, %s169
      %p178 = scmp.eq.s32.totalorder %s27, 0
      %p179 = por %p177, %p178
      %p180 = scmp.ne.s32.totalorder %s168, %s169
      %p181 = scmp.eq.s32.totalorder %s28, 3
      %p182 = por %p180, %p181
      %p184 = scmp.ne.s32.totalorder %s169, %s183
      %p185 = scmp.eq.s32.totalorder %s28, 0
      %p186 = por %p184, %p185
      %s188 = sadd.s32 %s187, 1
      %p191 = scmp.eq.s32.totalorder %s22, 3
      %p192 = scmp.ne.s32.totalorder %s187, %s189
      %p193 = scmp.eq.s32.totalorder %s22, 0
      %p194 = por %p192, %p193
      %p195 = scmp.ne.s32.totalorder %s187, %s189
      %p196 = scmp.eq.s32.totalorder %s27, 3
      %p197 = por %p195, %p196
      %p198 = scmp.ne.s32.totalorder %s189, %s190
      %p199 = scmp.eq.s32.totalorder %s27, 0
      %p200 = por %p198, %p199
      %p201 = scmp.ne.s32.totalorder %s189, %s190
      %p202 = scmp.eq.s32.totalorder %s28, 3
      %p203 = por %p201, %p202
      %p205 = scmp.ne.s32.totalorder %s190, %s204
      %p206 = scmp.eq.s32.totalorder %s28, 0
      %p207 = por %p205, %p206
      %s209 = sadd.s32 %s208, 1
      %p212 = scmp.eq.s32.totalorder %s22, 3
      %p213 = scmp.ne.s32.totalorder %s208, %s210
      %p214 = scmp.eq.s32.totalorder %s22, 0
      %p215 = por %p213, %p214
      %p216 = scmp.ne.s32.totalorder %s208, %s210
      %p217 = scmp.eq.s32.totalorder %s27, 3
      %p218 = por %p216, %p217
      %p219 = scmp.ne.s32.totalorder %s210, %s211
      %p220 = scmp.eq.s32.totalorder %s27, 0
      %p221 = por %p219, %p220
      %p222 = scmp.ne.s32.totalorder %s210, %s211
      %p223 = scmp.eq.s32.totalorder %s28, 3
      %p224 = por %p222, %p223
      %p226 = scmp.ne.s32.totalorder %s211, %s225
      %p227 = scmp.eq.s32.totalorder %s28, 0
      %p228 = por %p226, %p227
      %s230 = sadd.s32 %s229, 1
      %p233 = scmp.eq.s32.totalorder %s22, 3
      %p234 = scmp.ne.s32.totalorder %s229, %s231
      %p235 = scmp.eq.s32.totalorder %s22, 0
      %p236 = por %p234, %p235
      %p237 = scmp.ne.s32.totalorder %s229, %s231
      %p238 = scmp.eq.s32.totalorder %s27, 3
      %p239 = por %p237, %p238
      %p240 = scmp.ne.s32.totalorder %s231, %s232
      %p241 = scmp.eq.s32.totalorder %s27, 0
      %p242 = por %p240, %p241
      %p243 = scmp.ne.s32.totalorder %s231, %s232
      %p244 = scmp.eq.s32.totalorder %s28, 3
      %p245 = por %p243, %p244
      %p247 = scmp.ne.s32.totalorder %s232, %s246
      %p248 = scmp.eq.s32.totalorder %s28, 0
      %p249 = por %p247, %p248
      %p250 = scmp.le.s32.totalorder 1, %s22
      %p251 = scmp.lt.s32.totalorder %s22, 5
      %p252 = pnand %p250, %p251
      %p253 = pneg %p252
      // Predicated region
      $region9: #{two_input_net_forward.3} parent=5 // pred_check
        _
      $region10: #{two_input_net_forward.3} parent=5 // pred_check_branch
        %255 = sbr.rel (%p252) target = $region12
      $region11: #{two_input_net_forward.3} parent=5 // pred_region
        %s256 = ssub.s32 %s22, 1
        // Predicated region
        $region13: #{two_input_net_forward.3} parent=11 // pred_check
          %p257 = pneg %p95
        $region14: #{two_input_net_forward.3} parent=11 // pred_check_branch
          %259 = sbr.rel (%p257) target = $region16
        $region15: #{two_input_net_forward.3} parent=11 // pred_region
          %s261 = ssub.s32 16, 16
          %262 = vsyncadd [#allocation7], %s261
          %s264 = sshll.u32 [#allocation6], 4
          %s265 = int_to_ptr.vmem [resolvable:$true] %s264
          %267 = dma.hbm_to_vmem [thread:$0]  %s2, 16, %s265, [#allocation7]
        $region16: #{two_input_net_forward.3} parent=11 // pred_fallthru
          _
        // Predicated region
        $region17: #{two_input_net_forward.3} parent=11 // pred_check
          %p268 = pneg %p116
        $region18: #{two_input_net_forward.3} parent=11 // pred_check_branch
          %270 = sbr.rel (%p268) target = $region20
        $region19: #{two_input_net_forward.3} parent=11 // pred_region
          %s272 = ssub.s32 32, 32
          %273 = vsyncadd [#allocation7], %s272
          %s275 = sshll.u32 [#allocation8], 4
          %s276 = int_to_ptr.vmem [resolvable:$true] %s275
          %278 = dma.hbm_to_vmem [thread:$0]  %s3, 32, %s276, [#allocation7]
        $region20: #{two_input_net_forward.3} parent=11 // pred_fallthru
          _
        // Predicated region
        $region21: #{two_input_net_forward.3} parent=11 // pred_check
          %p279 = pneg %p137
        $region22: #{two_input_net_forward.3} parent=11 // pred_check_branch
          %281 = sbr.rel (%p279) target = $region24
        $region23: #{two_input_net_forward.3} parent=11 // pred_region
          _
        $region24: #{two_input_net_forward.3} parent=11 // pred_fallthru
          _
        // Predicated region
        $region25: #{two_input_net_forward.3} parent=11 // pred_check
          %p282 = pneg %p158
        $region26: #{two_input_net_forward.3} parent=11 // pred_check_branch
          %284 = sbr.rel (%p282) target = $region28
        $region27: #{two_input_net_forward.3} parent=11 // pred_region
          %s286 = ssub.s32 16, 16
          %287 = vsyncadd [#allocation10], %s286
          %s289 = sshll.u32 [#allocation9], 4
          %s290 = int_to_ptr.vmem [resolvable:$true] %s289
          %292 = dma.hbm_to_vmem [thread:$0]  %s5, 16, %s290, [#allocation10]
        $region28: #{two_input_net_forward.3} parent=11 // pred_fallthru
          _
        // Predicated region
        $region29: #{two_input_net_forward.3} parent=11 // pred_check
          %p293 = pneg %p179
        $region30: #{two_input_net_forward.3} parent=11 // pred_check_branch
          %295 = sbr.rel (%p293) target = $region32
        $region31: #{two_input_net_forward.3} parent=11 // pred_region
          _
        $region32: #{two_input_net_forward.3} parent=11 // pred_fallthru
          _
        // Predicated region
        $region33: #{two_input_net_forward.3} parent=11 // pred_check
          %p296 = pneg %p200
        $region34: #{two_input_net_forward.3} parent=11 // pred_check_branch
          %298 = sbr.rel (%p296) target = $region36
        $region35: #{two_input_net_forward.3} parent=11 // pred_region
          %s300 = ssub.s32 512, 512
          %301 = vsyncadd [#allocation10], %s300
          %s303 = sshll.u32 [#allocation11], 4
          %s304 = int_to_ptr.vmem [resolvable:$true] %s303
          %306 = dma.hbm_to_vmem [thread:$0]  %s7, 512, %s304, [#allocation10]
        $region36: #{two_input_net_forward.3} parent=11 // pred_fallthru
          _
        // Predicated region
        $region37: #{two_input_net_forward.3} parent=11 // pred_check
          %p307 = pneg %p221
        $region38: #{two_input_net_forward.3} parent=11 // pred_check_branch
          %309 = sbr.rel (%p307) target = $region40
        $region39: #{two_input_net_forward.3} parent=11 // pred_region
          %s311 = ssub.s32 128, 128
          %312 = vsyncadd [#allocation13], %s311
          %s314 = sshll.u32 [#allocation12], 4
          %s315 = int_to_ptr.vmem [resolvable:$true] %s314
          %317 = dma.hbm_to_vmem [thread:$0]  %s8, 128, %s315, [#allocation13]
        $region40: #{two_input_net_forward.3} parent=11 // pred_fallthru
          _
      $region12: #{two_input_net_forward.3} parent=5 // pred_fallthru
        _
      %p318 = scmp.lt.s32.totalorder %s22, 4
      // Predicated region
      $region41: #{two_input_net_forward.3} parent=5 // pred_check
        %p319 = pneg %p318
      $region42: #{two_input_net_forward.3} parent=5 // pred_check_branch
        %321 = sbr.rel (%p319) target = $region44
      $region43: #{two_input_net_forward.3} parent=5 // pred_region
        // Predicated region
        $region45: #{two_input_net_forward.3} parent=43 // pred_check
          %p322 = pneg %p42
        $region46: #{two_input_net_forward.3} parent=43 // pred_check_branch
          %324 = sbr.rel (%p322) target = $region48
        $region47: #{two_input_net_forward.3} parent=43 // pred_region
          %s325 = smul.u32 33, %s22
          %p326 = scmp.lt.s32.totalorder %s325, 131
          %s327 = scalar_select %p326, %s325, 131
          %s328 = scalar_lea.vmem %s0, %s327
          %s329 = smul.u32 33, %s22
        $region48: #{two_input_net_forward.3} parent=43 // pred_fallthru
          _
        // Predicated region
        $region49: #{two_input_net_forward.3} parent=43 // pred_check
          %p330 = pneg %p68
        $region50: #{two_input_net_forward.3} parent=43 // pred_check_branch
          %332 = sbr.rel (%p330) target = $region52
        $region51: #{two_input_net_forward.3} parent=43 // pred_region
          %s333 = sand.u32 %s58, 1
          %s334 = scalar_lea.sflag [#allocation4], %s333
          %s335 = sand.u32 %s58, 1
          %s336 = smul.addr %s335, 2112
          %s337 = scalar_lea.vmem [#allocation3], %s336
          %s338 = smul.u32 528, %s22
          %s340 = ssub.s32 33792, 33792
          %341 = vsyncadd %s334, %s340
          %s342 = smul.addr %s338, 64
          %s343 = scalar_lea.hbm %s1, %s342
          %s344 = sshll.u32 %s337, 4
          %s345 = int_to_ptr.vmem [resolvable:$true] %s344
          %350 = dma.hbm_to_vmem [thread:$0]  %s343, 33792, %s345, %s334, 64, 64, 4
        $region52: #{two_input_net_forward.3} parent=43 // pred_fallthru
          _
      $region44: #{two_input_net_forward.3} parent=5 // pred_fallthru
        _
      %p351 = scmp.le.s32.totalorder 1, %s22
      %p352 = scmp.lt.s32.totalorder %s22, 5
      %p353 = pnand %p351, %p352
      %p354 = pneg %p353
      // Predicated region
      $region53: #{two_input_net_forward.3} parent=5 // pred_check
        _
      $region54: #{two_input_net_forward.3} parent=5 // pred_check_branch
        %356 = sbr.rel (%p353) target = $region56
      $region55: #{two_input_net_forward.3} parent=5 // pred_region
        %s357 = ssub.s32 %s22, 1
        %s358 = sand.u32 %s61, 1
        %s359 = scalar_lea.sflag [#allocation4], %s358
        %s360 = sand.u32 %s61, 1
        %s361 = smul.addr %s360, 2112
        %s362 = scalar_lea.vmem [#allocation3], %s361
        // Predicated region
        $region57: #{two_input_net_forward.3} parent=55 // pred_check
          %p363 = pneg %p74
        $region58: #{two_input_net_forward.3} parent=55 // pred_check_branch
          %365 = sbr.rel (%p363) target = $region60
        $region59: #{two_input_net_forward.3} parent=55 // pred_region
          %366 = dma.done %s359, 33792
        $region60: #{two_input_net_forward.3} parent=55 // pred_fallthru
          _
        // Predicated region
        $region61: #{two_input_net_forward.3} parent=55 // pred_check
          %p367 = pneg %p95
        $region62: #{two_input_net_forward.3} parent=55 // pred_check_branch
          %369 = sbr.rel (%p367) target = $region64
        $region63: #{two_input_net_forward.3} parent=55 // pred_region
          %370 = dma.done [#allocation7], 16
        $region64: #{two_input_net_forward.3} parent=55 // pred_fallthru
          _
        // Predicated region
        $region65: #{two_input_net_forward.3} parent=55 // pred_check
          %p371 = pneg %p116
        $region66: #{two_input_net_forward.3} parent=55 // pred_check_branch
          %373 = sbr.rel (%p371) target = $region68
        $region67: #{two_input_net_forward.3} parent=55 // pred_region
          %374 = dma.done [#allocation7], 32
        $region68: #{two_input_net_forward.3} parent=55 // pred_fallthru
          _
        // Predicated region
        $region69: #{two_input_net_forward.3} parent=55 // pred_check
          %p375 = pneg %p158
        $region70: #{two_input_net_forward.3} parent=55 // pred_check_branch
          %377 = sbr.rel (%p375) target = $region72
        $region71: #{two_input_net_forward.3} parent=55 // pred_region
          %378 = dma.done [#allocation10], 16
        $region72: #{two_input_net_forward.3} parent=55 // pred_fallthru
          _
        // Predicated region
        $region73: #{two_input_net_forward.3} parent=55 // pred_check
          %p379 = pneg %p200
        $region74: #{two_input_net_forward.3} parent=55 // pred_check_branch
          %381 = sbr.rel (%p379) target = $region76
        $region75: #{two_input_net_forward.3} parent=55 // pred_region
          %382 = dma.done [#allocation10], 512
        $region76: #{two_input_net_forward.3} parent=55 // pred_fallthru
          _
        // Predicated region
        $region77: #{two_input_net_forward.3} parent=55 // pred_check
          %p383 = pneg %p221
        $region78: #{two_input_net_forward.3} parent=55 // pred_check_branch
          %385 = sbr.rel (%p383) target = $region80
        $region79: #{two_input_net_forward.3} parent=55 // pred_region
          %386 = dma.done [#allocation13], 128
        $region80: #{two_input_net_forward.3} parent=55 // pred_fallthru
          _
        %s387 = smul.u32 33, %s27
        %p388 = scmp.lt.s32.totalorder %s387, 131
        %s389 = scalar_select %p388, %s387, 131
        %s390 = scalar_lea.vmem %s0, %s389
        %p391 = pneg %p48
        %p392 = pneg %p45
        %s393 = sand.u32 %s61, 1
        %s394 = scalar_lea.sflag [#allocation4], %s393
        %s395 = sand.u32 %s61, 1
        %s396 = smul.addr %s395, 2112
        %s397 = scalar_lea.vmem [#allocation3], %s396
        %p398 = pneg %p74
        %p399 = pneg %p71
        %p400 = pneg %p95
        %p401 = pneg %p92
        %p402 = pneg %p116
        %p403 = pneg %p113
        %p404 = pneg %p137
        %p405 = pneg %p134
        %p406 = pneg %p158
        %p407 = pneg %p155
        %p408 = pneg %p179
        %p409 = pneg %p176
        %p410 = pneg %p200
        %p411 = pneg %p197
        %p412 = pneg %p221
        %p413 = pneg %p218
        %p414 = pneg %p242
        %p415 = pneg %p239
        %s416 = smul.u32 33, %s27
        %p417 = scmp.lt.s32.totalorder %s416, 131
        %s418 = scalar_select %p417, %s416, 131
        %s419 = scalar_lea.vmem %s0, %s418
        %s420 = smul.u32 33, %s27
        %s421 = smul.u32 528, %s27
        %p423 = scmp.eq.s32.totalorder %s27, 0
        // Predicated region
        $region81: #{two_input_net_forward.3} parent=55 // pred_check
          %p424 = pneg %p423
        $region82: #{two_input_net_forward.3} parent=55 // pred_check_branch
          %426 = sbr.rel (%p424) target = $region84
        $region83: #{two_input_net_forward.3} parent=55 // pred_region
          %427 = vst [vmem:[#allocation2] sm:$0x3] 0.0
        $region84: #{two_input_net_forward.3} parent=55 // pred_fallthru
          _
        %v428 = vld [vmem:[#allocation2] sm:$0x3]
        %v429 = vld [vmem:[%s419] sm:$0xff]
        %v430 = vld [vmem:[%s419 + $0x8] sm:$0xff]
        %v431 = vld [vmem:[%s419 + $0x10] sm:$0xff]
        %v432 = vld [vmem:[%s419 + $0x18] sm:$0xff]
        %v433 = vld [vmem:[%s419 + $0x20] sm:$0x1]
        %v434 = vld [vmem:[%s362] sm:$0xf]
        %v435 = vld [vmem:[%s362 + $0x4] sm:$0xf]
        %v436 = vld [vmem:[%s362 + $0x8] sm:$0xf]
        %v437 = vld [vmem:[%s362 + $0xc] sm:$0xf]
        %v438 = vld [vmem:[%s362 + $0x10] sm:$0xf]
        %v439 = vld [vmem:[%s362 + $0x14] sm:$0xf]
        %v440 = vld [vmem:[%s362 + $0x18] sm:$0xf]
        %v441 = vld [vmem:[%s362 + $0x1c] sm:$0xf]
        %v442 = vld [vmem:[%s362 + $0x20] sm:$0xf]
        %v443 = vld [vmem:[%s362 + $0x24] sm:$0xf]
        %v444 = vld [vmem:[%s362 + $0x28] sm:$0xf]
        %v445 = vld [vmem:[%s362 + $0x2c] sm:$0xf]
        %v446 = vld [vmem:[%s362 + $0x30] sm:$0xf]
        %v447 = vld [vmem:[%s362 + $0x34] sm:$0xf]
        %v448 = vld [vmem:[%s362 + $0x38] sm:$0xf]
        %v449 = vld [vmem:[%s362 + $0x3c] sm:$0xf]
        %v450 = vld [vmem:[%s362 + $0x40] sm:$0xf]
        %v451 = vld [vmem:[%s362 + $0x44] sm:$0xf]
        %v452 = vld [vmem:[%s362 + $0x48] sm:$0xf]
        %v453 = vld [vmem:[%s362 + $0x4c] sm:$0xf]
        %v454 = vld [vmem:[%s362 + $0x50] sm:$0xf]
        %v455 = vld [vmem:[%s362 + $0x54] sm:$0xf]
        %v456 = vld [vmem:[%s362 + $0x58] sm:$0xf]
        %v457 = vld [vmem:[%s362 + $0x5c] sm:$0xf]
        %v458 = vld [vmem:[%s362 + $0x60] sm:$0xf]
        %v459 = vld [vmem:[%s362 + $0x64] sm:$0xf]
        %v460 = vld [vmem:[%s362 + $0x68] sm:$0xf]
        %v461 = vld [vmem:[%s362 + $0x6c] sm:$0xf]
        %v462 = vld [vmem:[%s362 + $0x70] sm:$0xf]
        %v463 = vld [vmem:[%s362 + $0x74] sm:$0xf]
        %v464 = vld [vmem:[%s362 + $0x78] sm:$0xf]
        %v465 = vld [vmem:[%s362 + $0x7c] sm:$0xf]
        %v466 = vld [vmem:[%s362 + $0x80] sm:$0xf]
        %v467 = vld [vmem:[%s362 + $0x84] sm:$0xf]
        %v468 = vld [vmem:[%s362 + $0x88] sm:$0xf]
        %v469 = vld [vmem:[%s362 + $0x8c] sm:$0xf]
        %v470 = vld [vmem:[%s362 + $0x90] sm:$0xf]
        %v471 = vld [vmem:[%s362 + $0x94] sm:$0xf]
        %v472 = vld [vmem:[%s362 + $0x98] sm:$0xf]
        %v473 = vld [vmem:[%s362 + $0x9c] sm:$0xf]
        %v474 = vld [vmem:[%s362 + $0xa0] sm:$0xf]
        %v475 = vld [vmem:[%s362 + $0xa4] sm:$0xf]
        %v476 = vld [vmem:[%s362 + $0xa8] sm:$0xf]
        %v477 = vld [vmem:[%s362 + $0xac] sm:$0xf]
        %v478 = vld [vmem:[%s362 + $0xb0] sm:$0xf]
        %v479 = vld [vmem:[%s362 + $0xb4] sm:$0xf]
        %v480 = vld [vmem:[%s362 + $0xb8] sm:$0xf]
        %v481 = vld [vmem:[%s362 + $0xbc] sm:$0xf]
        %v482 = vld [vmem:[%s362 + $0xc0] sm:$0xf]
        %v483 = vld [vmem:[%s362 + $0xc4] sm:$0xf]
        %v484 = vld [vmem:[%s362 + $0xc8] sm:$0xf]
        %v485 = vld [vmem:[%s362 + $0xcc] sm:$0xf]
        %v486 = vld [vmem:[%s362 + $0xd0] sm:$0xf]
        %v487 = vld [vmem:[%s362 + $0xd4] sm:$0xf]
        %v488 = vld [vmem:[%s362 + $0xd8] sm:$0xf]
        %v489 = vld [vmem:[%s362 + $0xdc] sm:$0xf]
        %v490 = vld [vmem:[%s362 + $0xe0] sm:$0xf]
        %v491 = vld [vmem:[%s362 + $0xe4] sm:$0xf]
        %v492 = vld [vmem:[%s362 + $0xe8] sm:$0xf]
        %v493 = vld [vmem:[%s362 + $0xec] sm:$0xf]
        %v494 = vld [vmem:[%s362 + $0xf0] sm:$0xf]
        %v495 = vld [vmem:[%s362 + $0xf4] sm:$0xf]
        %v496 = vld [vmem:[%s362 + $0xf8] sm:$0xf]
        %v497 = vld [vmem:[%s362 + $0xfc] sm:$0xf]
        %v498 = vld [vmem:[%s362 + $0x100] sm:$0xf]
        %v499 = vld [vmem:[%s362 + $0x104] sm:$0xf]
        %v500 = vld [vmem:[%s362 + $0x108] sm:$0xf]
        %v501 = vld [vmem:[%s362 + $0x10c] sm:$0xf]
        %v502 = vld [vmem:[%s362 + $0x110] sm:$0xf]
        %v503 = vld [vmem:[%s362 + $0x114] sm:$0xf]
        %v504 = vld [vmem:[%s362 + $0x118] sm:$0xf]
        %v505 = vld [vmem:[%s362 + $0x11c] sm:$0xf]
        %v506 = vld [vmem:[%s362 + $0x120] sm:$0xf]
        %v507 = vld [vmem:[%s362 + $0x124] sm:$0xf]
        %v508 = vld [vmem:[%s362 + $0x128] sm:$0xf]
        %v509 = vld [vmem:[%s362 + $0x12c] sm:$0xf]
        %v510 = vld [vmem:[%s362 + $0x130] sm:$0xf]
        %v511 = vld [vmem:[%s362 + $0x134] sm:$0xf]
        %v512 = vld [vmem:[%s362 + $0x138] sm:$0xf]
        %v513 = vld [vmem:[%s362 + $0x13c] sm:$0xf]
        %v514 = vld [vmem:[%s362 + $0x140] sm:$0xf]
        %v515 = vld [vmem:[%s362 + $0x144] sm:$0xf]
        %v516 = vld [vmem:[%s362 + $0x148] sm:$0xf]
        %v517 = vld [vmem:[%s362 + $0x14c] sm:$0xf]
        %v518 = vld [vmem:[%s362 + $0x150] sm:$0xf]
        %v519 = vld [vmem:[%s362 + $0x154] sm:$0xf]
        %v520 = vld [vmem:[%s362 + $0x158] sm:$0xf]
        %v521 = vld [vmem:[%s362 + $0x15c] sm:$0xf]
        %v522 = vld [vmem:[%s362 + $0x160] sm:$0xf]
        %v523 = vld [vmem:[%s362 + $0x164] sm:$0xf]
        %v524 = vld [vmem:[%s362 + $0x168] sm:$0xf]
        %v525 = vld [vmem:[%s362 + $0x16c] sm:$0xf]
        %v526 = vld [vmem:[%s362 + $0x170] sm:$0xf]
        %v527 = vld [vmem:[%s362 + $0x174] sm:$0xf]
        %v528 = vld [vmem:[%s362 + $0x178] sm:$0xf]
        %v529 = vld [vmem:[%s362 + $0x17c] sm:$0xf]
        %v530 = vld [vmem:[%s362 + $0x180] sm:$0xf]
        %v531 = vld [vmem:[%s362 + $0x184] sm:$0xf]
        %v532 = vld [vmem:[%s362 + $0x188] sm:$0xf]
        %v533 = vld [vmem:[%s362 + $0x18c] sm:$0xf]
        %v534 = vld [vmem:[%s362 + $0x190] sm:$0xf]
        %v535 = vld [vmem:[%s362 + $0x194] sm:$0xf]
        %v536 = vld [vmem:[%s362 + $0x198] sm:$0xf]
        %v537 = vld [vmem:[%s362 + $0x19c] sm:$0xf]
        %v538 = vld [vmem:[%s362 + $0x1a0] sm:$0xf]
        %v539 = vld [vmem:[%s362 + $0x1a4] sm:$0xf]
        %v540 = vld [vmem:[%s362 + $0x1a8] sm:$0xf]
        %v541 = vld [vmem:[%s362 + $0x1ac] sm:$0xf]
        %v542 = vld [vmem:[%s362 + $0x1b0] sm:$0xf]
        %v543 = vld [vmem:[%s362 + $0x1b4] sm:$0xf]
        %v544 = vld [vmem:[%s362 + $0x1b8] sm:$0xf]
        %v545 = vld [vmem:[%s362 + $0x1bc] sm:$0xf]
        %v546 = vld [vmem:[%s362 + $0x1c0] sm:$0xf]
        %v547 = vld [vmem:[%s362 + $0x1c4] sm:$0xf]
        %v548 = vld [vmem:[%s362 + $0x1c8] sm:$0xf]
        %v549 = vld [vmem:[%s362 + $0x1cc] sm:$0xf]
        %v550 = vld [vmem:[%s362 + $0x1d0] sm:$0xf]
        %v551 = vld [vmem:[%s362 + $0x1d4] sm:$0xf]
        %v552 = vld [vmem:[%s362 + $0x1d8] sm:$0xf]
        %v553 = vld [vmem:[%s362 + $0x1dc] sm:$0xf]
        %v554 = vld [vmem:[%s362 + $0x1e0] sm:$0xf]
        %v555 = vld [vmem:[%s362 + $0x1e4] sm:$0xf]
        %v556 = vld [vmem:[%s362 + $0x1e8] sm:$0xf]
        %v557 = vld [vmem:[%s362 + $0x1ec] sm:$0xf]
        %v558 = vld [vmem:[%s362 + $0x1f0] sm:$0xf]
        %v559 = vld [vmem:[%s362 + $0x1f4] sm:$0xf]
        %v560 = vld [vmem:[%s362 + $0x1f8] sm:$0xf]
        %v561 = vld [vmem:[%s362 + $0x1fc] sm:$0xf]
        %v562 = vld [vmem:[%s362 + $0x200] sm:$0xf]
        %v563 = vld [vmem:[%s362 + $0x204] sm:$0xf]
        %v564 = vld [vmem:[%s362 + $0x208] sm:$0xf]
        %v565 = vld [vmem:[%s362 + $0x20c] sm:$0xf]
        %v566 = vld [vmem:[%s362 + $0x210] sm:$0xf]
        %v567 = vld [vmem:[%s362 + $0x214] sm:$0xf]
        %v568 = vld [vmem:[%s362 + $0x218] sm:$0xf]
        %v569 = vld [vmem:[%s362 + $0x21c] sm:$0xf]
        %v570 = vld [vmem:[%s362 + $0x220] sm:$0xf]
        %v571 = vld [vmem:[%s362 + $0x224] sm:$0xf]
        %v572 = vld [vmem:[%s362 + $0x228] sm:$0xf]
        %v573 = vld [vmem:[%s362 + $0x22c] sm:$0xf]
        %v574 = vld [vmem:[%s362 + $0x230] sm:$0xf]
        %v575 = vld [vmem:[%s362 + $0x234] sm:$0xf]
        %v576 = vld [vmem:[%s362 + $0x238] sm:$0xf]
        %v577 = vld [vmem:[%s362 + $0x23c] sm:$0xf]
        %v578 = vld [vmem:[%s362 + $0x240] sm:$0xf]
        %v579 = vld [vmem:[%s362 + $0x244] sm:$0xf]
        %v580 = vld [vmem:[%s362 + $0x248] sm:$0xf]
        %v581 = vld [vmem:[%s362 + $0x24c] sm:$0xf]
        %v582 = vld [vmem:[%s362 + $0x250] sm:$0xf]
        %v583 = vld [vmem:[%s362 + $0x254] sm:$0xf]
        %v584 = vld [vmem:[%s362 + $0x258] sm:$0xf]
        %v585 = vld [vmem:[%s362 + $0x25c] sm:$0xf]
        %v586 = vld [vmem:[%s362 + $0x260] sm:$0xf]
        %v587 = vld [vmem:[%s362 + $0x264] sm:$0xf]
        %v588 = vld [vmem:[%s362 + $0x268] sm:$0xf]
        %v589 = vld [vmem:[%s362 + $0x26c] sm:$0xf]
        %v590 = vld [vmem:[%s362 + $0x270] sm:$0xf]
        %v591 = vld [vmem:[%s362 + $0x274] sm:$0xf]
        %v592 = vld [vmem:[%s362 + $0x278] sm:$0xf]
        %v593 = vld [vmem:[%s362 + $0x27c] sm:$0xf]
        %v594 = vld [vmem:[%s362 + $0x280] sm:$0xf]
        %v595 = vld [vmem:[%s362 + $0x284] sm:$0xf]
        %v596 = vld [vmem:[%s362 + $0x288] sm:$0xf]
        %v597 = vld [vmem:[%s362 + $0x28c] sm:$0xf]
        %v598 = vld [vmem:[%s362 + $0x290] sm:$0xf]
        %v599 = vld [vmem:[%s362 + $0x294] sm:$0xf]
        %v600 = vld [vmem:[%s362 + $0x298] sm:$0xf]
        %v601 = vld [vmem:[%s362 + $0x29c] sm:$0xf]
        %v602 = vld [vmem:[%s362 + $0x2a0] sm:$0xf]
        %v603 = vld [vmem:[%s362 + $0x2a4] sm:$0xf]
        %v604 = vld [vmem:[%s362 + $0x2a8] sm:$0xf]
        %v605 = vld [vmem:[%s362 + $0x2ac] sm:$0xf]
        %v606 = vld [vmem:[%s362 + $0x2b0] sm:$0xf]
        %v607 = vld [vmem:[%s362 + $0x2b4] sm:$0xf]
        %v608 = vld [vmem:[%s362 + $0x2b8] sm:$0xf]
        %v609 = vld [vmem:[%s362 + $0x2bc] sm:$0xf]
        %v610 = vld [vmem:[%s362 + $0x2c0] sm:$0xf]
        %v611 = vld [vmem:[%s362 + $0x2c4] sm:$0xf]
        %v612 = vld [vmem:[%s362 + $0x2c8] sm:$0xf]
        %v613 = vld [vmem:[%s362 + $0x2cc] sm:$0xf]
        %v614 = vld [vmem:[%s362 + $0x2d0] sm:$0xf]
        %v615 = vld [vmem:[%s362 + $0x2d4] sm:$0xf]
        %v616 = vld [vmem:[%s362 + $0x2d8] sm:$0xf]
        %v617 = vld [vmem:[%s362 + $0x2dc] sm:$0xf]
        %v618 = vld [vmem:[%s362 + $0x2e0] sm:$0xf]
        %v619 = vld [vmem:[%s362 + $0x2e4] sm:$0xf]
        %v620 = vld [vmem:[%s362 + $0x2e8] sm:$0xf]
        %v621 = vld [vmem:[%s362 + $0x2ec] sm:$0xf]
        %v622 = vld [vmem:[%s362 + $0x2f0] sm:$0xf]
        %v623 = vld [vmem:[%s362 + $0x2f4] sm:$0xf]
        %v624 = vld [vmem:[%s362 + $0x2f8] sm:$0xf]
        %v625 = vld [vmem:[%s362 + $0x2fc] sm:$0xf]
        %v626 = vld [vmem:[%s362 + $0x300] sm:$0xf]
        %v627 = vld [vmem:[%s362 + $0x304] sm:$0xf]
        %v628 = vld [vmem:[%s362 + $0x308] sm:$0xf]
        %v629 = vld [vmem:[%s362 + $0x30c] sm:$0xf]
        %v630 = vld [vmem:[%s362 + $0x310] sm:$0xf]
        %v631 = vld [vmem:[%s362 + $0x314] sm:$0xf]
        %v632 = vld [vmem:[%s362 + $0x318] sm:$0xf]
        %v633 = vld [vmem:[%s362 + $0x31c] sm:$0xf]
        %v634 = vld [vmem:[%s362 + $0x320] sm:$0xf]
        %v635 = vld [vmem:[%s362 + $0x324] sm:$0xf]
        %v636 = vld [vmem:[%s362 + $0x328] sm:$0xf]
        %v637 = vld [vmem:[%s362 + $0x32c] sm:$0xf]
        %v638 = vld [vmem:[%s362 + $0x330] sm:$0xf]
        %v639 = vld [vmem:[%s362 + $0x334] sm:$0xf]
        %v640 = vld [vmem:[%s362 + $0x338] sm:$0xf]
        %v641 = vld [vmem:[%s362 + $0x33c] sm:$0xf]
        %v642 = vld [vmem:[%s362 + $0x340] sm:$0xf]
        %v643 = vld [vmem:[%s362 + $0x344] sm:$0xf]
        %v644 = vld [vmem:[%s362 + $0x348] sm:$0xf]
        %v645 = vld [vmem:[%s362 + $0x34c] sm:$0xf]
        %v646 = vld [vmem:[%s362 + $0x350] sm:$0xf]
        %v647 = vld [vmem:[%s362 + $0x354] sm:$0xf]
        %v648 = vld [vmem:[%s362 + $0x358] sm:$0xf]
        %v649 = vld [vmem:[%s362 + $0x35c] sm:$0xf]
        %v650 = vld [vmem:[%s362 + $0x360] sm:$0xf]
        %v651 = vld [vmem:[%s362 + $0x364] sm:$0xf]
        %v652 = vld [vmem:[%s362 + $0x368] sm:$0xf]
        %v653 = vld [vmem:[%s362 + $0x36c] sm:$0xf]
        %v654 = vld [vmem:[%s362 + $0x370] sm:$0xf]
        %v655 = vld [vmem:[%s362 + $0x374] sm:$0xf]
        %v656 = vld [vmem:[%s362 + $0x378] sm:$0xf]
        %v657 = vld [vmem:[%s362 + $0x37c] sm:$0xf]
        %v658 = vld [vmem:[%s362 + $0x380] sm:$0xf]
        %v659 = vld [vmem:[%s362 + $0x384] sm:$0xf]
        %v660 = vld [vmem:[%s362 + $0x388] sm:$0xf]
        %v661 = vld [vmem:[%s362 + $0x38c] sm:$0xf]
        %v662 = vld [vmem:[%s362 + $0x390] sm:$0xf]
        %v663 = vld [vmem:[%s362 + $0x394] sm:$0xf]
        %v664 = vld [vmem:[%s362 + $0x398] sm:$0xf]
        %v665 = vld [vmem:[%s362 + $0x39c] sm:$0xf]
        %v666 = vld [vmem:[%s362 + $0x3a0] sm:$0xf]
        %v667 = vld [vmem:[%s362 + $0x3a4] sm:$0xf]
        %v668 = vld [vmem:[%s362 + $0x3a8] sm:$0xf]
        %v669 = vld [vmem:[%s362 + $0x3ac] sm:$0xf]
        %v670 = vld [vmem:[%s362 + $0x3b0] sm:$0xf]
        %v671 = vld [vmem:[%s362 + $0x3b4] sm:$0xf]
        %v672 = vld [vmem:[%s362 + $0x3b8] sm:$0xf]
        %v673 = vld [vmem:[%s362 + $0x3bc] sm:$0xf]
        %v674 = vld [vmem:[%s362 + $0x3c0] sm:$0xf]
        %v675 = vld [vmem:[%s362 + $0x3c4] sm:$0xf]
        %v676 = vld [vmem:[%s362 + $0x3c8] sm:$0xf]
        %v677 = vld [vmem:[%s362 + $0x3cc] sm:$0xf]
        %v678 = vld [vmem:[%s362 + $0x3d0] sm:$0xf]
        %v679 = vld [vmem:[%s362 + $0x3d4] sm:$0xf]
        %v680 = vld [vmem:[%s362 + $0x3d8] sm:$0xf]
        %v681 = vld [vmem:[%s362 + $0x3dc] sm:$0xf]
        %v682 = vld [vmem:[%s362 + $0x3e0] sm:$0xf]
        %v683 = vld [vmem:[%s362 + $0x3e4] sm:$0xf]
        %v684 = vld [vmem:[%s362 + $0x3e8] sm:$0xf]
        %v685 = vld [vmem:[%s362 + $0x3ec] sm:$0xf]
        %v686 = vld [vmem:[%s362 + $0x3f0] sm:$0xf]
        %v687 = vld [vmem:[%s362 + $0x3f4] sm:$0xf]
        %v688 = vld [vmem:[%s362 + $0x3f8] sm:$0xf]
        %v689 = vld [vmem:[%s362 + $0x3fc] sm:$0xf]
        %v690 = vld [vmem:[%s362 + $0x400] sm:$0xf]
        %v691 = vld [vmem:[%s362 + $0x404] sm:$0xf]
        %v692 = vld [vmem:[%s362 + $0x408] sm:$0xf]
        %v693 = vld [vmem:[%s362 + $0x40c] sm:$0xf]
        %v694 = vld [vmem:[%s362 + $0x410] sm:$0xf]
        %v695 = vld [vmem:[%s362 + $0x414] sm:$0xf]
        %v696 = vld [vmem:[%s362 + $0x418] sm:$0xf]
        %v697 = vld [vmem:[%s362 + $0x41c] sm:$0xf]
        %v698 = vld [vmem:[%s362 + $0x420] sm:$0xf]
        %v699 = vld [vmem:[%s362 + $0x424] sm:$0xf]
        %v700 = vld [vmem:[%s362 + $0x428] sm:$0xf]
        %v701 = vld [vmem:[%s362 + $0x42c] sm:$0xf]
        %v702 = vld [vmem:[%s362 + $0x430] sm:$0xf]
        %v703 = vld [vmem:[%s362 + $0x434] sm:$0xf]
        %v704 = vld [vmem:[%s362 + $0x438] sm:$0xf]
        %v705 = vld [vmem:[%s362 + $0x43c] sm:$0xf]
        %v706 = vld [vmem:[%s362 + $0x440] sm:$0xf]
        %v707 = vld [vmem:[%s362 + $0x444] sm:$0xf]
        %v708 = vld [vmem:[%s362 + $0x448] sm:$0xf]
        %v709 = vld [vmem:[%s362 + $0x44c] sm:$0xf]
        %v710 = vld [vmem:[%s362 + $0x450] sm:$0xf]
        %v711 = vld [vmem:[%s362 + $0x454] sm:$0xf]
        %v712 = vld [vmem:[%s362 + $0x458] sm:$0xf]
        %v713 = vld [vmem:[%s362 + $0x45c] sm:$0xf]
        %v714 = vld [vmem:[%s362 + $0x460] sm:$0xf]
        %v715 = vld [vmem:[%s362 + $0x464] sm:$0xf]
        %v716 = vld [vmem:[%s362 + $0x468] sm:$0xf]
        %v717 = vld [vmem:[%s362 + $0x46c] sm:$0xf]
        %v718 = vld [vmem:[%s362 + $0x470] sm:$0xf]
        %v719 = vld [vmem:[%s362 + $0x474] sm:$0xf]
        %v720 = vld [vmem:[%s362 + $0x478] sm:$0xf]
        %v721 = vld [vmem:[%s362 + $0x47c] sm:$0xf]
        %v722 = vld [vmem:[%s362 + $0x480] sm:$0xf]
        %v723 = vld [vmem:[%s362 + $0x484] sm:$0xf]
        %v724 = vld [vmem:[%s362 + $0x488] sm:$0xf]
        %v725 = vld [vmem:[%s362 + $0x48c] sm:$0xf]
        %v726 = vld [vmem:[%s362 + $0x490] sm:$0xf]
        %v727 = vld [vmem:[%s362 + $0x494] sm:$0xf]
        %v728 = vld [vmem:[%s362 + $0x498] sm:$0xf]
        %v729 = vld [vmem:[%s362 + $0x49c] sm:$0xf]
        %v730 = vld [vmem:[%s362 + $0x4a0] sm:$0xf]
        %v731 = vld [vmem:[%s362 + $0x4a4] sm:$0xf]
        %v732 = vld [vmem:[%s362 + $0x4a8] sm:$0xf]
        %v733 = vld [vmem:[%s362 + $0x4ac] sm:$0xf]
        %v734 = vld [vmem:[%s362 + $0x4b0] sm:$0xf]
        %v735 = vld [vmem:[%s362 + $0x4b4] sm:$0xf]
        %v736 = vld [vmem:[%s362 + $0x4b8] sm:$0xf]
        %v737 = vld [vmem:[%s362 + $0x4bc] sm:$0xf]
        %v738 = vld [vmem:[%s362 + $0x4c0] sm:$0xf]
        %v739 = vld [vmem:[%s362 + $0x4c4] sm:$0xf]
        %v740 = vld [vmem:[%s362 + $0x4c8] sm:$0xf]
        %v741 = vld [vmem:[%s362 + $0x4cc] sm:$0xf]
        %v742 = vld [vmem:[%s362 + $0x4d0] sm:$0xf]
        %v743 = vld [vmem:[%s362 + $0x4d4] sm:$0xf]
        %v744 = vld [vmem:[%s362 + $0x4d8] sm:$0xf]
        %v745 = vld [vmem:[%s362 + $0x4dc] sm:$0xf]
        %v746 = vld [vmem:[%s362 + $0x4e0] sm:$0xf]
        %v747 = vld [vmem:[%s362 + $0x4e4] sm:$0xf]
        %v748 = vld [vmem:[%s362 + $0x4e8] sm:$0xf]
        %v749 = vld [vmem:[%s362 + $0x4ec] sm:$0xf]
        %v750 = vld [vmem:[%s362 + $0x4f0] sm:$0xf]
        %v751 = vld [vmem:[%s362 + $0x4f4] sm:$0xf]
        %v752 = vld [vmem:[%s362 + $0x4f8] sm:$0xf]
        %v753 = vld [vmem:[%s362 + $0x4fc] sm:$0xf]
        %v754 = vld [vmem:[%s362 + $0x500] sm:$0xf]
        %v755 = vld [vmem:[%s362 + $0x504] sm:$0xf]
        %v756 = vld [vmem:[%s362 + $0x508] sm:$0xf]
        %v757 = vld [vmem:[%s362 + $0x50c] sm:$0xf]
        %v758 = vld [vmem:[%s362 + $0x510] sm:$0xf]
        %v759 = vld [vmem:[%s362 + $0x514] sm:$0xf]
        %v760 = vld [vmem:[%s362 + $0x518] sm:$0xf]
        %v761 = vld [vmem:[%s362 + $0x51c] sm:$0xf]
        %v762 = vld [vmem:[%s362 + $0x520] sm:$0xf]
        %v763 = vld [vmem:[%s362 + $0x524] sm:$0xf]
        %v764 = vld [vmem:[%s362 + $0x528] sm:$0xf]
        %v765 = vld [vmem:[%s362 + $0x52c] sm:$0xf]
        %v766 = vld [vmem:[%s362 + $0x530] sm:$0xf]
        %v767 = vld [vmem:[%s362 + $0x534] sm:$0xf]
        %v768 = vld [vmem:[%s362 + $0x538] sm:$0xf]
        %v769 = vld [vmem:[%s362 + $0x53c] sm:$0xf]
        %v770 = vld [vmem:[%s362 + $0x540] sm:$0xf]
        %v771 = vld [vmem:[%s362 + $0x544] sm:$0xf]
        %v772 = vld [vmem:[%s362 + $0x548] sm:$0xf]
        %v773 = vld [vmem:[%s362 + $0x54c] sm:$0xf]
        %v774 = vld [vmem:[%s362 + $0x550] sm:$0xf]
        %v775 = vld [vmem:[%s362 + $0x554] sm:$0xf]
        %v776 = vld [vmem:[%s362 + $0x558] sm:$0xf]
        %v777 = vld [vmem:[%s362 + $0x55c] sm:$0xf]
        %v778 = vld [vmem:[%s362 + $0x560] sm:$0xf]
        %v779 = vld [vmem:[%s362 + $0x564] sm:$0xf]
        %v780 = vld [vmem:[%s362 + $0x568] sm:$0xf]
        %v781 = vld [vmem:[%s362 + $0x56c] sm:$0xf]
        %v782 = vld [vmem:[%s362 + $0x570] sm:$0xf]
        %v783 = vld [vmem:[%s362 + $0x574] sm:$0xf]
        %v784 = vld [vmem:[%s362 + $0x578] sm:$0xf]
        %v785 = vld [vmem:[%s362 + $0x57c] sm:$0xf]
        %v786 = vld [vmem:[%s362 + $0x580] sm:$0xf]
        %v787 = vld [vmem:[%s362 + $0x584] sm:$0xf]
        %v788 = vld [vmem:[%s362 + $0x588] sm:$0xf]
        %v789 = vld [vmem:[%s362 + $0x58c] sm:$0xf]
        %v790 = vld [vmem:[%s362 + $0x590] sm:$0xf]
        %v791 = vld [vmem:[%s362 + $0x594] sm:$0xf]
        %v792 = vld [vmem:[%s362 + $0x598] sm:$0xf]
        %v793 = vld [vmem:[%s362 + $0x59c] sm:$0xf]
        %v794 = vld [vmem:[%s362 + $0x5a0] sm:$0xf]
        %v795 = vld [vmem:[%s362 + $0x5a4] sm:$0xf]
        %v796 = vld [vmem:[%s362 + $0x5a8] sm:$0xf]
        %v797 = vld [vmem:[%s362 + $0x5ac] sm:$0xf]
        %v798 = vld [vmem:[%s362 + $0x5b0] sm:$0xf]
        %v799 = vld [vmem:[%s362 + $0x5b4] sm:$0xf]
        %v800 = vld [vmem:[%s362 + $0x5b8] sm:$0xf]
        %v801 = vld [vmem:[%s362 + $0x5bc] sm:$0xf]
        %v802 = vld [vmem:[%s362 + $0x5c0] sm:$0xf]
        %v803 = vld [vmem:[%s362 + $0x5c4] sm:$0xf]
        %v804 = vld [vmem:[%s362 + $0x5c8] sm:$0xf]
        %v805 = vld [vmem:[%s362 + $0x5cc] sm:$0xf]
        %v806 = vld [vmem:[%s362 + $0x5d0] sm:$0xf]
        %v807 = vld [vmem:[%s362 + $0x5d4] sm:$0xf]
        %v808 = vld [vmem:[%s362 + $0x5d8] sm:$0xf]
        %v809 = vld [vmem:[%s362 + $0x5dc] sm:$0xf]
        %v810 = vld [vmem:[%s362 + $0x5e0] sm:$0xf]
        %v811 = vld [vmem:[%s362 + $0x5e4] sm:$0xf]
        %v812 = vld [vmem:[%s362 + $0x5e8] sm:$0xf]
        %v813 = vld [vmem:[%s362 + $0x5ec] sm:$0xf]
        %v814 = vld [vmem:[%s362 + $0x5f0] sm:$0xf]
        %v815 = vld [vmem:[%s362 + $0x5f4] sm:$0xf]
        %v816 = vld [vmem:[%s362 + $0x5f8] sm:$0xf]
        %v817 = vld [vmem:[%s362 + $0x5fc] sm:$0xf]
        %v818 = vld [vmem:[%s362 + $0x600] sm:$0xf]
        %v819 = vld [vmem:[%s362 + $0x604] sm:$0xf]
        %v820 = vld [vmem:[%s362 + $0x608] sm:$0xf]
        %v821 = vld [vmem:[%s362 + $0x60c] sm:$0xf]
        %v822 = vld [vmem:[%s362 + $0x610] sm:$0xf]
        %v823 = vld [vmem:[%s362 + $0x614] sm:$0xf]
        %v824 = vld [vmem:[%s362 + $0x618] sm:$0xf]
        %v825 = vld [vmem:[%s362 + $0x61c] sm:$0xf]
        %v826 = vld [vmem:[%s362 + $0x620] sm:$0xf]
        %v827 = vld [vmem:[%s362 + $0x624] sm:$0xf]
        %v828 = vld [vmem:[%s362 + $0x628] sm:$0xf]
        %v829 = vld [vmem:[%s362 + $0x62c] sm:$0xf]
        %v830 = vld [vmem:[%s362 + $0x630] sm:$0xf]
        %v831 = vld [vmem:[%s362 + $0x634] sm:$0xf]
        %v832 = vld [vmem:[%s362 + $0x638] sm:$0xf]
        %v833 = vld [vmem:[%s362 + $0x63c] sm:$0xf]
        %v834 = vld [vmem:[%s362 + $0x640] sm:$0xf]
        %v835 = vld [vmem:[%s362 + $0x644] sm:$0xf]
        %v836 = vld [vmem:[%s362 + $0x648] sm:$0xf]
        %v837 = vld [vmem:[%s362 + $0x64c] sm:$0xf]
        %v838 = vld [vmem:[%s362 + $0x650] sm:$0xf]
        %v839 = vld [vmem:[%s362 + $0x654] sm:$0xf]
        %v840 = vld [vmem:[%s362 + $0x658] sm:$0xf]
        %v841 = vld [vmem:[%s362 + $0x65c] sm:$0xf]
        %v842 = vld [vmem:[%s362 + $0x660] sm:$0xf]
        %v843 = vld [vmem:[%s362 + $0x664] sm:$0xf]
        %v844 = vld [vmem:[%s362 + $0x668] sm:$0xf]
        %v845 = vld [vmem:[%s362 + $0x66c] sm:$0xf]
        %v846 = vld [vmem:[%s362 + $0x670] sm:$0xf]
        %v847 = vld [vmem:[%s362 + $0x674] sm:$0xf]
        %v848 = vld [vmem:[%s362 + $0x678] sm:$0xf]
        %v849 = vld [vmem:[%s362 + $0x67c] sm:$0xf]
        %v850 = vld [vmem:[%s362 + $0x680] sm:$0xf]
        %v851 = vld [vmem:[%s362 + $0x684] sm:$0xf]
        %v852 = vld [vmem:[%s362 + $0x688] sm:$0xf]
        %v853 = vld [vmem:[%s362 + $0x68c] sm:$0xf]
        %v854 = vld [vmem:[%s362 + $0x690] sm:$0xf]
        %v855 = vld [vmem:[%s362 + $0x694] sm:$0xf]
        %v856 = vld [vmem:[%s362 + $0x698] sm:$0xf]
        %v857 = vld [vmem:[%s362 + $0x69c] sm:$0xf]
        %v858 = vld [vmem:[%s362 + $0x6a0] sm:$0xf]
        %v859 = vld [vmem:[%s362 + $0x6a4] sm:$0xf]
        %v860 = vld [vmem:[%s362 + $0x6a8] sm:$0xf]
        %v861 = vld [vmem:[%s362 + $0x6ac] sm:$0xf]
        %v862 = vld [vmem:[%s362 + $0x6b0] sm:$0xf]
        %v863 = vld [vmem:[%s362 + $0x6b4] sm:$0xf]
        %v864 = vld [vmem:[%s362 + $0x6b8] sm:$0xf]
        %v865 = vld [vmem:[%s362 + $0x6bc] sm:$0xf]
        %v866 = vld [vmem:[%s362 + $0x6c0] sm:$0xf]
        %v867 = vld [vmem:[%s362 + $0x6c4] sm:$0xf]
        %v868 = vld [vmem:[%s362 + $0x6c8] sm:$0xf]
        %v869 = vld [vmem:[%s362 + $0x6cc] sm:$0xf]
        %v870 = vld [vmem:[%s362 + $0x6d0] sm:$0xf]
        %v871 = vld [vmem:[%s362 + $0x6d4] sm:$0xf]
        %v872 = vld [vmem:[%s362 + $0x6d8] sm:$0xf]
        %v873 = vld [vmem:[%s362 + $0x6dc] sm:$0xf]
        %v874 = vld [vmem:[%s362 + $0x6e0] sm:$0xf]
        %v875 = vld [vmem:[%s362 + $0x6e4] sm:$0xf]
        %v876 = vld [vmem:[%s362 + $0x6e8] sm:$0xf]
        %v877 = vld [vmem:[%s362 + $0x6ec] sm:$0xf]
        %v878 = vld [vmem:[%s362 + $0x6f0] sm:$0xf]
        %v879 = vld [vmem:[%s362 + $0x6f4] sm:$0xf]
        %v880 = vld [vmem:[%s362 + $0x6f8] sm:$0xf]
        %v881 = vld [vmem:[%s362 + $0x6fc] sm:$0xf]
        %v882 = vld [vmem:[%s362 + $0x700] sm:$0xf]
        %v883 = vld [vmem:[%s362 + $0x704] sm:$0xf]
        %v884 = vld [vmem:[%s362 + $0x708] sm:$0xf]
        %v885 = vld [vmem:[%s362 + $0x70c] sm:$0xf]
        %v886 = vld [vmem:[%s362 + $0x710] sm:$0xf]
        %v887 = vld [vmem:[%s362 + $0x714] sm:$0xf]
        %v888 = vld [vmem:[%s362 + $0x718] sm:$0xf]
        %v889 = vld [vmem:[%s362 + $0x71c] sm:$0xf]
        %v890 = vld [vmem:[%s362 + $0x720] sm:$0xf]
        %v891 = vld [vmem:[%s362 + $0x724] sm:$0xf]
        %v892 = vld [vmem:[%s362 + $0x728] sm:$0xf]
        %v893 = vld [vmem:[%s362 + $0x72c] sm:$0xf]
        %v894 = vld [vmem:[%s362 + $0x730] sm:$0xf]
        %v895 = vld [vmem:[%s362 + $0x734] sm:$0xf]
        %v896 = vld [vmem:[%s362 + $0x738] sm:$0xf]
        %v897 = vld [vmem:[%s362 + $0x73c] sm:$0xf]
        %v898 = vld [vmem:[%s362 + $0x740] sm:$0xf]
        %v899 = vld [vmem:[%s362 + $0x744] sm:$0xf]
        %v900 = vld [vmem:[%s362 + $0x748] sm:$0xf]
        %v901 = vld [vmem:[%s362 + $0x74c] sm:$0xf]
        %v902 = vld [vmem:[%s362 + $0x750] sm:$0xf]
        %v903 = vld [vmem:[%s362 + $0x754] sm:$0xf]
        %v904 = vld [vmem:[%s362 + $0x758] sm:$0xf]
        %v905 = vld [vmem:[%s362 + $0x75c] sm:$0xf]
        %v906 = vld [vmem:[%s362 + $0x760] sm:$0xf]
        %v907 = vld [vmem:[%s362 + $0x764] sm:$0xf]
        %v908 = vld [vmem:[%s362 + $0x768] sm:$0xf]
        %v909 = vld [vmem:[%s362 + $0x76c] sm:$0xf]
        %v910 = vld [vmem:[%s362 + $0x770] sm:$0xf]
        %v911 = vld [vmem:[%s362 + $0x774] sm:$0xf]
        %v912 = vld [vmem:[%s362 + $0x778] sm:$0xf]
        %v913 = vld [vmem:[%s362 + $0x77c] sm:$0xf]
        %v914 = vld [vmem:[%s362 + $0x780] sm:$0xf]
        %v915 = vld [vmem:[%s362 + $0x784] sm:$0xf]
        %v916 = vld [vmem:[%s362 + $0x788] sm:$0xf]
        %v917 = vld [vmem:[%s362 + $0x78c] sm:$0xf]
        %v918 = vld [vmem:[%s362 + $0x790] sm:$0xf]
        %v919 = vld [vmem:[%s362 + $0x794] sm:$0xf]
        %v920 = vld [vmem:[%s362 + $0x798] sm:$0xf]
        %v921 = vld [vmem:[%s362 + $0x79c] sm:$0xf]
        %v922 = vld [vmem:[%s362 + $0x7a0] sm:$0xf]
        %v923 = vld [vmem:[%s362 + $0x7a4] sm:$0xf]
        %v924 = vld [vmem:[%s362 + $0x7a8] sm:$0xf]
        %v925 = vld [vmem:[%s362 + $0x7ac] sm:$0xf]
        %v926 = vld [vmem:[%s362 + $0x7b0] sm:$0xf]
        %v927 = vld [vmem:[%s362 + $0x7b4] sm:$0xf]
        %v928 = vld [vmem:[%s362 + $0x7b8] sm:$0xf]
        %v929 = vld [vmem:[%s362 + $0x7bc] sm:$0xf]
        %v930 = vld [vmem:[%s362 + $0x7c0] sm:$0xf]
        %v931 = vld [vmem:[%s362 + $0x7c4] sm:$0xf]
        %v932 = vld [vmem:[%s362 + $0x7c8] sm:$0xf]
        %v933 = vld [vmem:[%s362 + $0x7cc] sm:$0xf]
        %v934 = vld [vmem:[%s362 + $0x7d0] sm:$0xf]
        %v935 = vld [vmem:[%s362 + $0x7d4] sm:$0xf]
        %v936 = vld [vmem:[%s362 + $0x7d8] sm:$0xf]
        %v937 = vld [vmem:[%s362 + $0x7dc] sm:$0xf]
        %v938 = vld [vmem:[%s362 + $0x7e0] sm:$0xf]
        %v939 = vld [vmem:[%s362 + $0x7e4] sm:$0xf]
        %v940 = vld [vmem:[%s362 + $0x7e8] sm:$0xf]
        %v941 = vld [vmem:[%s362 + $0x7ec] sm:$0xf]
        %v942 = vld [vmem:[%s362 + $0x7f0] sm:$0xf]
        %v943 = vld [vmem:[%s362 + $0x7f4] sm:$0xf]
        %v944 = vld [vmem:[%s362 + $0x7f8] sm:$0xf]
        %v945 = vld [vmem:[%s362 + $0x7fc] sm:$0xf]
        %v946 = vld [vmem:[%s362 + $0x800] sm:$0xf]
        %v947 = vld [vmem:[%s362 + $0x804] sm:$0xf]
        %v948 = vld [vmem:[%s362 + $0x808] sm:$0xf]
        %v949 = vld [vmem:[%s362 + $0x80c] sm:$0xf]
        %v950 = vld [vmem:[%s362 + $0x810] sm:$0xf]
        %v951 = vld [vmem:[%s362 + $0x814] sm:$0xf]
        %v952 = vld [vmem:[%s362 + $0x818] sm:$0xf]
        %v953 = vld [vmem:[%s362 + $0x81c] sm:$0xf]
        %v954 = vld [vmem:[%s362 + $0x820] sm:$0xf]
        %v955 = vld [vmem:[%s362 + $0x824] sm:$0xf]
        %v956 = vld [vmem:[%s362 + $0x828] sm:$0xf]
        %v957 = vld [vmem:[%s362 + $0x82c] sm:$0xf]
        %v958 = vld [vmem:[%s362 + $0x830] sm:$0xf]
        %v959 = vld [vmem:[%s362 + $0x834] sm:$0xf]
        %v960 = vld [vmem:[%s362 + $0x838] sm:$0xf]
        %v961 = vld [vmem:[%s362 + $0x83c] sm:$0xf]
        %v967 = vcombine.high %v429, %v429
        %v969 = vunpack.c.l.s4 1966171168
        %v970 = vunpack.c.0.s8 %v969
        %v971 = vlaneseq
        %v972 = vshrl.u32 %v971, 7
        %v973 = vsub.s32 %v970, %v972
        %v974 = vrot.slane %v429, %v973
        %v976 = vunpack.c.l.s4 1966171168
        %v977 = vunpack.c.0.s8 %v976
        %v978 = vlaneseq
        %v979 = vshrl.u32 %v978, 7
        %v980 = vsub.s32 %v977, %v979
        %v981 = vrot.slane %v967, %v980
        %v982 = vcombine.high %v974, %v974
        %v983 = vcombine.high %v981, %v981
        %v985 = vunpack.c.l.s4 1966171168
        %v986 = vunpack.c.0.s8 %v985
        %v987 = vlaneseq
        %v988 = vshrl.u32 %v987, 7
        %v989 = vsub.s32 %v986, %v988
        %v990 = vrot.slane %v974, %v989
        %v992 = vunpack.c.l.s4 1966171168
        %v993 = vunpack.c.0.s8 %v992
        %v994 = vlaneseq
        %v995 = vshrl.u32 %v994, 7
        %v996 = vsub.s32 %v993, %v995
        %v997 = vrot.slane %v981, %v996
        %v999 = vunpack.c.l.s4 1966171168
        %v1000 = vunpack.c.0.s8 %v999
        %v1001 = vlaneseq
        %v1002 = vshrl.u32 %v1001, 7
        %v1003 = vsub.s32 %v1000, %v1002
        %v1004 = vrot.slane %v982, %v1003
        %v1006 = vunpack.c.l.s4 1966171168
        %v1007 = vunpack.c.0.s8 %v1006
        %v1008 = vlaneseq
        %v1009 = vshrl.u32 %v1008, 7
        %v1010 = vsub.s32 %v1007, %v1009
        %v1011 = vrot.slane %v983, %v1010
        %v1012 = vcombine.high %v990, %v990
        %v1013 = vcombine.high %v997, %v997
        %v1014 = vcombine.high %v1004, %v1004
        %v1015 = vcombine.high %v1011, %v1011
        %v1016 = vcombine.high %v430, %v430
        %v1018 = vunpack.c.l.s4 1966171168
        %v1019 = vunpack.c.0.s8 %v1018
        %v1020 = vlaneseq
        %v1021 = vshrl.u32 %v1020, 7
        %v1022 = vsub.s32 %v1019, %v1021
        %v1023 = vrot.slane %v430, %v1022
        %v1025 = vunpack.c.l.s4 1966171168
        %v1026 = vunpack.c.0.s8 %v1025
        %v1027 = vlaneseq
        %v1028 = vshrl.u32 %v1027, 7
        %v1029 = vsub.s32 %v1026, %v1028
        %v1030 = vrot.slane %v1016, %v1029
        %v1031 = vcombine.high %v1023, %v1023
        %v1032 = vcombine.high %v1030, %v1030
        %v1034 = vunpack.c.l.s4 1966171168
        %v1035 = vunpack.c.0.s8 %v1034
        %v1036 = vlaneseq
        %v1037 = vshrl.u32 %v1036, 7
        %v1038 = vsub.s32 %v1035, %v1037
        %v1039 = vrot.slane %v1023, %v1038
        %v1041 = vunpack.c.l.s4 1966171168
        %v1042 = vunpack.c.0.s8 %v1041
        %v1043 = vlaneseq
        %v1044 = vshrl.u32 %v1043, 7
        %v1045 = vsub.s32 %v1042, %v1044
        %v1046 = vrot.slane %v1030, %v1045
        %v1048 = vunpack.c.l.s4 1966171168
        %v1049 = vunpack.c.0.s8 %v1048
        %v1050 = vlaneseq
        %v1051 = vshrl.u32 %v1050, 7
        %v1052 = vsub.s32 %v1049, %v1051
        %v1053 = vrot.slane %v1031, %v1052
        %v1055 = vunpack.c.l.s4 1966171168
        %v1056 = vunpack.c.0.s8 %v1055
        %v1057 = vlaneseq
        %v1058 = vshrl.u32 %v1057, 7
        %v1059 = vsub.s32 %v1056, %v1058
        %v1060 = vrot.slane %v1032, %v1059
        %v1061 = vcombine.high %v1039, %v1039
        %v1062 = vcombine.high %v1046, %v1046
        %v1063 = vcombine.high %v1053, %v1053
        %v1064 = vcombine.high %v1060, %v1060
        %v1065 = vcombine.high %v431, %v431
        %v1067 = vunpack.c.l.s4 1966171168
        %v1068 = vunpack.c.0.s8 %v1067
        %v1069 = vlaneseq
        %v1070 = vshrl.u32 %v1069, 7
        %v1071 = vsub.s32 %v1068, %v1070
        %v1072 = vrot.slane %v431, %v1071
        %v1074 = vunpack.c.l.s4 1966171168
        %v1075 = vunpack.c.0.s8 %v1074
        %v1076 = vlaneseq
        %v1077 = vshrl.u32 %v1076, 7
        %v1078 = vsub.s32 %v1075, %v1077
        %v1079 = vrot.slane %v1065, %v1078
        %v1080 = vcombine.high %v1072, %v1072
        %v1081 = vcombine.high %v1079, %v1079
        %v1083 = vunpack.c.l.s4 1966171168
        %v1084 = vunpack.c.0.s8 %v1083
        %v1085 = vlaneseq
        %v1086 = vshrl.u32 %v1085, 7
        %v1087 = vsub.s32 %v1084, %v1086
        %v1088 = vrot.slane %v1072, %v1087
        %v1090 = vunpack.c.l.s4 1966171168
        %v1091 = vunpack.c.0.s8 %v1090
        %v1092 = vlaneseq
        %v1093 = vshrl.u32 %v1092, 7
        %v1094 = vsub.s32 %v1091, %v1093
        %v1095 = vrot.slane %v1079, %v1094
        %v1097 = vunpack.c.l.s4 1966171168
        %v1098 = vunpack.c.0.s8 %v1097
        %v1099 = vlaneseq
        %v1100 = vshrl.u32 %v1099, 7
        %v1101 = vsub.s32 %v1098, %v1100
        %v1102 = vrot.slane %v1080, %v1101
        %v1104 = vunpack.c.l.s4 1966171168
        %v1105 = vunpack.c.0.s8 %v1104
        %v1106 = vlaneseq
        %v1107 = vshrl.u32 %v1106, 7
        %v1108 = vsub.s32 %v1105, %v1107
        %v1109 = vrot.slane %v1081, %v1108
        %v1110 = vcombine.high %v1088, %v1088
        %v1111 = vcombine.high %v1095, %v1095
        %v1112 = vcombine.high %v1102, %v1102
        %v1113 = vcombine.high %v1109, %v1109
        %v1114 = vcombine.high %v432, %v432
        %v1116 = vunpack.c.l.s4 1966171168
        %v1117 = vunpack.c.0.s8 %v1116
        %v1118 = vlaneseq
        %v1119 = vshrl.u32 %v1118, 7
        %v1120 = vsub.s32 %v1117, %v1119
        %v1121 = vrot.slane %v432, %v1120
        %v1123 = vunpack.c.l.s4 1966171168
        %v1124 = vunpack.c.0.s8 %v1123
        %v1125 = vlaneseq
        %v1126 = vshrl.u32 %v1125, 7
        %v1127 = vsub.s32 %v1124, %v1126
        %v1128 = vrot.slane %v1114, %v1127
        %v1129 = vcombine.high %v1121, %v1121
        %v1130 = vcombine.high %v1128, %v1128
        %v1132 = vunpack.c.l.s4 1966171168
        %v1133 = vunpack.c.0.s8 %v1132
        %v1134 = vlaneseq
        %v1135 = vshrl.u32 %v1134, 7
        %v1136 = vsub.s32 %v1133, %v1135
        %v1137 = vrot.slane %v1121, %v1136
        %v1139 = vunpack.c.l.s4 1966171168
        %v1140 = vunpack.c.0.s8 %v1139
        %v1141 = vlaneseq
        %v1142 = vshrl.u32 %v1141, 7
        %v1143 = vsub.s32 %v1140, %v1142
        %v1144 = vrot.slane %v1128, %v1143
        %v1146 = vunpack.c.l.s4 1966171168
        %v1147 = vunpack.c.0.s8 %v1146
        %v1148 = vlaneseq
        %v1149 = vshrl.u32 %v1148, 7
        %v1150 = vsub.s32 %v1147, %v1149
        %v1151 = vrot.slane %v1129, %v1150
        %v1153 = vunpack.c.l.s4 1966171168
        %v1154 = vunpack.c.0.s8 %v1153
        %v1155 = vlaneseq
        %v1156 = vshrl.u32 %v1155, 7
        %v1157 = vsub.s32 %v1154, %v1156
        %v1158 = vrot.slane %v1130, %v1157
        %v1159 = vcombine.high %v1137, %v1137
        %v1160 = vcombine.high %v1144, %v1144
        %v1161 = vcombine.high %v1151, %v1151
        %v1162 = vcombine.high %v1158, %v1158
        %v1164 = vunpack.c.l.s4 1966171168
        %v1165 = vunpack.c.0.s8 %v1164
        %v1166 = vlaneseq
        %v1167 = vshrl.u32 %v1166, 7
        %v1168 = vsub.s32 %v1165, %v1167
        %v1169 = vrot.slane %v433, %v1168
        %v1171 = vunpack.c.l.s4 1966171168
        %v1172 = vunpack.c.0.s8 %v1171
        %v1173 = vlaneseq
        %v1174 = vshrl.u32 %v1173, 7
        %v1175 = vsub.s32 %v1172, %v1174
        %v1176 = vrot.slane %v1169, %v1175
        %v1738 = vunpack.c.l.b16 %v434
        %v1739 = vunpack.c.l.b16 %v435
        %v1740 = vunpack.c.l.b16 %v436
        %v1741 = vunpack.c.l.b16 %v437
        %v1742 = vunpack.c.l.b16 %v438
        %v1743 = vunpack.c.l.b16 %v439
        %v1744 = vunpack.c.l.b16 %v440
        %v1745 = vunpack.c.l.b16 %v441
        %v1746 = vunpack.c.l.b16 %v442
        %v1747 = vunpack.c.l.b16 %v443
        %v1748 = vunpack.c.l.b16 %v444
        %v1749 = vunpack.c.l.b16 %v445
        %v1750 = vunpack.c.l.b16 %v446
        %v1751 = vunpack.c.l.b16 %v447
        %v1752 = vunpack.c.l.b16 %v448
        %v1753 = vunpack.c.l.b16 %v449
        %v1754 = vunpack.c.l.b16 %v450
        %v1755 = vunpack.c.l.b16 %v451
        %v1756 = vunpack.c.l.b16 %v452
        %v1757 = vunpack.c.l.b16 %v453
        %v1758 = vunpack.c.l.b16 %v454
        %v1759 = vunpack.c.l.b16 %v455
        %v1760 = vunpack.c.l.b16 %v456
        %v1761 = vunpack.c.l.b16 %v457
        %v1762 = vunpack.c.l.b16 %v458
        %v1763 = vunpack.c.l.b16 %v459
        %v1764 = vunpack.c.l.b16 %v460
        %v1765 = vunpack.c.l.b16 %v461
        %v1766 = vunpack.c.l.b16 %v462
        %v1767 = vunpack.c.l.b16 %v463
        %v1768 = vunpack.c.l.b16 %v464
        %v1769 = vunpack.c.l.b16 %v465
        %v1770 = vunpack.c.l.b16 %v466
        %v1771 = vunpack.c.l.b16 %v467
        %v1772 = vunpack.c.l.b16 %v468
        %v1773 = vunpack.c.l.b16 %v469
        %v1774 = vunpack.c.l.b16 %v470
        %v1775 = vunpack.c.l.b16 %v471
        %v1776 = vunpack.c.l.b16 %v472
        %v1777 = vunpack.c.l.b16 %v473
        %v1778 = vunpack.c.l.b16 %v474
        %v1779 = vunpack.c.l.b16 %v475
        %v1780 = vunpack.c.l.b16 %v476
        %v1781 = vunpack.c.l.b16 %v477
        %v1782 = vunpack.c.l.b16 %v478
        %v1783 = vunpack.c.l.b16 %v479
        %v1784 = vunpack.c.l.b16 %v480
        %v1785 = vunpack.c.l.b16 %v481
        %v1786 = vunpack.c.l.b16 %v482
        %v1787 = vunpack.c.l.b16 %v483
        %v1788 = vunpack.c.l.b16 %v484
        %v1789 = vunpack.c.l.b16 %v485
        %v1790 = vunpack.c.l.b16 %v486
        %v1791 = vunpack.c.l.b16 %v487
        %v1792 = vunpack.c.l.b16 %v488
        %v1793 = vunpack.c.l.b16 %v489
        %v1794 = vunpack.c.l.b16 %v490
        %v1795 = vunpack.c.l.b16 %v491
        %v1796 = vunpack.c.l.b16 %v492
        %v1797 = vunpack.c.l.b16 %v493
        %v1798 = vunpack.c.l.b16 %v494
        %v1799 = vunpack.c.l.b16 %v495
        %v1800 = vunpack.c.l.b16 %v496
        %v1801 = vunpack.c.l.b16 %v497
        %v1802 = vunpack.c.l.b16 %v498
        %v1803 = vunpack.c.l.b16 %v499
        %v1804 = vunpack.c.l.b16 %v500
        %v1805 = vunpack.c.l.b16 %v501
        %v1806 = vunpack.c.l.b16 %v502
        %v1807 = vunpack.c.l.b16 %v503
        %v1808 = vunpack.c.l.b16 %v504
        %v1809 = vunpack.c.l.b16 %v505
        %v1810 = vunpack.c.l.b16 %v506
        %v1811 = vunpack.c.l.b16 %v507
        %v1812 = vunpack.c.l.b16 %v508
        %v1813 = vunpack.c.l.b16 %v509
        %v1814 = vunpack.c.l.b16 %v510
        %v1815 = vunpack.c.l.b16 %v511
        %v1816 = vunpack.c.l.b16 %v512
        %v1817 = vunpack.c.l.b16 %v513
        %v1818 = vunpack.c.l.b16 %v514
        %v1819 = vunpack.c.l.b16 %v515
        %v1820 = vunpack.c.l.b16 %v516
        %v1821 = vunpack.c.l.b16 %v517
        %v1822 = vunpack.c.l.b16 %v518
        %v1823 = vunpack.c.l.b16 %v519
        %v1824 = vunpack.c.l.b16 %v520
        %v1825 = vunpack.c.l.b16 %v521
        %v1826 = vunpack.c.l.b16 %v522
        %v1827 = vunpack.c.l.b16 %v523
        %v1828 = vunpack.c.l.b16 %v524
        %v1829 = vunpack.c.l.b16 %v525
        %v1830 = vunpack.c.l.b16 %v526
        %v1831 = vunpack.c.l.b16 %v527
        %v1832 = vunpack.c.l.b16 %v528
        %v1833 = vunpack.c.l.b16 %v529
        %v1834 = vunpack.c.l.b16 %v530
        %v1835 = vunpack.c.l.b16 %v531
        %v1836 = vunpack.c.l.b16 %v532
        %v1837 = vunpack.c.l.b16 %v533
        %v1838 = vunpack.c.l.b16 %v534
        %v1839 = vunpack.c.l.b16 %v535
        %v1840 = vunpack.c.l.b16 %v536
        %v1841 = vunpack.c.l.b16 %v537
        %v1842 = vunpack.c.l.b16 %v538
        %v1843 = vunpack.c.l.b16 %v539
        %v1844 = vunpack.c.l.b16 %v540
        %v1845 = vunpack.c.l.b16 %v541
        %v1846 = vunpack.c.l.b16 %v542
        %v1847 = vunpack.c.l.b16 %v543
        %v1848 = vunpack.c.l.b16 %v544
        %v1849 = vunpack.c.l.b16 %v545
        %v1850 = vunpack.c.l.b16 %v546
        %v1851 = vunpack.c.l.b16 %v547
        %v1852 = vunpack.c.l.b16 %v548
        %v1853 = vunpack.c.l.b16 %v549
        %v1854 = vunpack.c.l.b16 %v550
        %v1855 = vunpack.c.l.b16 %v551
        %v1856 = vunpack.c.l.b16 %v552
        %v1857 = vunpack.c.l.b16 %v553
        %v1858 = vunpack.c.l.b16 %v554
        %v1859 = vunpack.c.l.b16 %v555
        %v1860 = vunpack.c.l.b16 %v556
        %v1861 = vunpack.c.l.b16 %v557
        %v1862 = vunpack.c.l.b16 %v558
        %v1863 = vunpack.c.l.b16 %v559
        %v1864 = vunpack.c.l.b16 %v560
        %v1865 = vunpack.c.l.b16 %v561
        %v1866 = vunpack.c.l.b16 %v562
        %v1867 = vunpack.c.l.b16 %v563
        %v1868 = vunpack.c.l.b16 %v564
        %v1869 = vunpack.c.l.b16 %v565
        %v1870 = vunpack.c.l.b16 %v566
        %v1871 = vunpack.c.l.b16 %v567
        %v1872 = vunpack.c.l.b16 %v568
        %v1873 = vunpack.c.l.b16 %v569
        %v1874 = vunpack.c.l.b16 %v570
        %v1875 = vunpack.c.l.b16 %v571
        %v1876 = vunpack.c.l.b16 %v572
        %v1877 = vunpack.c.l.b16 %v573
        %v1878 = vunpack.c.l.b16 %v574
        %v1879 = vunpack.c.l.b16 %v575
        %v1880 = vunpack.c.l.b16 %v576
        %v1881 = vunpack.c.l.b16 %v577
        %v1882 = vunpack.c.l.b16 %v578
        %v1883 = vunpack.c.l.b16 %v579
        %v1884 = vunpack.c.l.b16 %v580
        %v1885 = vunpack.c.l.b16 %v581
        %v1886 = vunpack.c.l.b16 %v582
        %v1887 = vunpack.c.l.b16 %v583
        %v1888 = vunpack.c.l.b16 %v584
        %v1889 = vunpack.c.l.b16 %v585
        %v1890 = vunpack.c.l.b16 %v586
        %v1891 = vunpack.c.l.b16 %v587
        %v1892 = vunpack.c.l.b16 %v588
        %v1893 = vunpack.c.l.b16 %v589
        %v1894 = vunpack.c.l.b16 %v590
        %v1895 = vunpack.c.l.b16 %v591
        %v1896 = vunpack.c.l.b16 %v592
        %v1897 = vunpack.c.l.b16 %v593
        %v1898 = vunpack.c.l.b16 %v594
        %v1899 = vunpack.c.l.b16 %v595
        %v1900 = vunpack.c.l.b16 %v596
        %v1901 = vunpack.c.l.b16 %v597
        %v1902 = vunpack.c.l.b16 %v598
        %v1903 = vunpack.c.l.b16 %v599
        %v1904 = vunpack.c.l.b16 %v600
        %v1905 = vunpack.c.l.b16 %v601
        %v1906 = vunpack.c.l.b16 %v602
        %v1907 = vunpack.c.l.b16 %v603
        %v1908 = vunpack.c.l.b16 %v604
        %v1909 = vunpack.c.l.b16 %v605
        %v1910 = vunpack.c.l.b16 %v606
        %v1911 = vunpack.c.l.b16 %v607
        %v1912 = vunpack.c.l.b16 %v608
        %v1913 = vunpack.c.l.b16 %v609
        %v1914 = vunpack.c.l.b16 %v610
        %v1915 = vunpack.c.l.b16 %v611
        %v1916 = vunpack.c.l.b16 %v612
        %v1917 = vunpack.c.l.b16 %v613
        %v1918 = vunpack.c.l.b16 %v614
        %v1919 = vunpack.c.l.b16 %v615
        %v1920 = vunpack.c.l.b16 %v616
        %v1921 = vunpack.c.l.b16 %v617
        %v1922 = vunpack.c.l.b16 %v618
        %v1923 = vunpack.c.l.b16 %v619
        %v1924 = vunpack.c.l.b16 %v620
        %v1925 = vunpack.c.l.b16 %v621
        %v1926 = vunpack.c.l.b16 %v622
        %v1927 = vunpack.c.l.b16 %v623
        %v1928 = vunpack.c.l.b16 %v624
        %v1929 = vunpack.c.l.b16 %v625
        %v1930 = vunpack.c.l.b16 %v626
        %v1931 = vunpack.c.l.b16 %v627
        %v1932 = vunpack.c.l.b16 %v628
        %v1933 = vunpack.c.l.b16 %v629
        %v1934 = vunpack.c.l.b16 %v630
        %v1935 = vunpack.c.l.b16 %v631
        %v1936 = vunpack.c.l.b16 %v632
        %v1937 = vunpack.c.l.b16 %v633
        %v1938 = vunpack.c.l.b16 %v634
        %v1939 = vunpack.c.l.b16 %v635
        %v1940 = vunpack.c.l.b16 %v636
        %v1941 = vunpack.c.l.b16 %v637
        %v1942 = vunpack.c.l.b16 %v638
        %v1943 = vunpack.c.l.b16 %v639
        %v1944 = vunpack.c.l.b16 %v640
        %v1945 = vunpack.c.l.b16 %v641
        %v1946 = vunpack.c.l.b16 %v642
        %v1947 = vunpack.c.l.b16 %v643
        %v1948 = vunpack.c.l.b16 %v644
        %v1949 = vunpack.c.l.b16 %v645
        %v1950 = vunpack.c.l.b16 %v646
        %v1951 = vunpack.c.l.b16 %v647
        %v1952 = vunpack.c.l.b16 %v648
        %v1953 = vunpack.c.l.b16 %v649
        %v1954 = vunpack.c.l.b16 %v650
        %v1955 = vunpack.c.l.b16 %v651
        %v1956 = vunpack.c.l.b16 %v652
        %v1957 = vunpack.c.l.b16 %v653
        %v1958 = vunpack.c.l.b16 %v654
        %v1959 = vunpack.c.l.b16 %v655
        %v1960 = vunpack.c.l.b16 %v656
        %v1961 = vunpack.c.l.b16 %v657
        %v1962 = vunpack.c.l.b16 %v658
        %v1963 = vunpack.c.l.b16 %v659
        %v1964 = vunpack.c.l.b16 %v660
        %v1965 = vunpack.c.l.b16 %v661
        %v1966 = vunpack.c.l.b16 %v662
        %v1967 = vunpack.c.l.b16 %v663
        %v1968 = vunpack.c.l.b16 %v664
        %v1969 = vunpack.c.l.b16 %v665
        %v1970 = vunpack.c.l.b16 %v666
        %v1971 = vunpack.c.l.b16 %v667
        %v1972 = vunpack.c.l.b16 %v668
        %v1973 = vunpack.c.l.b16 %v669
        %v1974 = vunpack.c.l.b16 %v670
        %v1975 = vunpack.c.l.b16 %v671
        %v1976 = vunpack.c.l.b16 %v672
        %v1977 = vunpack.c.l.b16 %v673
        %v1978 = vunpack.c.l.b16 %v674
        %v1979 = vunpack.c.l.b16 %v675
        %v1980 = vunpack.c.l.b16 %v676
        %v1981 = vunpack.c.l.b16 %v677
        %v1982 = vunpack.c.l.b16 %v678
        %v1983 = vunpack.c.l.b16 %v679
        %v1984 = vunpack.c.l.b16 %v680
        %v1985 = vunpack.c.l.b16 %v681
        %v1986 = vunpack.c.l.b16 %v682
        %v1987 = vunpack.c.l.b16 %v683
        %v1988 = vunpack.c.l.b16 %v684
        %v1989 = vunpack.c.l.b16 %v685
        %v1990 = vunpack.c.l.b16 %v686
        %v1991 = vunpack.c.l.b16 %v687
        %v1992 = vunpack.c.l.b16 %v688
        %v1993 = vunpack.c.l.b16 %v689
        %v1994 = vunpack.c.l.b16 %v690
        %v1995 = vunpack.c.l.b16 %v691
        %v1996 = vunpack.c.l.b16 %v692
        %v1997 = vunpack.c.l.b16 %v693
        %v1998 = vunpack.c.l.b16 %v694
        %v1999 = vunpack.c.l.b16 %v695
        %v2000 = vunpack.c.l.b16 %v696
        %v2001 = vunpack.c.l.b16 %v697
        %v2002 = vunpack.c.l.b16 %v698
        %v2003 = vunpack.c.l.b16 %v699
        %v2004 = vunpack.c.l.b16 %v700
        %v2005 = vunpack.c.l.b16 %v701
        %v2006 = vunpack.c.l.b16 %v702
        %v2007 = vunpack.c.l.b16 %v703
        %v2008 = vunpack.c.l.b16 %v704
        %v2009 = vunpack.c.l.b16 %v705
        %v2010 = vunpack.c.l.b16 %v706
        %v2011 = vunpack.c.l.b16 %v707
        %v2012 = vunpack.c.l.b16 %v708
        %v2013 = vunpack.c.l.b16 %v709
        %v2014 = vunpack.c.l.b16 %v710
        %v2015 = vunpack.c.l.b16 %v711
        %v2016 = vunpack.c.l.b16 %v712
        %v2017 = vunpack.c.l.b16 %v713
        %v2018 = vunpack.c.l.b16 %v714
        %v2019 = vunpack.c.l.b16 %v715
        %v2020 = vunpack.c.l.b16 %v716
        %v2021 = vunpack.c.l.b16 %v717
        %v2022 = vunpack.c.l.b16 %v718
        %v2023 = vunpack.c.l.b16 %v719
        %v2024 = vunpack.c.l.b16 %v720
        %v2025 = vunpack.c.l.b16 %v721
        %v2026 = vunpack.c.l.b16 %v722
        %v2027 = vunpack.c.l.b16 %v723
        %v2028 = vunpack.c.l.b16 %v724
        %v2029 = vunpack.c.l.b16 %v725
        %v2030 = vunpack.c.l.b16 %v726
        %v2031 = vunpack.c.l.b16 %v727
        %v2032 = vunpack.c.l.b16 %v728
        %v2033 = vunpack.c.l.b16 %v729
        %v2034 = vunpack.c.l.b16 %v730
        %v2035 = vunpack.c.l.b16 %v731
        %v2036 = vunpack.c.l.b16 %v732
        %v2037 = vunpack.c.l.b16 %v733
        %v2038 = vunpack.c.l.b16 %v734
        %v2039 = vunpack.c.l.b16 %v735
        %v2040 = vunpack.c.l.b16 %v736
        %v2041 = vunpack.c.l.b16 %v737
        %v2042 = vunpack.c.l.b16 %v738
        %v2043 = vunpack.c.l.b16 %v739
        %v2044 = vunpack.c.l.b16 %v740
        %v2045 = vunpack.c.l.b16 %v741
        %v2046 = vunpack.c.l.b16 %v742
        %v2047 = vunpack.c.l.b16 %v743
        %v2048 = vunpack.c.l.b16 %v744
        %v2049 = vunpack.c.l.b16 %v745
        %v2050 = vunpack.c.l.b16 %v746
        %v2051 = vunpack.c.l.b16 %v747
        %v2052 = vunpack.c.l.b16 %v748
        %v2053 = vunpack.c.l.b16 %v749
        %v2054 = vunpack.c.l.b16 %v750
        %v2055 = vunpack.c.l.b16 %v751
        %v2056 = vunpack.c.l.b16 %v752
        %v2057 = vunpack.c.l.b16 %v753
        %v2058 = vunpack.c.l.b16 %v754
        %v2059 = vunpack.c.l.b16 %v755
        %v2060 = vunpack.c.l.b16 %v756
        %v2061 = vunpack.c.l.b16 %v757
        %v2062 = vunpack.c.l.b16 %v758
        %v2063 = vunpack.c.l.b16 %v759
        %v2064 = vunpack.c.l.b16 %v760
        %v2065 = vunpack.c.l.b16 %v761
        %v2066 = vunpack.c.l.b16 %v762
        %v2067 = vunpack.c.l.b16 %v763
        %v2068 = vunpack.c.l.b16 %v764
        %v2069 = vunpack.c.l.b16 %v765
        %v2070 = vunpack.c.l.b16 %v766
        %v2071 = vunpack.c.l.b16 %v767
        %v2072 = vunpack.c.l.b16 %v768
        %v2073 = vunpack.c.l.b16 %v769
        %v2074 = vunpack.c.l.b16 %v770
        %v2075 = vunpack.c.l.b16 %v771
        %v2076 = vunpack.c.l.b16 %v772
        %v2077 = vunpack.c.l.b16 %v773
        %v2078 = vunpack.c.l.b16 %v774
        %v2079 = vunpack.c.l.b16 %v775
        %v2080 = vunpack.c.l.b16 %v776
        %v2081 = vunpack.c.l.b16 %v777
        %v2082 = vunpack.c.l.b16 %v778
        %v2083 = vunpack.c.l.b16 %v779
        %v2084 = vunpack.c.l.b16 %v780
        %v2085 = vunpack.c.l.b16 %v781
        %v2086 = vunpack.c.l.b16 %v782
        %v2087 = vunpack.c.l.b16 %v783
        %v2088 = vunpack.c.l.b16 %v784
        %v2089 = vunpack.c.l.b16 %v785
        %v2090 = vunpack.c.l.b16 %v786
        %v2091 = vunpack.c.l.b16 %v787
        %v2092 = vunpack.c.l.b16 %v788
        %v2093 = vunpack.c.l.b16 %v789
        %v2094 = vunpack.c.l.b16 %v790
        %v2095 = vunpack.c.l.b16 %v791
        %v2096 = vunpack.c.l.b16 %v792
        %v2097 = vunpack.c.l.b16 %v793
        %v2098 = vunpack.c.l.b16 %v794
        %v2099 = vunpack.c.l.b16 %v795
        %v2100 = vunpack.c.l.b16 %v796
        %v2101 = vunpack.c.l.b16 %v797
        %v2102 = vunpack.c.l.b16 %v798
        %v2103 = vunpack.c.l.b16 %v799
        %v2104 = vunpack.c.l.b16 %v800
        %v2105 = vunpack.c.l.b16 %v801
        %v2106 = vunpack.c.l.b16 %v802
        %v2107 = vunpack.c.l.b16 %v803
        %v2108 = vunpack.c.l.b16 %v804
        %v2109 = vunpack.c.l.b16 %v805
        %v2110 = vunpack.c.l.b16 %v806
        %v2111 = vunpack.c.l.b16 %v807
        %v2112 = vunpack.c.l.b16 %v808
        %v2113 = vunpack.c.l.b16 %v809
        %v2114 = vunpack.c.l.b16 %v810
        %v2115 = vunpack.c.l.b16 %v811
        %v2116 = vunpack.c.l.b16 %v812
        %v2117 = vunpack.c.l.b16 %v813
        %v2118 = vunpack.c.l.b16 %v814
        %v2119 = vunpack.c.l.b16 %v815
        %v2120 = vunpack.c.l.b16 %v816
        %v2121 = vunpack.c.l.b16 %v817
        %v2122 = vunpack.c.l.b16 %v818
        %v2123 = vunpack.c.l.b16 %v819
        %v2124 = vunpack.c.l.b16 %v820
        %v2125 = vunpack.c.l.b16 %v821
        %v2126 = vunpack.c.l.b16 %v822
        %v2127 = vunpack.c.l.b16 %v823
        %v2128 = vunpack.c.l.b16 %v824
        %v2129 = vunpack.c.l.b16 %v825
        %v2130 = vunpack.c.l.b16 %v826
        %v2131 = vunpack.c.l.b16 %v827
        %v2132 = vunpack.c.l.b16 %v828
        %v2133 = vunpack.c.l.b16 %v829
        %v2134 = vunpack.c.l.b16 %v830
        %v2135 = vunpack.c.l.b16 %v831
        %v2136 = vunpack.c.l.b16 %v832
        %v2137 = vunpack.c.l.b16 %v833
        %v2138 = vunpack.c.l.b16 %v834
        %v2139 = vunpack.c.l.b16 %v835
        %v2140 = vunpack.c.l.b16 %v836
        %v2141 = vunpack.c.l.b16 %v837
        %v2142 = vunpack.c.l.b16 %v838
        %v2143 = vunpack.c.l.b16 %v839
        %v2144 = vunpack.c.l.b16 %v840
        %v2145 = vunpack.c.l.b16 %v841
        %v2146 = vunpack.c.l.b16 %v842
        %v2147 = vunpack.c.l.b16 %v843
        %v2148 = vunpack.c.l.b16 %v844
        %v2149 = vunpack.c.l.b16 %v845
        %v2150 = vunpack.c.l.b16 %v846
        %v2151 = vunpack.c.l.b16 %v847
        %v2152 = vunpack.c.l.b16 %v848
        %v2153 = vunpack.c.l.b16 %v849
        %v2154 = vunpack.c.l.b16 %v850
        %v2155 = vunpack.c.l.b16 %v851
        %v2156 = vunpack.c.l.b16 %v852
        %v2157 = vunpack.c.l.b16 %v853
        %v2158 = vunpack.c.l.b16 %v854
        %v2159 = vunpack.c.l.b16 %v855
        %v2160 = vunpack.c.l.b16 %v856
        %v2161 = vunpack.c.l.b16 %v857
        %v2162 = vunpack.c.l.b16 %v858
        %v2163 = vunpack.c.l.b16 %v859
        %v2164 = vunpack.c.l.b16 %v860
        %v2165 = vunpack.c.l.b16 %v861
        %v2166 = vunpack.c.l.b16 %v862
        %v2167 = vunpack.c.l.b16 %v863
        %v2168 = vunpack.c.l.b16 %v864
        %v2169 = vunpack.c.l.b16 %v865
        %v2170 = vunpack.c.l.b16 %v866
        %v2171 = vunpack.c.l.b16 %v867
        %v2172 = vunpack.c.l.b16 %v868
        %v2173 = vunpack.c.l.b16 %v869
        %v2174 = vunpack.c.l.b16 %v870
        %v2175 = vunpack.c.l.b16 %v871
        %v2176 = vunpack.c.l.b16 %v872
        %v2177 = vunpack.c.l.b16 %v873
        %v2178 = vunpack.c.l.b16 %v874
        %v2179 = vunpack.c.l.b16 %v875
        %v2180 = vunpack.c.l.b16 %v876
        %v2181 = vunpack.c.l.b16 %v877
        %v2182 = vunpack.c.l.b16 %v878
        %v2183 = vunpack.c.l.b16 %v879
        %v2184 = vunpack.c.l.b16 %v880
        %v2185 = vunpack.c.l.b16 %v881
        %v2186 = vunpack.c.l.b16 %v882
        %v2187 = vunpack.c.l.b16 %v883
        %v2188 = vunpack.c.l.b16 %v884
        %v2189 = vunpack.c.l.b16 %v885
        %v2190 = vunpack.c.l.b16 %v886
        %v2191 = vunpack.c.l.b16 %v887
        %v2192 = vunpack.c.l.b16 %v888
        %v2193 = vunpack.c.l.b16 %v889
        %v2194 = vunpack.c.l.b16 %v890
        %v2195 = vunpack.c.l.b16 %v891
        %v2196 = vunpack.c.l.b16 %v892
        %v2197 = vunpack.c.l.b16 %v893
        %v2198 = vunpack.c.l.b16 %v894
        %v2199 = vunpack.c.l.b16 %v895
        %v2200 = vunpack.c.l.b16 %v896
        %v2201 = vunpack.c.l.b16 %v897
        %v2202 = vunpack.c.l.b16 %v898
        %v2203 = vunpack.c.l.b16 %v899
        %v2204 = vunpack.c.l.b16 %v900
        %v2205 = vunpack.c.l.b16 %v901
        %v2206 = vunpack.c.l.b16 %v902
        %v2207 = vunpack.c.l.b16 %v903
        %v2208 = vunpack.c.l.b16 %v904
        %v2209 = vunpack.c.l.b16 %v905
        %v2210 = vunpack.c.l.b16 %v906
        %v2211 = vunpack.c.l.b16 %v907
        %v2212 = vunpack.c.l.b16 %v908
        %v2213 = vunpack.c.l.b16 %v909
        %v2214 = vunpack.c.l.b16 %v910
        %v2215 = vunpack.c.l.b16 %v911
        %v2216 = vunpack.c.l.b16 %v912
        %v2217 = vunpack.c.l.b16 %v913
        %v2218 = vunpack.c.l.b16 %v914
        %v2219 = vunpack.c.l.b16 %v915
        %v2220 = vunpack.c.l.b16 %v916
        %v2221 = vunpack.c.l.b16 %v917
        %v2222 = vunpack.c.l.b16 %v918
        %v2223 = vunpack.c.l.b16 %v919
        %v2224 = vunpack.c.l.b16 %v920
        %v2225 = vunpack.c.l.b16 %v921
        %v2226 = vunpack.c.l.b16 %v922
        %v2227 = vunpack.c.l.b16 %v923
        %v2228 = vunpack.c.l.b16 %v924
        %v2229 = vunpack.c.l.b16 %v925
        %v2230 = vunpack.c.l.b16 %v926
        %v2231 = vunpack.c.l.b16 %v927
        %v2232 = vunpack.c.l.b16 %v928
        %v2233 = vunpack.c.l.b16 %v929
        %v2234 = vunpack.c.l.b16 %v930
        %v2235 = vunpack.c.l.b16 %v931
        %v2236 = vunpack.c.l.b16 %v932
        %v2237 = vunpack.c.l.b16 %v933
        %v2238 = vunpack.c.l.b16 %v934
        %v2239 = vunpack.c.l.b16 %v935
        %v2240 = vunpack.c.l.b16 %v936
        %v2241 = vunpack.c.l.b16 %v937
        %v2242 = vunpack.c.l.b16 %v938
        %v2243 = vunpack.c.l.b16 %v939
        %v2244 = vunpack.c.l.b16 %v940
        %v2245 = vunpack.c.l.b16 %v941
        %v2246 = vunpack.c.l.b16 %v942
        %v2247 = vunpack.c.l.b16 %v943
        %v2248 = vunpack.c.l.b16 %v944
        %v2249 = vunpack.c.l.b16 %v945
        %v2250 = vunpack.c.l.b16 %v946
        %v2251 = vunpack.c.l.b16 %v947
        %v2252 = vunpack.c.l.b16 %v948
        %v2253 = vunpack.c.l.b16 %v949
        %v2254 = vunpack.c.l.b16 %v950
        %v2255 = vunpack.c.l.b16 %v951
        %v2256 = vunpack.c.l.b16 %v952
        %v2257 = vunpack.c.l.b16 %v953
        %v2258 = vunpack.c.l.b16 %v954
        %v2259 = vunpack.c.l.b16 %v955
        %v2260 = vunpack.c.l.b16 %v956
        %v2261 = vunpack.c.l.b16 %v957
        %v2262 = vunpack.c.l.b16 %v958
        %v2263 = vunpack.c.l.b16 %v959
        %v2264 = vunpack.c.l.b16 %v960
        %v2265 = vunpack.c.l.b16 %v961
        %v2266 = vpack.c.b16 %v1739, %v1738
        %v2267 = vpack.c.b16 %v1741, %v1740
        %v2268 = vpack.c.b16 %v1743, %v1742
        %v2269 = vpack.c.b16 %v1745, %v1744
        %v2270 = vpack.c.b16 %v1747, %v1746
        %v2271 = vpack.c.b16 %v1749, %v1748
        %v2272 = vpack.c.b16 %v1751, %v1750
        %v2273 = vpack.c.b16 %v1753, %v1752
        %v2274 = vpack.c.b16 %v1755, %v1754
        %v2275 = vpack.c.b16 %v1757, %v1756
        %v2276 = vpack.c.b16 %v1759, %v1758
        %v2277 = vpack.c.b16 %v1761, %v1760
        %v2278 = vpack.c.b16 %v1763, %v1762
        %v2279 = vpack.c.b16 %v1765, %v1764
        %v2280 = vpack.c.b16 %v1767, %v1766
        %v2281 = vpack.c.b16 %v1769, %v1768
        %v2282 = vpack.c.b16 %v1771, %v1770
        %v2283 = vpack.c.b16 %v1773, %v1772
        %v2284 = vpack.c.b16 %v1775, %v1774
        %v2285 = vpack.c.b16 %v1777, %v1776
        %v2286 = vpack.c.b16 %v1779, %v1778
        %v2287 = vpack.c.b16 %v1781, %v1780
        %v2288 = vpack.c.b16 %v1783, %v1782
        %v2289 = vpack.c.b16 %v1785, %v1784
        %v2290 = vpack.c.b16 %v1787, %v1786
        %v2291 = vpack.c.b16 %v1789, %v1788
        %v2292 = vpack.c.b16 %v1791, %v1790
        %v2293 = vpack.c.b16 %v1793, %v1792
        %v2294 = vpack.c.b16 %v1795, %v1794
        %v2295 = vpack.c.b16 %v1797, %v1796
        %v2296 = vpack.c.b16 %v1799, %v1798
        %v2297 = vpack.c.b16 %v1801, %v1800
        %v2298 = vpack.c.b16 %v1803, %v1802
        %v2299 = vpack.c.b16 %v1805, %v1804
        %v2300 = vpack.c.b16 %v1807, %v1806
        %v2301 = vpack.c.b16 %v1809, %v1808
        %v2302 = vpack.c.b16 %v1811, %v1810
        %v2303 = vpack.c.b16 %v1813, %v1812
        %v2304 = vpack.c.b16 %v1815, %v1814
        %v2305 = vpack.c.b16 %v1817, %v1816
        %v2306 = vpack.c.b16 %v1819, %v1818
        %v2307 = vpack.c.b16 %v1821, %v1820
        %v2308 = vpack.c.b16 %v1823, %v1822
        %v2309 = vpack.c.b16 %v1825, %v1824
        %v2310 = vpack.c.b16 %v1827, %v1826
        %v2311 = vpack.c.b16 %v1829, %v1828
        %v2312 = vpack.c.b16 %v1831, %v1830
        %v2313 = vpack.c.b16 %v1833, %v1832
        %v2314 = vpack.c.b16 %v1835, %v1834
        %v2315 = vpack.c.b16 %v1837, %v1836
        %v2316 = vpack.c.b16 %v1839, %v1838
        %v2317 = vpack.c.b16 %v1841, %v1840
        %v2318 = vpack.c.b16 %v1843, %v1842
        %v2319 = vpack.c.b16 %v1845, %v1844
        %v2320 = vpack.c.b16 %v1847, %v1846
        %v2321 = vpack.c.b16 %v1849, %v1848
        %v2322 = vpack.c.b16 %v1851, %v1850
        %v2323 = vpack.c.b16 %v1853, %v1852
        %v2324 = vpack.c.b16 %v1855, %v1854
        %v2325 = vpack.c.b16 %v1857, %v1856
        %v2326 = vpack.c.b16 %v1859, %v1858
        %v2327 = vpack.c.b16 %v1861, %v1860
        %v2328 = vpack.c.b16 %v1863, %v1862
        %v2329 = vpack.c.b16 %v1865, %v1864
        %v2330 = vpack.c.b16 %v1867, %v1866
        %v2331 = vpack.c.b16 %v1869, %v1868
        %v2332 = vpack.c.b16 %v1871, %v1870
        %v2333 = vpack.c.b16 %v1873, %v1872
        %v2334 = vpack.c.b16 %v1875, %v1874
        %v2335 = vpack.c.b16 %v1877, %v1876
        %v2336 = vpack.c.b16 %v1879, %v1878
        %v2337 = vpack.c.b16 %v1881, %v1880
        %v2338 = vpack.c.b16 %v1883, %v1882
        %v2339 = vpack.c.b16 %v1885, %v1884
        %v2340 = vpack.c.b16 %v1887, %v1886
        %v2341 = vpack.c.b16 %v1889, %v1888
        %v2342 = vpack.c.b16 %v1891, %v1890
        %v2343 = vpack.c.b16 %v1893, %v1892
        %v2344 = vpack.c.b16 %v1895, %v1894
        %v2345 = vpack.c.b16 %v1897, %v1896
        %v2346 = vpack.c.b16 %v1899, %v1898
        %v2347 = vpack.c.b16 %v1901, %v1900
        %v2348 = vpack.c.b16 %v1903, %v1902
        %v2349 = vpack.c.b16 %v1905, %v1904
        %v2350 = vpack.c.b16 %v1907, %v1906
        %v2351 = vpack.c.b16 %v1909, %v1908
        %v2352 = vpack.c.b16 %v1911, %v1910
        %v2353 = vpack.c.b16 %v1913, %v1912
        %v2354 = vpack.c.b16 %v1915, %v1914
        %v2355 = vpack.c.b16 %v1917, %v1916
        %v2356 = vpack.c.b16 %v1919, %v1918
        %v2357 = vpack.c.b16 %v1921, %v1920
        %v2358 = vpack.c.b16 %v1923, %v1922
        %v2359 = vpack.c.b16 %v1925, %v1924
        %v2360 = vpack.c.b16 %v1927, %v1926
        %v2361 = vpack.c.b16 %v1929, %v1928
        %v2362 = vpack.c.b16 %v1931, %v1930
        %v2363 = vpack.c.b16 %v1933, %v1932
        %v2364 = vpack.c.b16 %v1935, %v1934
        %v2365 = vpack.c.b16 %v1937, %v1936
        %v2366 = vpack.c.b16 %v1939, %v1938
        %v2367 = vpack.c.b16 %v1941, %v1940
        %v2368 = vpack.c.b16 %v1943, %v1942
        %v2369 = vpack.c.b16 %v1945, %v1944
        %v2370 = vpack.c.b16 %v1947, %v1946
        %v2371 = vpack.c.b16 %v1949, %v1948
        %v2372 = vpack.c.b16 %v1951, %v1950
        %v2373 = vpack.c.b16 %v1953, %v1952
        %v2374 = vpack.c.b16 %v1955, %v1954
        %v2375 = vpack.c.b16 %v1957, %v1956
        %v2376 = vpack.c.b16 %v1959, %v1958
        %v2377 = vpack.c.b16 %v1961, %v1960
        %v2378 = vpack.c.b16 %v1963, %v1962
        %v2379 = vpack.c.b16 %v1965, %v1964
        %v2380 = vpack.c.b16 %v1967, %v1966
        %v2381 = vpack.c.b16 %v1969, %v1968
        %v2382 = vpack.c.b16 %v1971, %v1970
        %v2383 = vpack.c.b16 %v1973, %v1972
        %v2384 = vpack.c.b16 %v1975, %v1974
        %v2385 = vpack.c.b16 %v1977, %v1976
        %v2386 = vpack.c.b16 %v1979, %v1978
        %v2387 = vpack.c.b16 %v1981, %v1980
        %v2388 = vpack.c.b16 %v1983, %v1982
        %v2389 = vpack.c.b16 %v1985, %v1984
        %v2390 = vpack.c.b16 %v1987, %v1986
        %v2391 = vpack.c.b16 %v1989, %v1988
        %v2392 = vpack.c.b16 %v1991, %v1990
        %v2393 = vpack.c.b16 %v1993, %v1992
        %v2394 = vpack.c.b16 %v1995, %v1994
        %v2395 = vpack.c.b16 %v1997, %v1996
        %v2396 = vpack.c.b16 %v1999, %v1998
        %v2397 = vpack.c.b16 %v2001, %v2000
        %v2398 = vpack.c.b16 %v2003, %v2002
        %v2399 = vpack.c.b16 %v2005, %v2004
        %v2400 = vpack.c.b16 %v2007, %v2006
        %v2401 = vpack.c.b16 %v2009, %v2008
        %v2402 = vpack.c.b16 %v2011, %v2010
        %v2403 = vpack.c.b16 %v2013, %v2012
        %v2404 = vpack.c.b16 %v2015, %v2014
        %v2405 = vpack.c.b16 %v2017, %v2016
        %v2406 = vpack.c.b16 %v2019, %v2018
        %v2407 = vpack.c.b16 %v2021, %v2020
        %v2408 = vpack.c.b16 %v2023, %v2022
        %v2409 = vpack.c.b16 %v2025, %v2024
        %v2410 = vpack.c.b16 %v2027, %v2026
        %v2411 = vpack.c.b16 %v2029, %v2028
        %v2412 = vpack.c.b16 %v2031, %v2030
        %v2413 = vpack.c.b16 %v2033, %v2032
        %v2414 = vpack.c.b16 %v2035, %v2034
        %v2415 = vpack.c.b16 %v2037, %v2036
        %v2416 = vpack.c.b16 %v2039, %v2038
        %v2417 = vpack.c.b16 %v2041, %v2040
        %v2418 = vpack.c.b16 %v2043, %v2042
        %v2419 = vpack.c.b16 %v2045, %v2044
        %v2420 = vpack.c.b16 %v2047, %v2046
        %v2421 = vpack.c.b16 %v2049, %v2048
        %v2422 = vpack.c.b16 %v2051, %v2050
        %v2423 = vpack.c.b16 %v2053, %v2052
        %v2424 = vpack.c.b16 %v2055, %v2054
        %v2425 = vpack.c.b16 %v2057, %v2056
        %v2426 = vpack.c.b16 %v2059, %v2058
        %v2427 = vpack.c.b16 %v2061, %v2060
        %v2428 = vpack.c.b16 %v2063, %v2062
        %v2429 = vpack.c.b16 %v2065, %v2064
        %v2430 = vpack.c.b16 %v2067, %v2066
        %v2431 = vpack.c.b16 %v2069, %v2068
        %v2432 = vpack.c.b16 %v2071, %v2070
        %v2433 = vpack.c.b16 %v2073, %v2072
        %v2434 = vpack.c.b16 %v2075, %v2074
        %v2435 = vpack.c.b16 %v2077, %v2076
        %v2436 = vpack.c.b16 %v2079, %v2078
        %v2437 = vpack.c.b16 %v2081, %v2080
        %v2438 = vpack.c.b16 %v2083, %v2082
        %v2439 = vpack.c.b16 %v2085, %v2084
        %v2440 = vpack.c.b16 %v2087, %v2086
        %v2441 = vpack.c.b16 %v2089, %v2088
        %v2442 = vpack.c.b16 %v2091, %v2090
        %v2443 = vpack.c.b16 %v2093, %v2092
        %v2444 = vpack.c.b16 %v2095, %v2094
        %v2445 = vpack.c.b16 %v2097, %v2096
        %v2446 = vpack.c.b16 %v2099, %v2098
        %v2447 = vpack.c.b16 %v2101, %v2100
        %v2448 = vpack.c.b16 %v2103, %v2102
        %v2449 = vpack.c.b16 %v2105, %v2104
        %v2450 = vpack.c.b16 %v2107, %v2106
        %v2451 = vpack.c.b16 %v2109, %v2108
        %v2452 = vpack.c.b16 %v2111, %v2110
        %v2453 = vpack.c.b16 %v2113, %v2112
        %v2454 = vpack.c.b16 %v2115, %v2114
        %v2455 = vpack.c.b16 %v2117, %v2116
        %v2456 = vpack.c.b16 %v2119, %v2118
        %v2457 = vpack.c.b16 %v2121, %v2120
        %v2458 = vpack.c.b16 %v2123, %v2122
        %v2459 = vpack.c.b16 %v2125, %v2124
        %v2460 = vpack.c.b16 %v2127, %v2126
        %v2461 = vpack.c.b16 %v2129, %v2128
        %v2462 = vpack.c.b16 %v2131, %v2130
        %v2463 = vpack.c.b16 %v2133, %v2132
        %v2464 = vpack.c.b16 %v2135, %v2134
        %v2465 = vpack.c.b16 %v2137, %v2136
        %v2466 = vpack.c.b16 %v2139, %v2138
        %v2467 = vpack.c.b16 %v2141, %v2140
        %v2468 = vpack.c.b16 %v2143, %v2142
        %v2469 = vpack.c.b16 %v2145, %v2144
        %v2470 = vpack.c.b16 %v2147, %v2146
        %v2471 = vpack.c.b16 %v2149, %v2148
        %v2472 = vpack.c.b16 %v2151, %v2150
        %v2473 = vpack.c.b16 %v2153, %v2152
        %v2474 = vpack.c.b16 %v2155, %v2154
        %v2475 = vpack.c.b16 %v2157, %v2156
        %v2476 = vpack.c.b16 %v2159, %v2158
        %v2477 = vpack.c.b16 %v2161, %v2160
        %v2478 = vpack.c.b16 %v2163, %v2162
        %v2479 = vpack.c.b16 %v2165, %v2164
        %v2480 = vpack.c.b16 %v2167, %v2166
        %v2481 = vpack.c.b16 %v2169, %v2168
        %v2482 = vpack.c.b16 %v2171, %v2170
        %v2483 = vpack.c.b16 %v2173, %v2172
        %v2484 = vpack.c.b16 %v2175, %v2174
        %v2485 = vpack.c.b16 %v2177, %v2176
        %v2486 = vpack.c.b16 %v2179, %v2178
        %v2487 = vpack.c.b16 %v2181, %v2180
        %v2488 = vpack.c.b16 %v2183, %v2182
        %v2489 = vpack.c.b16 %v2185, %v2184
        %v2490 = vpack.c.b16 %v2187, %v2186
        %v2491 = vpack.c.b16 %v2189, %v2188
        %v2492 = vpack.c.b16 %v2191, %v2190
        %v2493 = vpack.c.b16 %v2193, %v2192
        %v2494 = vpack.c.b16 %v2195, %v2194
        %v2495 = vpack.c.b16 %v2197, %v2196
        %v2496 = vpack.c.b16 %v2199, %v2198
        %v2497 = vpack.c.b16 %v2201, %v2200
        %v2498 = vpack.c.b16 %v2203, %v2202
        %v2499 = vpack.c.b16 %v2205, %v2204
        %v2500 = vpack.c.b16 %v2207, %v2206
        %v2501 = vpack.c.b16 %v2209, %v2208
        %v2502 = vpack.c.b16 %v2211, %v2210
        %v2503 = vpack.c.b16 %v2213, %v2212
        %v2504 = vpack.c.b16 %v2215, %v2214
        %v2505 = vpack.c.b16 %v2217, %v2216
        %v2506 = vpack.c.b16 %v2219, %v2218
        %v2507 = vpack.c.b16 %v2221, %v2220
        %v2508 = vpack.c.b16 %v2223, %v2222
        %v2509 = vpack.c.b16 %v2225, %v2224
        %v2510 = vpack.c.b16 %v2227, %v2226
        %v2511 = vpack.c.b16 %v2229, %v2228
        %v2512 = vpack.c.b16 %v2231, %v2230
        %v2513 = vpack.c.b16 %v2233, %v2232
        %v2514 = vpack.c.b16 %v2235, %v2234
        %v2515 = vpack.c.b16 %v2237, %v2236
        %v2516 = vpack.c.b16 %v2239, %v2238
        %v2517 = vpack.c.b16 %v2241, %v2240
        %v2518 = vpack.c.b16 %v2243, %v2242
        %v2519 = vpack.c.b16 %v2245, %v2244
        %v2520 = vpack.c.b16 %v2247, %v2246
        %v2521 = vpack.c.b16 %v2249, %v2248
        %v2522 = vpack.c.b16 %v2251, %v2250
        %v2523 = vpack.c.b16 %v2253, %v2252
        %v2524 = vpack.c.b16 %v2255, %v2254
        %v2525 = vpack.c.b16 %v2257, %v2256
        %v2526 = vpack.c.b16 %v2259, %v2258
        %v2527 = vpack.c.b16 %v2261, %v2260
        %v2528 = vpack.c.b16 %v2263, %v2262
        %v2529 = vpack.c.b16 %v2265, %v2264
        %2794 = vmatprep.subr.bf16.mxu0 0
        %2795 = vmatpush1.bf16.msra.mxu0 %v2266
        %2796 = vmatprep.subr.bf16.mxu0 0
        %2797 = vmatpush1.bf16.msra.mxu0 %v2267
        %2798 = vmatprep.subr.bf16.mxu0 0
        %2799 = vmatpush1.bf16.msra.mxu0 %v2268
        %2800 = vmatprep.subr.bf16.mxu0 0
        %2801 = vmatpush1.bf16.msra.mxu0 %v2269
        %2802 = vmatprep.subr.bf16.mxu0 0
        %2803 = vmatpush1.bf16.msra.mxu0 %v2270
        %2804 = vmatprep.subr.bf16.mxu0 0
        %2805 = vmatpush1.bf16.msra.mxu0 %v2271
        %2806 = vmatprep.subr.bf16.mxu0 0
        %2807 = vmatpush1.bf16.msra.mxu0 %v2272
        %2808 = vmatprep.subr.bf16.mxu0 0
        %2809 = vmatpush1.bf16.msra.mxu0 %v2273
        %2810 = vmatprep.subr.bf16.mxu0 0
        %2811 = vmatpush1.bf16.msra.mxu0 %v2274
        %2812 = vmatprep.subr.bf16.mxu0 0
        %2813 = vmatpush1.bf16.msra.mxu0 %v2275
        %2814 = vmatprep.subr.bf16.mxu0 0
        %2815 = vmatpush1.bf16.msra.mxu0 %v2276
        %2816 = vmatprep.subr.bf16.mxu0 0
        %2817 = vmatpush1.bf16.msra.mxu0 %v2277
        %2818 = vmatprep.subr.bf16.mxu0 0
        %2819 = vmatpush1.bf16.msra.mxu0 %v2278
        %2820 = vmatprep.subr.bf16.mxu0 0
        %2821 = vmatpush1.bf16.msra.mxu0 %v2279
        %2822 = vmatprep.subr.bf16.mxu0 0
        %2823 = vmatpush1.bf16.msra.mxu0 %v2280
        %2824 = vmatprep.subr.bf16.mxu0 0
        %2825 = vmatpush1.bf16.msra.mxu0 %v2281
        %2826 = vmatprep.mubr.bf16.mxu0 %v1004
        %2827 = vmatmul.mubr.bf16.gmra.mrb[0].mxu0 %v990
        %v2828 = vpop.f32.mrb[0].mxu0
        %v2829 = vadd.f32 0.0, %v2828
        %v2830 = vpop.f32.mrb[0].mxu0
        %v2831 = vpop.f32.mrb[0].mxu0
        %v2832 = vpop.f32.mrb[0].mxu0
        %2833 = vdwg.mxu0
        %2834 = vmatprep.subr.bf16.mxu0 0
        %2835 = vmatpush1.bf16.msra.mxu0 %v2282
        %2836 = vmatprep.subr.bf16.mxu0 0
        %2837 = vmatpush1.bf16.msra.mxu0 %v2283
        %2838 = vmatprep.subr.bf16.mxu0 0
        %2839 = vmatpush1.bf16.msra.mxu0 %v2284
        %2840 = vmatprep.subr.bf16.mxu0 0
        %2841 = vmatpush1.bf16.msra.mxu0 %v2285
        %2842 = vmatprep.subr.bf16.mxu0 0
        %2843 = vmatpush1.bf16.msra.mxu0 %v2286
        %2844 = vmatprep.subr.bf16.mxu0 0
        %2845 = vmatpush1.bf16.msra.mxu0 %v2287
        %2846 = vmatprep.subr.bf16.mxu0 0
        %2847 = vmatpush1.bf16.msra.mxu0 %v2288
        %2848 = vmatprep.subr.bf16.mxu0 0
        %2849 = vmatpush1.bf16.msra.mxu0 %v2289
        %2850 = vmatprep.subr.bf16.mxu0 0
        %2851 = vmatpush1.bf16.msra.mxu0 %v2290
        %2852 = vmatprep.subr.bf16.mxu0 0
        %2853 = vmatpush1.bf16.msra.mxu0 %v2291
        %2854 = vmatprep.subr.bf16.mxu0 0
        %2855 = vmatpush1.bf16.msra.mxu0 %v2292
        %2856 = vmatprep.subr.bf16.mxu0 0
        %2857 = vmatpush1.bf16.msra.mxu0 %v2293
        %2858 = vmatprep.subr.bf16.mxu0 0
        %2859 = vmatpush1.bf16.msra.mxu0 %v2294
        %2860 = vmatprep.subr.bf16.mxu0 0
        %2861 = vmatpush1.bf16.msra.mxu0 %v2295
        %2862 = vmatprep.subr.bf16.mxu0 0
        %2863 = vmatpush1.bf16.msra.mxu0 %v2296
        %2864 = vmatprep.subr.bf16.mxu0 0
        %2865 = vmatpush1.bf16.msra.mxu0 %v2297
        %2866 = vmatprep.mubr.bf16.mxu0 %v1014
        %2867 = vmatmul.mubr.bf16.gmra.mrb[0].mxu0 %v1012
        %v2868 = vpop.f32.mrb[0].mxu0
        %v2869 = vadd.f32 %v2829, %v2868
        %v2870 = vpop.f32.mrb[0].mxu0
        %v2871 = vpop.f32.mrb[0].mxu0
        %v2872 = vpop.f32.mrb[0].mxu0
        %2873 = vdwg.mxu0
        %2874 = vmatprep.subr.bf16.mxu0 0
        %2875 = vmatpush1.bf16.msra.mxu0 %v2298
        %2876 = vmatprep.subr.bf16.mxu0 0
        %2877 = vmatpush1.bf16.msra.mxu0 %v2299
        %2878 = vmatprep.subr.bf16.mxu0 0
        %2879 = vmatpush1.bf16.msra.mxu0 %v2300
        %2880 = vmatprep.subr.bf16.mxu0 0
        %2881 = vmatpush1.bf16.msra.mxu0 %v2301
        %2882 = vmatprep.subr.bf16.mxu0 0
        %2883 = vmatpush1.bf16.msra.mxu0 %v2302
        %2884 = vmatprep.subr.bf16.mxu0 0
        %2885 = vmatpush1.bf16.msra.mxu0 %v2303
        %2886 = vmatprep.subr.bf16.mxu0 0
        %2887 = vmatpush1.bf16.msra.mxu0 %v2304
        %2888 = vmatprep.subr.bf16.mxu0 0
        %2889 = vmatpush1.bf16.msra.mxu0 %v2305
        %2890 = vmatprep.subr.bf16.mxu0 0
        %2891 = vmatpush1.bf16.msra.mxu0 %v2306
        %2892 = vmatprep.subr.bf16.mxu0 0
        %2893 = vmatpush1.bf16.msra.mxu0 %v2307
        %2894 = vmatprep.subr.bf16.mxu0 0
        %2895 = vmatpush1.bf16.msra.mxu0 %v2308
        %2896 = vmatprep.subr.bf16.mxu0 0
        %2897 = vmatpush1.bf16.msra.mxu0 %v2309
        %2898 = vmatprep.subr.bf16.mxu0 0
        %2899 = vmatpush1.bf16.msra.mxu0 %v2310
        %2900 = vmatprep.subr.bf16.mxu0 0
        %2901 = vmatpush1.bf16.msra.mxu0 %v2311
        %2902 = vmatprep.subr.bf16.mxu0 0
        %2903 = vmatpush1.bf16.msra.mxu0 %v2312
        %2904 = vmatprep.subr.bf16.mxu0 0
        %2905 = vmatpush1.bf16.msra.mxu0 %v2313
        %2906 = vmatprep.mubr.bf16.mxu0 %v1011
        %2907 = vmatmul.mubr.bf16.gmra.mrb[0].mxu0 %v997
        %v2908 = vpop.f32.mrb[0].mxu0
        %v2909 = vadd.f32 %v2869, %v2908
        %v2910 = vpop.f32.mrb[0].mxu0
        %v2911 = vpop.f32.mrb[0].mxu0
        %v2912 = vpop.f32.mrb[0].mxu0
        %2913 = vdwg.mxu0
        %2914 = vmatprep.subr.bf16.mxu0 0
        %2915 = vmatpush1.bf16.msra.mxu0 %v2314
        %2916 = vmatprep.subr.bf16.mxu0 0
        %2917 = vmatpush1.bf16.msra.mxu0 %v2315
        %2918 = vmatprep.subr.bf16.mxu0 0
        %2919 = vmatpush1.bf16.msra.mxu0 %v2316
        %2920 = vmatprep.subr.bf16.mxu0 0
        %2921 = vmatpush1.bf16.msra.mxu0 %v2317
        %2922 = vmatprep.subr.bf16.mxu0 0
        %2923 = vmatpush1.bf16.msra.mxu0 %v2318
        %2924 = vmatprep.subr.bf16.mxu0 0
        %2925 = vmatpush1.bf16.msra.mxu0 %v2319
        %2926 = vmatprep.subr.bf16.mxu0 0
        %2927 = vmatpush1.bf16.msra.mxu0 %v2320
        %2928 = vmatprep.subr.bf16.mxu0 0
        %2929 = vmatpush1.bf16.msra.mxu0 %v2321
        %2930 = vmatprep.subr.bf16.mxu0 0
        %2931 = vmatpush1.bf16.msra.mxu0 %v2322
        %2932 = vmatprep.subr.bf16.mxu0 0
        %2933 = vmatpush1.bf16.msra.mxu0 %v2323
        %2934 = vmatprep.subr.bf16.mxu0 0
        %2935 = vmatpush1.bf16.msra.mxu0 %v2324
        %2936 = vmatprep.subr.bf16.mxu0 0
        %2937 = vmatpush1.bf16.msra.mxu0 %v2325
        %2938 = vmatprep.subr.bf16.mxu0 0
        %2939 = vmatpush1.bf16.msra.mxu0 %v2326
        %2940 = vmatprep.subr.bf16.mxu0 0
        %2941 = vmatpush1.bf16.msra.mxu0 %v2327
        %2942 = vmatprep.subr.bf16.mxu0 0
        %2943 = vmatpush1.bf16.msra.mxu0 %v2328
        %2944 = vmatprep.subr.bf16.mxu0 0
        %2945 = vmatpush1.bf16.msra.mxu0 %v2329
        %2946 = vmatprep.mubr.bf16.mxu0 %v1015
        %2947 = vmatmul.mubr.bf16.gmra.mrb[0].mxu0 %v1013
        %v2948 = vpop.f32.mrb[0].mxu0
        %v2949 = vadd.f32 %v2909, %v2948
        %v2950 = vpop.f32.mrb[0].mxu0
        %v2951 = vpop.f32.mrb[0].mxu0
        %v2952 = vpop.f32.mrb[0].mxu0
        %2953 = vdwg.mxu0
        %2954 = vmatprep.subr.bf16.mxu0 0
        %2955 = vmatpush1.bf16.msra.mxu0 %v2330
        %2956 = vmatprep.subr.bf16.mxu0 0
        %2957 = vmatpush1.bf16.msra.mxu0 %v2331
        %2958 = vmatprep.subr.bf16.mxu0 0
        %2959 = vmatpush1.bf16.msra.mxu0 %v2332
        %2960 = vmatprep.subr.bf16.mxu0 0
        %2961 = vmatpush1.bf16.msra.mxu0 %v2333
        %2962 = vmatprep.subr.bf16.mxu0 0
        %2963 = vmatpush1.bf16.msra.mxu0 %v2334
        %2964 = vmatprep.subr.bf16.mxu0 0
        %2965 = vmatpush1.bf16.msra.mxu0 %v2335
        %2966 = vmatprep.subr.bf16.mxu0 0
        %2967 = vmatpush1.bf16.msra.mxu0 %v2336
        %2968 = vmatprep.subr.bf16.mxu0 0
        %2969 = vmatpush1.bf16.msra.mxu0 %v2337
        %2970 = vmatprep.subr.bf16.mxu0 0
        %2971 = vmatpush1.bf16.msra.mxu0 %v2338
        %2972 = vmatprep.subr.bf16.mxu0 0
        %2973 = vmatpush1.bf16.msra.mxu0 %v2339
        %2974 = vmatprep.subr.bf16.mxu0 0
        %2975 = vmatpush1.bf16.msra.mxu0 %v2340
        %2976 = vmatprep.subr.bf16.mxu0 0
        %2977 = vmatpush1.bf16.msra.mxu0 %v2341
        %2978 = vmatprep.subr.bf16.mxu0 0
        %2979 = vmatpush1.bf16.msra.mxu0 %v2342
        %2980 = vmatprep.subr.bf16.mxu0 0
        %2981 = vmatpush1.bf16.msra.mxu0 %v2343
        %2982 = vmatprep.subr.bf16.mxu0 0
        %2983 = vmatpush1.bf16.msra.mxu0 %v2344
        %2984 = vmatprep.subr.bf16.mxu0 0
        %2985 = vmatpush1.bf16.msra.mxu0 %v2345
        %2986 = vmatprep.mubr.bf16.mxu0 %v1053
        %2987 = vmatmul.mubr.bf16.gmra.mrb[0].mxu0 %v1039
        %v2988 = vpop.f32.mrb[0].mxu0
        %v2989 = vadd.f32 %v2949, %v2988
        %v2990 = vpop.f32.mrb[0].mxu0
        %v2991 = vpop.f32.mrb[0].mxu0
        %v2992 = vpop.f32.mrb[0].mxu0
        %2993 = vdwg.mxu0
        %2994 = vmatprep.subr.bf16.mxu0 0
        %2995 = vmatpush1.bf16.msra.mxu0 %v2346
        %2996 = vmatprep.subr.bf16.mxu0 0
        %2997 = vmatpush1.bf16.msra.mxu0 %v2347
        %2998 = vmatprep.subr.bf16.mxu0 0
        %2999 = vmatpush1.bf16.msra.mxu0 %v2348
        %3000 = vmatprep.subr.bf16.mxu0 0
        %3001 = vmatpush1.bf16.msra.mxu0 %v2349
        %3002 = vmatprep.subr.bf16.mxu0 0
        %3003 = vmatpush1.bf16.msra.mxu0 %v2350
        %3004 = vmatprep.subr.bf16.mxu0 0
        %3005 = vmatpush1.bf16.msra.mxu0 %v2351
        %3006 = vmatprep.subr.bf16.mxu0 0
        %3007 = vmatpush1.bf16.msra.mxu0 %v2352
        %3008 = vmatprep.subr.bf16.mxu0 0
        %3009 = vmatpush1.bf16.msra.mxu0 %v2353
        %3010 = vmatprep.subr.bf16.mxu0 0
        %3011 = vmatpush1.bf16.msra.mxu0 %v2354
        %3012 = vmatprep.subr.bf16.mxu0 0
        %3013 = vmatpush1.bf16.msra.mxu0 %v2355
        %3014 = vmatprep.subr.bf16.mxu0 0
        %3015 = vmatpush1.bf16.msra.mxu0 %v2356
        %3016 = vmatprep.subr.bf16.mxu0 0
        %3017 = vmatpush1.bf16.msra.mxu0 %v2357
        %3018 = vmatprep.subr.bf16.mxu0 0
        %3019 = vmatpush1.bf16.msra.mxu0 %v2358
        %3020 = vmatprep.subr.bf16.mxu0 0
        %3021 = vmatpush1.bf16.msra.mxu0 %v2359
        %3022 = vmatprep.subr.bf16.mxu0 0
        %3023 = vmatpush1.bf16.msra.mxu0 %v2360
        %3024 = vmatprep.subr.bf16.mxu0 0
        %3025 = vmatpush1.bf16.msra.mxu0 %v2361
        %3026 = vmatprep.mubr.bf16.mxu0 %v1063
        %3027 = vmatmul.mubr.bf16.gmra.mrb[0].mxu0 %v1061
        %v3028 = vpop.f32.mrb[0].mxu0
        %v3029 = vadd.f32 %v2989, %v3028
        %v3030 = vpop.f32.mrb[0].mxu0
        %v3031 = vpop.f32.mrb[0].mxu0
        %v3032 = vpop.f32.mrb[0].mxu0
        %3033 = vdwg.mxu0
        %3034 = vmatprep.subr.bf16.mxu0 0
        %3035 = vmatpush1.bf16.msra.mxu0 %v2362
        %3036 = vmatprep.subr.bf16.mxu0 0
        %3037 = vmatpush1.bf16.msra.mxu0 %v2363
        %3038 = vmatprep.subr.bf16.mxu0 0
        %3039 = vmatpush1.bf16.msra.mxu0 %v2364
        %3040 = vmatprep.subr.bf16.mxu0 0
        %3041 = vmatpush1.bf16.msra.mxu0 %v2365
        %3042 = vmatprep.subr.bf16.mxu0 0
        %3043 = vmatpush1.bf16.msra.mxu0 %v2366
        %3044 = vmatprep.subr.bf16.mxu0 0
        %3045 = vmatpush1.bf16.msra.mxu0 %v2367
        %3046 = vmatprep.subr.bf16.mxu0 0
        %3047 = vmatpush1.bf16.msra.mxu0 %v2368
        %3048 = vmatprep.subr.bf16.mxu0 0
        %3049 = vmatpush1.bf16.msra.mxu0 %v2369
        %3050 = vmatprep.subr.bf16.mxu0 0
        %3051 = vmatpush1.bf16.msra.mxu0 %v2370
        %3052 = vmatprep.subr.bf16.mxu0 0
        %3053 = vmatpush1.bf16.msra.mxu0 %v2371
        %3054 = vmatprep.subr.bf16.mxu0 0
        %3055 = vmatpush1.bf16.msra.mxu0 %v2372
        %3056 = vmatprep.subr.bf16.mxu0 0
        %3057 = vmatpush1.bf16.msra.mxu0 %v2373
        %3058 = vmatprep.subr.bf16.mxu0 0
        %3059 = vmatpush1.bf16.msra.mxu0 %v2374
        %3060 = vmatprep.subr.bf16.mxu0 0
        %3061 = vmatpush1.bf16.msra.mxu0 %v2375
        %3062 = vmatprep.subr.bf16.mxu0 0
        %3063 = vmatpush1.bf16.msra.mxu0 %v2376
        %3064 = vmatprep.subr.bf16.mxu0 0
        %3065 = vmatpush1.bf16.msra.mxu0 %v2377
        %3066 = vmatprep.mubr.bf16.mxu0 %v1060
        %3067 = vmatmul.mubr.bf16.gmra.mrb[0].mxu0 %v1046
        %v3068 = vpop.f32.mrb[0].mxu0
        %v3069 = vadd.f32 %v3029, %v3068
        %v3070 = vpop.f32.mrb[0].mxu0
        %v3071 = vpop.f32.mrb[0].mxu0
        %v3072 = vpop.f32.mrb[0].mxu0
        %3073 = vdwg.mxu0
        %3074 = vmatprep.subr.bf16.mxu0 0
        %3075 = vmatpush1.bf16.msra.mxu0 %v2378
        %3076 = vmatprep.subr.bf16.mxu0 0
        %3077 = vmatpush1.bf16.msra.mxu0 %v2379
        %3078 = vmatprep.subr.bf16.mxu0 0
        %3079 = vmatpush1.bf16.msra.mxu0 %v2380
        %3080 = vmatprep.subr.bf16.mxu0 0
        %3081 = vmatpush1.bf16.msra.mxu0 %v2381
        %3082 = vmatprep.subr.bf16.mxu0 0
        %3083 = vmatpush1.bf16.msra.mxu0 %v2382
        %3084 = vmatprep.subr.bf16.mxu0 0
        %3085 = vmatpush1.bf16.msra.mxu0 %v2383
        %3086 = vmatprep.subr.bf16.mxu0 0
        %3087 = vmatpush1.bf16.msra.mxu0 %v2384
        %3088 = vmatprep.subr.bf16.mxu0 0
        %3089 = vmatpush1.bf16.msra.mxu0 %v2385
        %3090 = vmatprep.subr.bf16.mxu0 0
        %3091 = vmatpush1.bf16.msra.mxu0 %v2386
        %3092 = vmatprep.subr.bf16.mxu0 0
        %3093 = vmatpush1.bf16.msra.mxu0 %v2387
        %3094 = vmatprep.subr.bf16.mxu0 0
        %3095 = vmatpush1.bf16.msra.mxu0 %v2388
        %3096 = vmatprep.subr.bf16.mxu0 0
        %3097 = vmatpush1.bf16.msra.mxu0 %v2389
        %3098 = vmatprep.subr.bf16.mxu0 0
        %3099 = vmatpush1.bf16.msra.mxu0 %v2390
        %3100 = vmatprep.subr.bf16.mxu0 0
        %3101 = vmatpush1.bf16.msra.mxu0 %v2391
        %3102 = vmatprep.subr.bf16.mxu0 0
        %3103 = vmatpush1.bf16.msra.mxu0 %v2392
        %3104 = vmatprep.subr.bf16.mxu0 0
        %3105 = vmatpush1.bf16.msra.mxu0 %v2393
        %3106 = vmatprep.mubr.bf16.mxu0 %v1064
        %3107 = vmatmul.mubr.bf16.gmra.mrb[0].mxu0 %v1062
        %v3108 = vpop.f32.mrb[0].mxu0
        %v3109 = vadd.f32 %v3069, %v3108
        %v3110 = vpop.f32.mrb[0].mxu0
        %v3111 = vpop.f32.mrb[0].mxu0
        %v3112 = vpop.f32.mrb[0].mxu0
        %3113 = vdwg.mxu0
        %3114 = vmatprep.subr.bf16.mxu0 0
        %3115 = vmatpush1.bf16.msra.mxu0 %v2394
        %3116 = vmatprep.subr.bf16.mxu0 0
        %3117 = vmatpush1.bf16.msra.mxu0 %v2395
        %3118 = vmatprep.subr.bf16.mxu0 0
        %3119 = vmatpush1.bf16.msra.mxu0 %v2396
        %3120 = vmatprep.subr.bf16.mxu0 0
        %3121 = vmatpush1.bf16.msra.mxu0 %v2397
        %3122 = vmatprep.subr.bf16.mxu0 0
        %3123 = vmatpush1.bf16.msra.mxu0 %v2398
        %3124 = vmatprep.subr.bf16.mxu0 0
        %3125 = vmatpush1.bf16.msra.mxu0 %v2399
        %3126 = vmatprep.subr.bf16.mxu0 0
        %3127 = vmatpush1.bf16.msra.mxu0 %v2400
        %3128 = vmatprep.subr.bf16.mxu0 0
        %3129 = vmatpush1.bf16.msra.mxu0 %v2401
        %3130 = vmatprep.subr.bf16.mxu0 0
        %3131 = vmatpush1.bf16.msra.mxu0 %v2402
        %3132 = vmatprep.subr.bf16.mxu0 0
        %3133 = vmatpush1.bf16.msra.mxu0 %v2403
        %3134 = vmatprep.subr.bf16.mxu0 0
        %3135 = vmatpush1.bf16.msra.mxu0 %v2404
        %3136 = vmatprep.subr.bf16.mxu0 0
        %3137 = vmatpush1.bf16.msra.mxu0 %v2405
        %3138 = vmatprep.subr.bf16.mxu0 0
        %3139 = vmatpush1.bf16.msra.mxu0 %v2406
        %3140 = vmatprep.subr.bf16.mxu0 0
        %3141 = vmatpush1.bf16.msra.mxu0 %v2407
        %3142 = vmatprep.subr.bf16.mxu0 0
        %3143 = vmatpush1.bf16.msra.mxu0 %v2408
        %3144 = vmatprep.subr.bf16.mxu0 0
        %3145 = vmatpush1.bf16.msra.mxu0 %v2409
        %3146 = vmatprep.mubr.bf16.mxu0 %v1102
        %3147 = vmatmul.mubr.bf16.gmra.mrb[0].mxu0 %v1088
        %v3148 = vpop.f32.mrb[0].mxu0
        %v3149 = vadd.f32 %v3109, %v3148
        %v3150 = vpop.f32.mrb[0].mxu0
        %v3151 = vpop.f32.mrb[0].mxu0
        %v3152 = vpop.f32.mrb[0].mxu0
        %3153 = vdwg.mxu0
        %3154 = vmatprep.subr.bf16.mxu0 0
        %3155 = vmatpush1.bf16.msra.mxu0 %v2410
        %3156 = vmatprep.subr.bf16.mxu0 0
        %3157 = vmatpush1.bf16.msra.mxu0 %v2411
        %3158 = vmatprep.subr.bf16.mxu0 0
        %3159 = vmatpush1.bf16.msra.mxu0 %v2412
        %3160 = vmatprep.subr.bf16.mxu0 0
        %3161 = vmatpush1.bf16.msra.mxu0 %v2413
        %3162 = vmatprep.subr.bf16.mxu0 0
        %3163 = vmatpush1.bf16.msra.mxu0 %v2414
        %3164 = vmatprep.subr.bf16.mxu0 0
        %3165 = vmatpush1.bf16.msra.mxu0 %v2415
        %3166 = vmatprep.subr.bf16.mxu0 0
        %3167 = vmatpush1.bf16.msra.mxu0 %v2416
        %3168 = vmatprep.subr.bf16.mxu0 0
        %3169 = vmatpush1.bf16.msra.mxu0 %v2417
        %3170 = vmatprep.subr.bf16.mxu0 0
        %3171 = vmatpush1.bf16.msra.mxu0 %v2418
        %3172 = vmatprep.subr.bf16.mxu0 0
        %3173 = vmatpush1.bf16.msra.mxu0 %v2419
        %3174 = vmatprep.subr.bf16.mxu0 0
        %3175 = vmatpush1.bf16.msra.mxu0 %v2420
        %3176 = vmatprep.subr.bf16.mxu0 0
        %3177 = vmatpush1.bf16.msra.mxu0 %v2421
        %3178 = vmatprep.subr.bf16.mxu0 0
        %3179 = vmatpush1.bf16.msra.mxu0 %v2422
        %3180 = vmatprep.subr.bf16.mxu0 0
        %3181 = vmatpush1.bf16.msra.mxu0 %v2423
        %3182 = vmatprep.subr.bf16.mxu0 0
        %3183 = vmatpush1.bf16.msra.mxu0 %v2424
        %3184 = vmatprep.subr.bf16.mxu0 0
        %3185 = vmatpush1.bf16.msra.mxu0 %v2425
        %3186 = vmatprep.mubr.bf16.mxu0 %v1112
        %3187 = vmatmul.mubr.bf16.gmra.mrb[0].mxu0 %v1110
        %v3188 = vpop.f32.mrb[0].mxu0
        %v3189 = vadd.f32 %v3149, %v3188
        %v3190 = vpop.f32.mrb[0].mxu0
        %v3191 = vpop.f32.mrb[0].mxu0
        %v3192 = vpop.f32.mrb[0].mxu0
        %3193 = vdwg.mxu0
        %3194 = vmatprep.subr.bf16.mxu0 0
        %3195 = vmatpush1.bf16.msra.mxu0 %v2426
        %3196 = vmatprep.subr.bf16.mxu0 0
        %3197 = vmatpush1.bf16.msra.mxu0 %v2427
        %3198 = vmatprep.subr.bf16.mxu0 0
        %3199 = vmatpush1.bf16.msra.mxu0 %v2428
        %3200 = vmatprep.subr.bf16.mxu0 0
        %3201 = vmatpush1.bf16.msra.mxu0 %v2429
        %3202 = vmatprep.subr.bf16.mxu0 0
        %3203 = vmatpush1.bf16.msra.mxu0 %v2430
        %3204 = vmatprep.subr.bf16.mxu0 0
        %3205 = vmatpush1.bf16.msra.mxu0 %v2431
        %3206 = vmatprep.subr.bf16.mxu0 0
        %3207 = vmatpush1.bf16.msra.mxu0 %v2432
        %3208 = vmatprep.subr.bf16.mxu0 0
        %3209 = vmatpush1.bf16.msra.mxu0 %v2433
        %3210 = vmatprep.subr.bf16.mxu0 0
        %3211 = vmatpush1.bf16.msra.mxu0 %v2434
        %3212 = vmatprep.subr.bf16.mxu0 0
        %3213 = vmatpush1.bf16.msra.mxu0 %v2435
        %3214 = vmatprep.subr.bf16.mxu0 0
        %3215 = vmatpush1.bf16.msra.mxu0 %v2436
        %3216 = vmatprep.subr.bf16.mxu0 0
        %3217 = vmatpush1.bf16.msra.mxu0 %v2437
        %3218 = vmatprep.subr.bf16.mxu0 0
        %3219 = vmatpush1.bf16.msra.mxu0 %v2438
        %3220 = vmatprep.subr.bf16.mxu0 0
        %3221 = vmatpush1.bf16.msra.mxu0 %v2439
        %3222 = vmatprep.subr.bf16.mxu0 0
        %3223 = vmatpush1.bf16.msra.mxu0 %v2440
        %3224 = vmatprep.subr.bf16.mxu0 0
        %3225 = vmatpush1.bf16.msra.mxu0 %v2441
        %3226 = vmatprep.mubr.bf16.mxu0 %v1109
        %3227 = vmatmul.mubr.bf16.gmra.mrb[0].mxu0 %v1095
        %v3228 = vpop.f32.mrb[0].mxu0
        %v3229 = vadd.f32 %v3189, %v3228
        %v3230 = vpop.f32.mrb[0].mxu0
        %v3231 = vpop.f32.mrb[0].mxu0
        %v3232 = vpop.f32.mrb[0].mxu0
        %3233 = vdwg.mxu0
        %3234 = vmatprep.subr.bf16.mxu0 0
        %3235 = vmatpush1.bf16.msra.mxu0 %v2442
        %3236 = vmatprep.subr.bf16.mxu0 0
        %3237 = vmatpush1.bf16.msra.mxu0 %v2443
        %3238 = vmatprep.subr.bf16.mxu0 0
        %3239 = vmatpush1.bf16.msra.mxu0 %v2444
        %3240 = vmatprep.subr.bf16.mxu0 0
        %3241 = vmatpush1.bf16.msra.mxu0 %v2445
        %3242 = vmatprep.subr.bf16.mxu0 0
        %3243 = vmatpush1.bf16.msra.mxu0 %v2446
        %3244 = vmatprep.subr.bf16.mxu0 0
        %3245 = vmatpush1.bf16.msra.mxu0 %v2447
        %3246 = vmatprep.subr.bf16.mxu0 0
        %3247 = vmatpush1.bf16.msra.mxu0 %v2448
        %3248 = vmatprep.subr.bf16.mxu0 0
        %3249 = vmatpush1.bf16.msra.mxu0 %v2449
        %3250 = vmatprep.subr.bf16.mxu0 0
        %3251 = vmatpush1.bf16.msra.mxu0 %v2450
        %3252 = vmatprep.subr.bf16.mxu0 0
        %3253 = vmatpush1.bf16.msra.mxu0 %v2451
        %3254 = vmatprep.subr.bf16.mxu0 0
        %3255 = vmatpush1.bf16.msra.mxu0 %v2452
        %3256 = vmatprep.subr.bf16.mxu0 0
        %3257 = vmatpush1.bf16.msra.mxu0 %v2453
        %3258 = vmatprep.subr.bf16.mxu0 0
        %3259 = vmatpush1.bf16.msra.mxu0 %v2454
        %3260 = vmatprep.subr.bf16.mxu0 0
        %3261 = vmatpush1.bf16.msra.mxu0 %v2455
        %3262 = vmatprep.subr.bf16.mxu0 0
        %3263 = vmatpush1.bf16.msra.mxu0 %v2456
        %3264 = vmatprep.subr.bf16.mxu0 0
        %3265 = vmatpush1.bf16.msra.mxu0 %v2457
        %3266 = vmatprep.mubr.bf16.mxu0 %v1113
        %3267 = vmatmul.mubr.bf16.gmra.mrb[0].mxu0 %v1111
        %v3268 = vpop.f32.mrb[0].mxu0
        %v3269 = vadd.f32 %v3229, %v3268
        %v3270 = vpop.f32.mrb[0].mxu0
        %v3271 = vpop.f32.mrb[0].mxu0
        %v3272 = vpop.f32.mrb[0].mxu0
        %3273 = vdwg.mxu0
        %3274 = vmatprep.subr.bf16.mxu0 0
        %3275 = vmatpush1.bf16.msra.mxu0 %v2458
        %3276 = vmatprep.subr.bf16.mxu0 0
        %3277 = vmatpush1.bf16.msra.mxu0 %v2459
        %3278 = vmatprep.subr.bf16.mxu0 0
        %3279 = vmatpush1.bf16.msra.mxu0 %v2460
        %3280 = vmatprep.subr.bf16.mxu0 0
        %3281 = vmatpush1.bf16.msra.mxu0 %v2461
        %3282 = vmatprep.subr.bf16.mxu0 0
        %3283 = vmatpush1.bf16.msra.mxu0 %v2462
        %3284 = vmatprep.subr.bf16.mxu0 0
        %3285 = vmatpush1.bf16.msra.mxu0 %v2463
        %3286 = vmatprep.subr.bf16.mxu0 0
        %3287 = vmatpush1.bf16.msra.mxu0 %v2464
        %3288 = vmatprep.subr.bf16.mxu0 0
        %3289 = vmatpush1.bf16.msra.mxu0 %v2465
        %3290 = vmatprep.subr.bf16.mxu0 0
        %3291 = vmatpush1.bf16.msra.mxu0 %v2466
        %3292 = vmatprep.subr.bf16.mxu0 0
        %3293 = vmatpush1.bf16.msra.mxu0 %v2467
        %3294 = vmatprep.subr.bf16.mxu0 0
        %3295 = vmatpush1.bf16.msra.mxu0 %v2468
        %3296 = vmatprep.subr.bf16.mxu0 0
        %3297 = vmatpush1.bf16.msra.mxu0 %v2469
        %3298 = vmatprep.subr.bf16.mxu0 0
        %3299 = vmatpush1.bf16.msra.mxu0 %v2470
        %3300 = vmatprep.subr.bf16.mxu0 0
        %3301 = vmatpush1.bf16.msra.mxu0 %v2471
        %3302 = vmatprep.subr.bf16.mxu0 0
        %3303 = vmatpush1.bf16.msra.mxu0 %v2472
        %3304 = vmatprep.subr.bf16.mxu0 0
        %3305 = vmatpush1.bf16.msra.mxu0 %v2473
        %3306 = vmatprep.mubr.bf16.mxu0 %v1151
        %3307 = vmatmul.mubr.bf16.gmra.mrb[0].mxu0 %v1137
        %v3308 = vpop.f32.mrb[0].mxu0
        %v3309 = vadd.f32 %v3269, %v3308
        %v3310 = vpop.f32.mrb[0].mxu0
        %v3311 = vpop.f32.mrb[0].mxu0
        %v3312 = vpop.f32.mrb[0].mxu0
        %3313 = vdwg.mxu0
        %3314 = vmatprep.subr.bf16.mxu0 0
        %3315 = vmatpush1.bf16.msra.mxu0 %v2474
        %3316 = vmatprep.subr.bf16.mxu0 0
        %3317 = vmatpush1.bf16.msra.mxu0 %v2475
        %3318 = vmatprep.subr.bf16.mxu0 0
        %3319 = vmatpush1.bf16.msra.mxu0 %v2476
        %3320 = vmatprep.subr.bf16.mxu0 0
        %3321 = vmatpush1.bf16.msra.mxu0 %v2477
        %3322 = vmatprep.subr.bf16.mxu0 0
        %3323 = vmatpush1.bf16.msra.mxu0 %v2478
        %3324 = vmatprep.subr.bf16.mxu0 0
        %3325 = vmatpush1.bf16.msra.mxu0 %v2479
        %3326 = vmatprep.subr.bf16.mxu0 0
        %3327 = vmatpush1.bf16.msra.mxu0 %v2480
        %3328 = vmatprep.subr.bf16.mxu0 0
        %3329 = vmatpush1.bf16.msra.mxu0 %v2481
        %3330 = vmatprep.subr.bf16.mxu0 0
        %3331 = vmatpush1.bf16.msra.mxu0 %v2482
        %3332 = vmatprep.subr.bf16.mxu0 0
        %3333 = vmatpush1.bf16.msra.mxu0 %v2483
        %3334 = vmatprep.subr.bf16.mxu0 0
        %3335 = vmatpush1.bf16.msra.mxu0 %v2484
        %3336 = vmatprep.subr.bf16.mxu0 0
        %3337 = vmatpush1.bf16.msra.mxu0 %v2485
        %3338 = vmatprep.subr.bf16.mxu0 0
        %3339 = vmatpush1.bf16.msra.mxu0 %v2486
        %3340 = vmatprep.subr.bf16.mxu0 0
        %3341 = vmatpush1.bf16.msra.mxu0 %v2487
        %3342 = vmatprep.subr.bf16.mxu0 0
        %3343 = vmatpush1.bf16.msra.mxu0 %v2488
        %3344 = vmatprep.subr.bf16.mxu0 0
        %3345 = vmatpush1.bf16.msra.mxu0 %v2489
        %3346 = vmatprep.mubr.bf16.mxu0 %v1161
        %3347 = vmatmul.mubr.bf16.gmra.mrb[0].mxu0 %v1159
        %v3348 = vpop.f32.mrb[0].mxu0
        %v3349 = vadd.f32 %v3309, %v3348
        %v3350 = vpop.f32.mrb[0].mxu0
        %v3351 = vpop.f32.mrb[0].mxu0
        %v3352 = vpop.f32.mrb[0].mxu0
        %3353 = vdwg.mxu0
        %3354 = vmatprep.subr.bf16.mxu0 0
        %3355 = vmatpush1.bf16.msra.mxu0 %v2490
        %3356 = vmatprep.subr.bf16.mxu0 0
        %3357 = vmatpush1.bf16.msra.mxu0 %v2491
        %3358 = vmatprep.subr.bf16.mxu0 0
        %3359 = vmatpush1.bf16.msra.mxu0 %v2492
        %3360 = vmatprep.subr.bf16.mxu0 0
        %3361 = vmatpush1.bf16.msra.mxu0 %v2493
        %3362 = vmatprep.subr.bf16.mxu0 0
        %3363 = vmatpush1.bf16.msra.mxu0 %v2494
        %3364 = vmatprep.subr.bf16.mxu0 0
        %3365 = vmatpush1.bf16.msra.mxu0 %v2495
        %3366 = vmatprep.subr.bf16.mxu0 0
        %3367 = vmatpush1.bf16.msra.mxu0 %v2496
        %3368 = vmatprep.subr.bf16.mxu0 0
        %3369 = vmatpush1.bf16.msra.mxu0 %v2497
        %3370 = vmatprep.subr.bf16.mxu0 0
        %3371 = vmatpush1.bf16.msra.mxu0 %v2498
        %3372 = vmatprep.subr.bf16.mxu0 0
        %3373 = vmatpush1.bf16.msra.mxu0 %v2499
        %3374 = vmatprep.subr.bf16.mxu0 0
        %3375 = vmatpush1.bf16.msra.mxu0 %v2500
        %3376 = vmatprep.subr.bf16.mxu0 0
        %3377 = vmatpush1.bf16.msra.mxu0 %v2501
        %3378 = vmatprep.subr.bf16.mxu0 0
        %3379 = vmatpush1.bf16.msra.mxu0 %v2502
        %3380 = vmatprep.subr.bf16.mxu0 0
        %3381 = vmatpush1.bf16.msra.mxu0 %v2503
        %3382 = vmatprep.subr.bf16.mxu0 0
        %3383 = vmatpush1.bf16.msra.mxu0 %v2504
        %3384 = vmatprep.subr.bf16.mxu0 0
        %3385 = vmatpush1.bf16.msra.mxu0 %v2505
        %3386 = vmatprep.mubr.bf16.mxu0 %v1158
        %3387 = vmatmul.mubr.bf16.gmra.mrb[0].mxu0 %v1144
        %v3388 = vpop.f32.mrb[0].mxu0
        %v3389 = vadd.f32 %v3349, %v3388
        %v3390 = vpop.f32.mrb[0].mxu0
        %v3391 = vpop.f32.mrb[0].mxu0
        %v3392 = vpop.f32.mrb[0].mxu0
        %3393 = vdwg.mxu0
        %3394 = vmatprep.subr.bf16.mxu0 0
        %3395 = vmatpush1.bf16.msra.mxu0 %v2506
        %3396 = vmatprep.subr.bf16.mxu0 0
        %3397 = vmatpush1.bf16.msra.mxu0 %v2507
        %3398 = vmatprep.subr.bf16.mxu0 0
        %3399 = vmatpush1.bf16.msra.mxu0 %v2508
        %3400 = vmatprep.subr.bf16.mxu0 0
        %3401 = vmatpush1.bf16.msra.mxu0 %v2509
        %3402 = vmatprep.subr.bf16.mxu0 0
        %3403 = vmatpush1.bf16.msra.mxu0 %v2510
        %3404 = vmatprep.subr.bf16.mxu0 0
        %3405 = vmatpush1.bf16.msra.mxu0 %v2511
        %3406 = vmatprep.subr.bf16.mxu0 0
        %3407 = vmatpush1.bf16.msra.mxu0 %v2512
        %3408 = vmatprep.subr.bf16.mxu0 0
        %3409 = vmatpush1.bf16.msra.mxu0 %v2513
        %3410 = vmatprep.subr.bf16.mxu0 0
        %3411 = vmatpush1.bf16.msra.mxu0 %v2514
        %3412 = vmatprep.subr.bf16.mxu0 0
        %3413 = vmatpush1.bf16.msra.mxu0 %v2515
        %3414 = vmatprep.subr.bf16.mxu0 0
        %3415 = vmatpush1.bf16.msra.mxu0 %v2516
        %3416 = vmatprep.subr.bf16.mxu0 0
        %3417 = vmatpush1.bf16.msra.mxu0 %v2517
        %3418 = vmatprep.subr.bf16.mxu0 0
        %3419 = vmatpush1.bf16.msra.mxu0 %v2518
        %3420 = vmatprep.subr.bf16.mxu0 0
        %3421 = vmatpush1.bf16.msra.mxu0 %v2519
        %3422 = vmatprep.subr.bf16.mxu0 0
        %3423 = vmatpush1.bf16.msra.mxu0 %v2520
        %3424 = vmatprep.subr.bf16.mxu0 0
        %3425 = vmatpush1.bf16.msra.mxu0 %v2521
        %3426 = vmatprep.mubr.bf16.mxu0 %v1162
        %3427 = vmatmul.mubr.bf16.gmra.mrb[0].mxu0 %v1160
        %v3428 = vpop.f32.mrb[0].mxu0
        %v3429 = vadd.f32 %v3389, %v3428
        %v3430 = vpop.f32.mrb[0].mxu0
        %v3431 = vpop.f32.mrb[0].mxu0
        %v3432 = vpop.f32.mrb[0].mxu0
        %3433 = vdwg.mxu0
        %3434 = vmatprep.subr.bf16.mxu0 0
        %3435 = vmatpush1.bf16.msra.mxu0 %v2522
        %3436 = vmatprep.subr.bf16.mxu0 0
        %3437 = vmatpush1.bf16.msra.mxu0 %v2523
        %3438 = vmatprep.subr.bf16.mxu0 0
        %3439 = vmatpush1.bf16.msra.mxu0 %v2524
        %3440 = vmatprep.subr.bf16.mxu0 0
        %3441 = vmatpush1.bf16.msra.mxu0 %v2525
        %3442 = vmatprep.subr.bf16.mxu0 0
        %3443 = vmatpush1.bf16.msra.mxu0 %v2526
        %3444 = vmatprep.subr.bf16.mxu0 0
        %3445 = vmatpush1.bf16.msra.mxu0 %v2527
        %3446 = vmatprep.subr.bf16.mxu0 0
        %3447 = vmatpush1.bf16.msra.mxu0 %v2528
        %3448 = vmatprep.subr.bf16.mxu0 0
        %3449 = vmatpush1.bf16.msra.mxu0 %v2529
        %3450 = vmatprep.subr.bf16.mxu0 0
        %3451 = vmatpush1.bf16.msra.mxu0 0
        %3452 = vmatprep.subr.bf16.mxu0 0
        %3453 = vmatpush1.bf16.msra.mxu0 0
        %3454 = vmatprep.subr.bf16.mxu0 0
        %3455 = vmatpush1.bf16.msra.mxu0 0
        %3456 = vmatprep.subr.bf16.mxu0 0
        %3457 = vmatpush1.bf16.msra.mxu0 0
        %3458 = vmatprep.subr.bf16.mxu0 0
        %3459 = vmatpush1.bf16.msra.mxu0 0
        %3460 = vmatprep.subr.bf16.mxu0 0
        %3461 = vmatpush1.bf16.msra.mxu0 0
        %3462 = vmatprep.subr.bf16.mxu0 0
        %3463 = vmatpush1.bf16.msra.mxu0 0
        %3464 = vmatprep.subr.bf16.mxu0 0
        %3465 = vmatpush1.bf16.msra.mxu0 0
        %3466 = vmatprep.mubr.bf16.mxu0 0
        %3467 = vmatmul.mubr.bf16.gmra.mrb[0].mxu0 %v1176
        %v3468 = vpop.f32.mrb[0].mxu0
        %v3469 = vadd.f32 %v3429, %v3468
        %v3470 = vpop.f32.mrb[0].mxu0
        %v3471 = vpop.f32.mrb[0].mxu0
        %v3472 = vpop.f32.mrb[0].mxu0
        %3473 = vdwg.mxu0
        %v3474 = vadd.f32 %v428, %v3469
        %3475 = vst [vmem:[#allocation2] sm:$0x3] %v3474
        %p3476 = scmp.eq.s32.totalorder %s27, 3
        // Predicated region
        $region85: #{two_input_net_forward.3} parent=55 // pred_check
          %p3477 = pneg %p3476
        $region86: #{two_input_net_forward.3} parent=55 // pred_check_branch
          %3479 = sbr.rel (%p3477) target = $region88
        $region87: #{two_input_net_forward.3} parent=55 // pred_region
          %v3480 = vld [vmem:[#allocation2] sm:$0x3]
          %v3481 = vld [vmem:[#allocation6] sm:$0x1]
          %v3483 = vlaneseq
          %v3484 = vshrl.u32 %v3483, 7
          %v3485 = vsub.s32 0, %v3484
          %v3486 = vrot.slane %v3481, %v3485
          %v3488 = vadd.f32 %v3480, %v3486
          %v3489 = vld [vmem:[#allocation8] sm:$0x3]
          %v3490 = vld [vmem:[%s4] sm:$0xff]
          %v3491 = vld [vmem:[%s4 + $0x8] sm:$0xff]
          %v3492 = vld [vmem:[%s4 + $0x10] sm:$0xff]
          %v3493 = vld [vmem:[%s4 + $0x18] sm:$0x3f]
          %v3494 = vld [vmem:[#allocation9] sm:$0x1]
          %v3496 = vlaneseq
          %v3497 = vshrl.u32 %v3496, 7
          %v3498 = vsub.s32 0, %v3497
          %v3499 = vrot.slane %v3494, %v3498
          %vm3501 = vcmask 244736
          %v3503 = vsel %vm3501, %v3489, 0
          %vm3505 = vcmask 1045504
          %v3507 = vsel %vm3505, %v3493, 0
          %3509 = vmatprep.subr.mxu0 0.0
          %3510 = vmatpush1.msra.mxu0 %v3490
          %3511 = vmatprep.subr.mxu0 0.0
          %3512 = vmatpush1.msra.mxu0 %v3491
          %3513 = vmatprep.subr.mxu0 0.0
          %3514 = vmatpush1.msra.mxu0 %v3492
          %3515 = vmatprep.subr.mxu0 0.0
          %3516 = vmatpush1.msra.mxu0 %v3507
          %3517 = vmatprep.subr.mxu0 0.0
          %3518 = vmatpush1.msra.mxu0 0.0
          %3519 = vmatprep.subr.mxu0 0.0
          %3520 = vmatpush1.msra.mxu0 0.0
          %3521 = vmatprep.subr.mxu0 0.0
          %3522 = vmatpush1.msra.mxu0 0.0
          %3523 = vmatprep.subr.mxu0 0.0
          %3524 = vmatpush1.msra.mxu0 0.0
          %3525 = vmatprep.subr.mxu0 0.0
          %3526 = vmatpush1.msra.mxu0 0.0
          %3527 = vmatprep.subr.mxu0 0.0
          %3528 = vmatpush1.msra.mxu0 0.0
          %3529 = vmatprep.subr.mxu0 0.0
          %3530 = vmatpush1.msra.mxu0 0.0
          %3531 = vmatprep.subr.mxu0 0.0
          %3532 = vmatpush1.msra.mxu0 0.0
          %3533 = vmatprep.subr.mxu0 0.0
          %3534 = vmatpush1.msra.mxu0 0.0
          %3535 = vmatprep.subr.mxu0 0.0
          %3536 = vmatpush1.msra.mxu0 0.0
          %3537 = vmatprep.subr.mxu0 0.0
          %3538 = vmatpush1.msra.mxu0 0.0
          %3539 = vmatprep.subr.mxu0 0.0
          %3540 = vmatpush1.msra.mxu0 0.0
          %3541 = vmatprep.subr.mxu0 0.0
          %3542 = vmatpush1.msra.mxu0 0.0
          %3543 = vmatprep.subr.mxu0 0.0
          %3544 = vmatpush1.msra.mxu0 0.0
          %3545 = vmatprep.subr.mxu0 0.0
          %3546 = vmatpush1.msra.mxu0 0.0
          %3547 = vmatprep.subr.mxu0 0.0
          %3548 = vmatpush1.msra.mxu0 0.0
          %3549 = vmatprep.subr.mxu0 0.0
          %3550 = vmatpush1.msra.mxu0 0.0
          %3551 = vmatprep.subr.mxu0 0.0
          %3552 = vmatpush1.msra.mxu0 0.0
          %3553 = vmatprep.subr.mxu0 0.0
          %3554 = vmatpush1.msra.mxu0 0.0
          %3555 = vmatprep.subr.mxu0 0.0
          %3556 = vmatpush1.msra.mxu0 0.0
          %3557 = vmatprep.subr.mxu0 0.0
          %3558 = vmatpush1.msra.mxu0 0.0
          %3559 = vmatprep.subr.mxu0 0.0
          %3560 = vmatpush1.msra.mxu0 0.0
          %3561 = vmatprep.subr.mxu0 0.0
          %3562 = vmatpush1.msra.mxu0 0.0
          %3563 = vmatprep.subr.mxu0 0.0
          %3564 = vmatpush1.msra.mxu0 0.0
          %3565 = vmatprep.subr.mxu0 0.0
          %3566 = vmatpush1.msra.mxu0 0.0
          %3567 = vmatprep.subr.mxu0 0.0
          %3568 = vmatpush1.msra.mxu0 0.0
          %3569 = vmatprep.subr.mxu0 0.0
          %3570 = vmatpush1.msra.mxu0 0.0
          %3571 = vmatprep.subr.mxu0 0.0
          %3572 = vmatpush1.msra.mxu0 0.0
          %3573 = vmatprep.mubr.f32.mxu0 0.0
          %3574 = vmatmul.mubr.f32.gmra.mrb[0].mxu0 %v3503
          %v3575 = vpop.f32.mrb[0].mxu0
          %v3576 = vadd.f32 %v3499, %v3575
          %v3577 = vpop.f32.mrb[0].mxu0
          %3578 = vdwg.mxu0
          %vm3579 = vcmp.gt.f32.partialorder %v3576, 0.0
          %v3580 = vmin.f32 %v3576, 0.0
          %v3581 = vmul.f32 %v3580, 1.442695
          %v3582 = vpow.pop %v3581
          %v3583 = vsub.f32 %v3582, 1.0
          %v3584 = vsel %vm3579, %v3576, %v3583
          %v3585 = vpack.c.bf16 %v3488, %v3488
          %v3586 = vld [vmem:[%s6] sm:$0xff]
          %v3587 = vld [vmem:[%s6 + $0x8] sm:$0xff]
          %v3588 = vld [vmem:[%s6 + $0x10] sm:$0xff]
          %v3589 = vld [vmem:[%s6 + $0x18] sm:$0xff]
          %v3590 = vld [vmem:[%s6 + $0x20] sm:$0xff]
          %v3591 = vld [vmem:[%s6 + $0x28] sm:$0xff]
          %v3592 = vld [vmem:[%s6 + $0x30] sm:$0xff]
          %v3593 = vld [vmem:[%s6 + $0x38] sm:$0xff]
          %v3594 = vld [vmem:[%s6 + $0x40] sm:$0xff]
          %v3595 = vld [vmem:[%s6 + $0x48] sm:$0xff]
          %v3596 = vld [vmem:[%s6 + $0x50] sm:$0xff]
          %v3597 = vld [vmem:[%s6 + $0x58] sm:$0xff]
          %v3598 = vld [vmem:[%s6 + $0x60] sm:$0xff]
          %v3599 = vld [vmem:[%s6 + $0x68] sm:$0xff]
          %v3600 = vld [vmem:[%s6 + $0x70] sm:$0xff]
          %v3601 = vld [vmem:[%s6 + $0x78] sm:$0xff]
          %v3602 = vld [vmem:[%s6 + $0x80] sm:$0xff]
          %v3603 = vld [vmem:[%s6 + $0x88] sm:$0xff]
          %v3604 = vld [vmem:[%s6 + $0x90] sm:$0xff]
          %v3605 = vld [vmem:[%s6 + $0x98] sm:$0xff]
          %v3606 = vld [vmem:[%s6 + $0xa0] sm:$0xff]
          %v3607 = vld [vmem:[%s6 + $0xa8] sm:$0xff]
          %v3608 = vld [vmem:[%s6 + $0xb0] sm:$0xff]
          %v3609 = vld [vmem:[%s6 + $0xb8] sm:$0xff]
          %v3610 = vld [vmem:[%s6 + $0xc0] sm:$0xff]
          %v3611 = vld [vmem:[%s6 + $0xc8] sm:$0xff]
          %v3612 = vld [vmem:[%s6 + $0xd0] sm:$0xff]
          %v3613 = vld [vmem:[%s6 + $0xd8] sm:$0xff]
          %v3614 = vld [vmem:[%s6 + $0xe0] sm:$0xff]
          %v3615 = vld [vmem:[%s6 + $0xe8] sm:$0xff]
          %v3616 = vld [vmem:[%s6 + $0xf0] sm:$0xff]
          %v3617 = vld [vmem:[%s6 + $0xf8] sm:$0xff]
          %v3618 = vld [vmem:[%s6 + $0x100] sm:$0xff]
          %v3619 = vld [vmem:[%s6 + $0x108] sm:$0xff]
          %v3620 = vld [vmem:[%s6 + $0x110] sm:$0xff]
          %v3621 = vld [vmem:[%s6 + $0x118] sm:$0xff]
          %v3622 = vld [vmem:[%s6 + $0x120] sm:$0xff]
          %v3623 = vld [vmem:[%s6 + $0x128] sm:$0xff]
          %v3624 = vld [vmem:[%s6 + $0x130] sm:$0xff]
          %v3625 = vld [vmem:[%s6 + $0x138] sm:$0xff]
          %v3626 = vld [vmem:[%s6 + $0x140] sm:$0xff]
          %v3627 = vld [vmem:[%s6 + $0x148] sm:$0xff]
          %v3628 = vld [vmem:[%s6 + $0x150] sm:$0xff]
          %v3629 = vld [vmem:[%s6 + $0x158] sm:$0xff]
          %v3630 = vld [vmem:[%s6 + $0x160] sm:$0xff]
          %v3631 = vld [vmem:[%s6 + $0x168] sm:$0xff]
          %v3632 = vld [vmem:[%s6 + $0x170] sm:$0xff]
          %v3633 = vld [vmem:[%s6 + $0x178] sm:$0xff]
          %v3634 = vld [vmem:[%s6 + $0x180] sm:$0xff]
          %v3635 = vld [vmem:[%s6 + $0x188] sm:$0xff]
          %v3636 = vld [vmem:[%s6 + $0x190] sm:$0xff]
          %v3637 = vld [vmem:[%s6 + $0x198] sm:$0xff]
          %v3638 = vld [vmem:[%s6 + $0x1a0] sm:$0xff]
          %v3639 = vld [vmem:[%s6 + $0x1a8] sm:$0xff]
          %v3640 = vld [vmem:[%s6 + $0x1b0] sm:$0xff]
          %v3641 = vld [vmem:[%s6 + $0x1b8] sm:$0xff]
          %v3642 = vld [vmem:[%s6 + $0x1c0] sm:$0xff]
          %v3643 = vld [vmem:[%s6 + $0x1c8] sm:$0xff]
          %v3644 = vld [vmem:[%s6 + $0x1d0] sm:$0xff]
          %v3645 = vld [vmem:[%s6 + $0x1d8] sm:$0xff]
          %v3646 = vld [vmem:[%s6 + $0x1e0] sm:$0xff]
          %v3647 = vld [vmem:[%s6 + $0x1e8] sm:$0xff]
          %v3648 = vld [vmem:[%s6 + $0x1f0] sm:$0xff]
          %v3649 = vld [vmem:[%s6 + $0x1f8] sm:$0xff]
          %v3650 = vpack.c.bf16 %v3584, %v3584
          %v3651 = vld [vmem:[#allocation11] sm:$0xff]
          %v3652 = vld [vmem:[#allocation11 + $0x8] sm:$0xff]
          %v3653 = vld [vmem:[#allocation11 + $0x10] sm:$0xff]
          %v3654 = vld [vmem:[#allocation11 + $0x18] sm:$0xff]
          %v3659 = vunpack.c.l.b16 %v3651
          %v3660 = vunpack.c.h.b16 %v3651
          %v3661 = vunpack.c.l.b16 %v3652
          %v3662 = vunpack.c.h.b16 %v3652
          %v3663 = vunpack.c.l.b16 %v3653
          %v3664 = vunpack.c.h.b16 %v3653
          %v3665 = vunpack.c.l.b16 %v3654
          %v3666 = vunpack.c.h.b16 %v3654
          %v3667 = vpack.c.b16 %v3659, %v3659
          %v3668 = vpack.c.b16 %v3660, %v3660
          %v3669 = vpack.c.b16 %v3661, %v3661
          %v3670 = vpack.c.b16 %v3662, %v3662
          %v3671 = vpack.c.b16 %v3663, %v3663
          %v3672 = vpack.c.b16 %v3664, %v3664
          %v3673 = vpack.c.b16 %v3665, %v3665
          %v3674 = vpack.c.b16 %v3666, %v3666
          %vm3675 = vcmask 64512
          %v3677 = vsel %vm3675, %v3650, 0
          %vm3679 = vcmask 1043456
          %v3681 = vsel %vm3679, %v3667, 0
          %v3684 = vsel %vm3679, %v3668, 0
          %v3687 = vsel %vm3679, %v3669, 0
          %v3690 = vsel %vm3679, %v3670, 0
          %v3693 = vsel %vm3679, %v3671, 0
          %v3696 = vsel %vm3679, %v3672, 0
          %v3699 = vsel %vm3679, %v3673, 0
          %v3702 = vsel %vm3679, %v3674, 0
          %3704 = vmatprep.subr.bf16.mxu0 %v3684
          %3705 = vmatpush1.bf16.msra.mxu0 %v3681
          %3706 = vmatprep.subr.bf16.mxu0 0
          %3707 = vmatpush1.bf16.msra.mxu0 0
          %3708 = vmatprep.subr.bf16.mxu0 0
          %3709 = vmatpush1.bf16.msra.mxu0 0
          %3710 = vmatprep.subr.bf16.mxu0 0
          %3711 = vmatpush1.bf16.msra.mxu0 0
          %3712 = vmatprep.subr.bf16.mxu0 0
          %3713 = vmatpush1.bf16.msra.mxu0 0
          %3714 = vmatprep.subr.bf16.mxu0 0
          %3715 = vmatpush1.bf16.msra.mxu0 0
          %3716 = vmatprep.subr.bf16.mxu0 0
          %3717 = vmatpush1.bf16.msra.mxu0 0
          %3718 = vmatprep.subr.bf16.mxu0 0
          %3719 = vmatpush1.bf16.msra.mxu0 0
          %3720 = vmatprep.subr.bf16.mxu0 0
          %3721 = vmatpush1.bf16.msra.mxu0 0
          %3722 = vmatprep.subr.bf16.mxu0 0
          %3723 = vmatpush1.bf16.msra.mxu0 0
          %3724 = vmatprep.subr.bf16.mxu0 0
          %3725 = vmatpush1.bf16.msra.mxu0 0
          %3726 = vmatprep.subr.bf16.mxu0 0
          %3727 = vmatpush1.bf16.msra.mxu0 0
          %3728 = vmatprep.subr.bf16.mxu0 0
          %3729 = vmatpush1.bf16.msra.mxu0 0
          %3730 = vmatprep.subr.bf16.mxu0 0
          %3731 = vmatpush1.bf16.msra.mxu0 0
          %3732 = vmatprep.subr.bf16.mxu0 0
          %3733 = vmatpush1.bf16.msra.mxu0 0
          %3734 = vmatprep.subr.bf16.mxu0 0
          %3735 = vmatpush1.bf16.msra.mxu0 0
          %3736 = vmatprep.mubr.bf16.mxu0 0
          %3737 = vmatmul.mubr.bf16.gmra.mrb[0].mxu0 %v3677
          %v3738 = vpop.f32.mrb[0].mxu0
          %v3739 = vadd.f32 0.0, %v3738
          %v3740 = vpop.f32.mrb[0].mxu0
          %v3741 = vadd.f32 0.0, %v3740
          %v3742 = vpop.f32.mrb[0].mxu0
          %v3743 = vpop.f32.mrb[0].mxu0
          %3744 = vdwg.mxu0
          %3745 = vmatprep.subr.bf16.mxu0 %v3690
          %3746 = vmatpush1.bf16.msra.mxu0 %v3687
          %3747 = vmatprep.subr.bf16.mxu0 0
          %3748 = vmatpush1.bf16.msra.mxu0 0
          %3749 = vmatprep.subr.bf16.mxu0 0
          %3750 = vmatpush1.bf16.msra.mxu0 0
          %3751 = vmatprep.subr.bf16.mxu0 0
          %3752 = vmatpush1.bf16.msra.mxu0 0
          %3753 = vmatprep.subr.bf16.mxu0 0
          %3754 = vmatpush1.bf16.msra.mxu0 0
          %3755 = vmatprep.subr.bf16.mxu0 0
          %3756 = vmatpush1.bf16.msra.mxu0 0
          %3757 = vmatprep.subr.bf16.mxu0 0
          %3758 = vmatpush1.bf16.msra.mxu0 0
          %3759 = vmatprep.subr.bf16.mxu0 0
          %3760 = vmatpush1.bf16.msra.mxu0 0
          %3761 = vmatprep.subr.bf16.mxu0 0
          %3762 = vmatpush1.bf16.msra.mxu0 0
          %3763 = vmatprep.subr.bf16.mxu0 0
          %3764 = vmatpush1.bf16.msra.mxu0 0
          %3765 = vmatprep.subr.bf16.mxu0 0
          %3766 = vmatpush1.bf16.msra.mxu0 0
          %3767 = vmatprep.subr.bf16.mxu0 0
          %3768 = vmatpush1.bf16.msra.mxu0 0
          %3769 = vmatprep.subr.bf16.mxu0 0
          %3770 = vmatpush1.bf16.msra.mxu0 0
          %3771 = vmatprep.subr.bf16.mxu0 0
          %3772 = vmatpush1.bf16.msra.mxu0 0
          %3773 = vmatprep.subr.bf16.mxu0 0
          %3774 = vmatpush1.bf16.msra.mxu0 0
          %3775 = vmatprep.subr.bf16.mxu0 0
          %3776 = vmatpush1.bf16.msra.mxu0 0
          %3777 = vmatprep.mubr.bf16.mxu0 0
          %3778 = vmatmul.mubr.bf16.gmra.mrb[0].mxu0 %v3677
          %v3779 = vpop.f32.mrb[0].mxu0
          %v3780 = vadd.f32 0.0, %v3779
          %v3781 = vpop.f32.mrb[0].mxu0
          %v3782 = vadd.f32 0.0, %v3781
          %v3783 = vpop.f32.mrb[0].mxu0
          %v3784 = vpop.f32.mrb[0].mxu0
          %3785 = vdwg.mxu0
          %3786 = vmatprep.subr.bf16.mxu0 %v3696
          %3787 = vmatpush1.bf16.msra.mxu0 %v3693
          %3788 = vmatprep.subr.bf16.mxu0 0
          %3789 = vmatpush1.bf16.msra.mxu0 0
          %3790 = vmatprep.subr.bf16.mxu0 0
          %3791 = vmatpush1.bf16.msra.mxu0 0
          %3792 = vmatprep.subr.bf16.mxu0 0
          %3793 = vmatpush1.bf16.msra.mxu0 0
          %3794 = vmatprep.subr.bf16.mxu0 0
          %3795 = vmatpush1.bf16.msra.mxu0 0
          %3796 = vmatprep.subr.bf16.mxu0 0
          %3797 = vmatpush1.bf16.msra.mxu0 0
          %3798 = vmatprep.subr.bf16.mxu0 0
          %3799 = vmatpush1.bf16.msra.mxu0 0
          %3800 = vmatprep.subr.bf16.mxu0 0
          %3801 = vmatpush1.bf16.msra.mxu0 0
          %3802 = vmatprep.subr.bf16.mxu0 0
          %3803 = vmatpush1.bf16.msra.mxu0 0
          %3804 = vmatprep.subr.bf16.mxu0 0
          %3805 = vmatpush1.bf16.msra.mxu0 0
          %3806 = vmatprep.subr.bf16.mxu0 0
          %3807 = vmatpush1.bf16.msra.mxu0 0
          %3808 = vmatprep.subr.bf16.mxu0 0
          %3809 = vmatpush1.bf16.msra.mxu0 0
          %3810 = vmatprep.subr.bf16.mxu0 0
          %3811 = vmatpush1.bf16.msra.mxu0 0
          %3812 = vmatprep.subr.bf16.mxu0 0
          %3813 = vmatpush1.bf16.msra.mxu0 0
          %3814 = vmatprep.subr.bf16.mxu0 0
          %3815 = vmatpush1.bf16.msra.mxu0 0
          %3816 = vmatprep.subr.bf16.mxu0 0
          %3817 = vmatpush1.bf16.msra.mxu0 0
          %3818 = vmatprep.mubr.bf16.mxu0 0
          %3819 = vmatmul.mubr.bf16.gmra.mrb[0].mxu0 %v3677
          %v3820 = vpop.f32.mrb[0].mxu0
          %v3821 = vadd.f32 0.0, %v3820
          %v3822 = vpop.f32.mrb[0].mxu0
          %v3823 = vadd.f32 0.0, %v3822
          %v3824 = vpop.f32.mrb[0].mxu0
          %v3825 = vpop.f32.mrb[0].mxu0
          %3826 = vdwg.mxu0
          %3827 = vmatprep.subr.bf16.mxu0 %v3702
          %3828 = vmatpush1.bf16.msra.mxu0 %v3699
          %3829 = vmatprep.subr.bf16.mxu0 0
          %3830 = vmatpush1.bf16.msra.mxu0 0
          %3831 = vmatprep.subr.bf16.mxu0 0
          %3832 = vmatpush1.bf16.msra.mxu0 0
          %3833 = vmatprep.subr.bf16.mxu0 0
          %3834 = vmatpush1.bf16.msra.mxu0 0
          %3835 = vmatprep.subr.bf16.mxu0 0
          %3836 = vmatpush1.bf16.msra.mxu0 0
          %3837 = vmatprep.subr.bf16.mxu0 0
          %3838 = vmatpush1.bf16.msra.mxu0 0
          %3839 = vmatprep.subr.bf16.mxu0 0
          %3840 = vmatpush1.bf16.msra.mxu0 0
          %3841 = vmatprep.subr.bf16.mxu0 0
          %3842 = vmatpush1.bf16.msra.mxu0 0
          %3843 = vmatprep.subr.bf16.mxu0 0
          %3844 = vmatpush1.bf16.msra.mxu0 0
          %3845 = vmatprep.subr.bf16.mxu0 0
          %3846 = vmatpush1.bf16.msra.mxu0 0
          %3847 = vmatprep.subr.bf16.mxu0 0
          %3848 = vmatpush1.bf16.msra.mxu0 0
          %3849 = vmatprep.subr.bf16.mxu0 0
          %3850 = vmatpush1.bf16.msra.mxu0 0
          %3851 = vmatprep.subr.bf16.mxu0 0
          %3852 = vmatpush1.bf16.msra.mxu0 0
          %3853 = vmatprep.subr.bf16.mxu0 0
          %3854 = vmatpush1.bf16.msra.mxu0 0
          %3855 = vmatprep.subr.bf16.mxu0 0
          %3856 = vmatpush1.bf16.msra.mxu0 0
          %3857 = vmatprep.subr.bf16.mxu0 0
          %3858 = vmatpush1.bf16.msra.mxu0 0
          %3859 = vmatprep.mubr.bf16.mxu0 0
          %3860 = vmatmul.mubr.bf16.gmra.mrb[0].mxu0 %v3677
          %v3861 = vpop.f32.mrb[0].mxu0
          %v3862 = vadd.f32 0.0, %v3861
          %v3863 = vpop.f32.mrb[0].mxu0
          %v3864 = vadd.f32 0.0, %v3863
          %v3865 = vpop.f32.mrb[0].mxu0
          %v3866 = vpop.f32.mrb[0].mxu0
          %3867 = vdwg.mxu0
          %v3932 = vunpack.c.l.b16 %v3586
          %v3933 = vunpack.c.h.b16 %v3586
          %v3934 = vunpack.c.l.b16 %v3587
          %v3935 = vunpack.c.h.b16 %v3587
          %v3936 = vunpack.c.l.b16 %v3588
          %v3937 = vunpack.c.h.b16 %v3588
          %v3938 = vunpack.c.l.b16 %v3589
          %v3939 = vunpack.c.h.b16 %v3589
          %v3940 = vunpack.c.l.b16 %v3590
          %v3941 = vunpack.c.h.b16 %v3590
          %v3942 = vunpack.c.l.b16 %v3591
          %v3943 = vunpack.c.h.b16 %v3591
          %v3944 = vunpack.c.l.b16 %v3592
          %v3945 = vunpack.c.h.b16 %v3592
          %v3946 = vunpack.c.l.b16 %v3593
          %v3947 = vunpack.c.h.b16 %v3593
          %v3948 = vunpack.c.l.b16 %v3594
          %v3949 = vunpack.c.h.b16 %v3594
          %v3950 = vunpack.c.l.b16 %v3595
          %v3951 = vunpack.c.h.b16 %v3595
          %v3952 = vunpack.c.l.b16 %v3596
          %v3953 = vunpack.c.h.b16 %v3596
          %v3954 = vunpack.c.l.b16 %v3597
          %v3955 = vunpack.c.h.b16 %v3597
          %v3956 = vunpack.c.l.b16 %v3598
          %v3957 = vunpack.c.h.b16 %v3598
          %v3958 = vunpack.c.l.b16 %v3599
          %v3959 = vunpack.c.h.b16 %v3599
          %v3960 = vunpack.c.l.b16 %v3600
          %v3961 = vunpack.c.h.b16 %v3600
          %v3962 = vunpack.c.l.b16 %v3601
          %v3963 = vunpack.c.h.b16 %v3601
          %v3964 = vunpack.c.l.b16 %v3602
          %v3965 = vunpack.c.h.b16 %v3602
          %v3966 = vunpack.c.l.b16 %v3603
          %v3967 = vunpack.c.h.b16 %v3603
          %v3968 = vunpack.c.l.b16 %v3604
          %v3969 = vunpack.c.h.b16 %v3604
          %v3970 = vunpack.c.l.b16 %v3605
          %v3971 = vunpack.c.h.b16 %v3605
          %v3972 = vunpack.c.l.b16 %v3606
          %v3973 = vunpack.c.h.b16 %v3606
          %v3974 = vunpack.c.l.b16 %v3607
          %v3975 = vunpack.c.h.b16 %v3607
          %v3976 = vunpack.c.l.b16 %v3608
          %v3977 = vunpack.c.h.b16 %v3608
          %v3978 = vunpack.c.l.b16 %v3609
          %v3979 = vunpack.c.h.b16 %v3609
          %v3980 = vunpack.c.l.b16 %v3610
          %v3981 = vunpack.c.h.b16 %v3610
          %v3982 = vunpack.c.l.b16 %v3611
          %v3983 = vunpack.c.h.b16 %v3611
          %v3984 = vunpack.c.l.b16 %v3612
          %v3985 = vunpack.c.h.b16 %v3612
          %v3986 = vunpack.c.l.b16 %v3613
          %v3987 = vunpack.c.h.b16 %v3613
          %v3988 = vunpack.c.l.b16 %v3614
          %v3989 = vunpack.c.h.b16 %v3614
          %v3990 = vunpack.c.l.b16 %v3615
          %v3991 = vunpack.c.h.b16 %v3615
          %v3992 = vunpack.c.l.b16 %v3616
          %v3993 = vunpack.c.h.b16 %v3616
          %v3994 = vunpack.c.l.b16 %v3617
          %v3995 = vunpack.c.h.b16 %v3617
          %v3996 = vunpack.c.l.b16 %v3618
          %v3997 = vunpack.c.h.b16 %v3618
          %v3998 = vunpack.c.l.b16 %v3619
          %v3999 = vunpack.c.h.b16 %v3619
          %v4000 = vunpack.c.l.b16 %v3620
          %v4001 = vunpack.c.h.b16 %v3620
          %v4002 = vunpack.c.l.b16 %v3621
          %v4003 = vunpack.c.h.b16 %v3621
          %v4004 = vunpack.c.l.b16 %v3622
          %v4005 = vunpack.c.h.b16 %v3622
          %v4006 = vunpack.c.l.b16 %v3623
          %v4007 = vunpack.c.h.b16 %v3623
          %v4008 = vunpack.c.l.b16 %v3624
          %v4009 = vunpack.c.h.b16 %v3624
          %v4010 = vunpack.c.l.b16 %v3625
          %v4011 = vunpack.c.h.b16 %v3625
          %v4012 = vunpack.c.l.b16 %v3626
          %v4013 = vunpack.c.h.b16 %v3626
          %v4014 = vunpack.c.l.b16 %v3627
          %v4015 = vunpack.c.h.b16 %v3627
          %v4016 = vunpack.c.l.b16 %v3628
          %v4017 = vunpack.c.h.b16 %v3628
          %v4018 = vunpack.c.l.b16 %v3629
          %v4019 = vunpack.c.h.b16 %v3629
          %v4020 = vunpack.c.l.b16 %v3630
          %v4021 = vunpack.c.h.b16 %v3630
          %v4022 = vunpack.c.l.b16 %v3631
          %v4023 = vunpack.c.h.b16 %v3631
          %v4024 = vunpack.c.l.b16 %v3632
          %v4025 = vunpack.c.h.b16 %v3632
          %v4026 = vunpack.c.l.b16 %v3633
          %v4027 = vunpack.c.h.b16 %v3633
          %v4028 = vunpack.c.l.b16 %v3634
          %v4029 = vunpack.c.h.b16 %v3634
          %v4030 = vunpack.c.l.b16 %v3635
          %v4031 = vunpack.c.h.b16 %v3635
          %v4032 = vunpack.c.l.b16 %v3636
          %v4033 = vunpack.c.h.b16 %v3636
          %v4034 = vunpack.c.l.b16 %v3637
          %v4035 = vunpack.c.h.b16 %v3637
          %v4036 = vunpack.c.l.b16 %v3638
          %v4037 = vunpack.c.h.b16 %v3638
          %v4038 = vunpack.c.l.b16 %v3639
          %v4039 = vunpack.c.h.b16 %v3639
          %v4040 = vunpack.c.l.b16 %v3640
          %v4041 = vunpack.c.h.b16 %v3640
          %v4042 = vunpack.c.l.b16 %v3641
          %v4043 = vunpack.c.h.b16 %v3641
          %v4044 = vunpack.c.l.b16 %v3642
          %v4045 = vunpack.c.h.b16 %v3642
          %v4046 = vunpack.c.l.b16 %v3643
          %v4047 = vunpack.c.h.b16 %v3643
          %v4048 = vunpack.c.l.b16 %v3644
          %v4049 = vunpack.c.h.b16 %v3644
          %v4050 = vunpack.c.l.b16 %v3645
          %v4051 = vunpack.c.h.b16 %v3645
          %v4052 = vunpack.c.l.b16 %v3646
          %v4053 = vunpack.c.h.b16 %v3646
          %v4054 = vunpack.c.l.b16 %v3647
          %v4055 = vunpack.c.h.b16 %v3647
          %v4056 = vunpack.c.l.b16 %v3648
          %v4057 = vunpack.c.h.b16 %v3648
          %v4058 = vunpack.c.l.b16 %v3649
          %v4059 = vunpack.c.h.b16 %v3649
          %v4060 = vpack.c.b16 %v3940, %v3932
          %v4061 = vpack.c.b16 %v3941, %v3933
          %v4062 = vpack.c.b16 %v3942, %v3934
          %v4063 = vpack.c.b16 %v3943, %v3935
          %v4064 = vpack.c.b16 %v3944, %v3936
          %v4065 = vpack.c.b16 %v3945, %v3937
          %v4066 = vpack.c.b16 %v3946, %v3938
          %v4067 = vpack.c.b16 %v3947, %v3939
          %v4068 = vpack.c.b16 %v3956, %v3948
          %v4069 = vpack.c.b16 %v3957, %v3949
          %v4070 = vpack.c.b16 %v3958, %v3950
          %v4071 = vpack.c.b16 %v3959, %v3951
          %v4072 = vpack.c.b16 %v3960, %v3952
          %v4073 = vpack.c.b16 %v3961, %v3953
          %v4074 = vpack.c.b16 %v3962, %v3954
          %v4075 = vpack.c.b16 %v3963, %v3955
          %v4076 = vpack.c.b16 %v3972, %v3964
          %v4077 = vpack.c.b16 %v3973, %v3965
          %v4078 = vpack.c.b16 %v3974, %v3966
          %v4079 = vpack.c.b16 %v3975, %v3967
          %v4080 = vpack.c.b16 %v3976, %v3968
          %v4081 = vpack.c.b16 %v3977, %v3969
          %v4082 = vpack.c.b16 %v3978, %v3970
          %v4083 = vpack.c.b16 %v3979, %v3971
          %v4084 = vpack.c.b16 %v3988, %v3980
          %v4085 = vpack.c.b16 %v3989, %v3981
          %v4086 = vpack.c.b16 %v3990, %v3982
          %v4087 = vpack.c.b16 %v3991, %v3983
          %v4088 = vpack.c.b16 %v3992, %v3984
          %v4089 = vpack.c.b16 %v3993, %v3985
          %v4090 = vpack.c.b16 %v3994, %v3986
          %v4091 = vpack.c.b16 %v3995, %v3987
          %v4092 = vpack.c.b16 %v4004, %v3996
          %v4093 = vpack.c.b16 %v4005, %v3997
          %v4094 = vpack.c.b16 %v4006, %v3998
          %v4095 = vpack.c.b16 %v4007, %v3999
          %v4096 = vpack.c.b16 %v4008, %v4000
          %v4097 = vpack.c.b16 %v4009, %v4001
          %v4098 = vpack.c.b16 %v4010, %v4002
          %v4099 = vpack.c.b16 %v4011, %v4003
          %v4100 = vpack.c.b16 %v4020, %v4012
          %v4101 = vpack.c.b16 %v4021, %v4013
          %v4102 = vpack.c.b16 %v4022, %v4014
          %v4103 = vpack.c.b16 %v4023, %v4015
          %v4104 = vpack.c.b16 %v4024, %v4016
          %v4105 = vpack.c.b16 %v4025, %v4017
          %v4106 = vpack.c.b16 %v4026, %v4018
          %v4107 = vpack.c.b16 %v4027, %v4019
          %v4108 = vpack.c.b16 %v4036, %v4028
          %v4109 = vpack.c.b16 %v4037, %v4029
          %v4110 = vpack.c.b16 %v4038, %v4030
          %v4111 = vpack.c.b16 %v4039, %v4031
          %v4112 = vpack.c.b16 %v4040, %v4032
          %v4113 = vpack.c.b16 %v4041, %v4033
          %v4114 = vpack.c.b16 %v4042, %v4034
          %v4115 = vpack.c.b16 %v4043, %v4035
          %v4116 = vpack.c.b16 %v4052, %v4044
          %v4117 = vpack.c.b16 %v4053, %v4045
          %v4118 = vpack.c.b16 %v4054, %v4046
          %v4119 = vpack.c.b16 %v4055, %v4047
          %v4120 = vpack.c.b16 %v4056, %v4048
          %v4121 = vpack.c.b16 %v4057, %v4049
          %v4122 = vpack.c.b16 %v4058, %v4050
          %v4123 = vpack.c.b16 %v4059, %v4051
          %4188 = vmatprep.subr.bf16.mxu0 %v4061
          %4189 = vmatpush1.bf16.msra.mxu0 %v4060
          %4190 = vmatprep.subr.bf16.mxu0 %v4069
          %4191 = vmatpush1.bf16.msra.mxu0 %v4068
          %4192 = vmatprep.subr.bf16.mxu0 %v4077
          %4193 = vmatpush1.bf16.msra.mxu0 %v4076
          %4194 = vmatprep.subr.bf16.mxu0 %v4085
          %4195 = vmatpush1.bf16.msra.mxu0 %v4084
          %4196 = vmatprep.subr.bf16.mxu0 %v4093
          %4197 = vmatpush1.bf16.msra.mxu0 %v4092
          %4198 = vmatprep.subr.bf16.mxu0 %v4101
          %4199 = vmatpush1.bf16.msra.mxu0 %v4100
          %4200 = vmatprep.subr.bf16.mxu0 %v4109
          %4201 = vmatpush1.bf16.msra.mxu0 %v4108
          %4202 = vmatprep.subr.bf16.mxu0 %v4117
          %4203 = vmatpush1.bf16.msra.mxu0 %v4116
          %4204 = vmatprep.subr.bf16.mxu0 0
          %4205 = vmatpush1.bf16.msra.mxu0 0
          %4206 = vmatprep.subr.bf16.mxu0 0
          %4207 = vmatpush1.bf16.msra.mxu0 0
          %4208 = vmatprep.subr.bf16.mxu0 0
          %4209 = vmatpush1.bf16.msra.mxu0 0
          %4210 = vmatprep.subr.bf16.mxu0 0
          %4211 = vmatpush1.bf16.msra.mxu0 0
          %4212 = vmatprep.subr.bf16.mxu0 0
          %4213 = vmatpush1.bf16.msra.mxu0 0
          %4214 = vmatprep.subr.bf16.mxu0 0
          %4215 = vmatpush1.bf16.msra.mxu0 0
          %4216 = vmatprep.subr.bf16.mxu0 0
          %4217 = vmatpush1.bf16.msra.mxu0 0
          %4218 = vmatprep.subr.bf16.mxu0 0
          %4219 = vmatpush1.bf16.msra.mxu0 0
          %4220 = vmatprep.mubr.bf16.mxu0 0
          %4221 = vmatmul.mubr.bf16.gmra.mrb[0].mxu0 %v3585
          %v4222 = vpop.f32.mrb[0].mxu0
          %v4223 = vadd.f32 %v3739, %v4222
          %v4224 = vpop.f32.mrb[0].mxu0
          %v4225 = vadd.f32 %v3741, %v4224
          %v4226 = vpop.f32.mrb[0].mxu0
          %v4227 = vpop.f32.mrb[0].mxu0
          %4228 = vdwg.mxu0
          %4229 = vmatprep.subr.bf16.mxu0 %v4063
          %4230 = vmatpush1.bf16.msra.mxu0 %v4062
          %4231 = vmatprep.subr.bf16.mxu0 %v4071
          %4232 = vmatpush1.bf16.msra.mxu0 %v4070
          %4233 = vmatprep.subr.bf16.mxu0 %v4079
          %4234 = vmatpush1.bf16.msra.mxu0 %v4078
          %4235 = vmatprep.subr.bf16.mxu0 %v4087
          %4236 = vmatpush1.bf16.msra.mxu0 %v4086
          %4237 = vmatprep.subr.bf16.mxu0 %v4095
          %4238 = vmatpush1.bf16.msra.mxu0 %v4094
          %4239 = vmatprep.subr.bf16.mxu0 %v4103
          %4240 = vmatpush1.bf16.msra.mxu0 %v4102
          %4241 = vmatprep.subr.bf16.mxu0 %v4111
          %4242 = vmatpush1.bf16.msra.mxu0 %v4110
          %4243 = vmatprep.subr.bf16.mxu0 %v4119
          %4244 = vmatpush1.bf16.msra.mxu0 %v4118
          %4245 = vmatprep.subr.bf16.mxu0 0
          %4246 = vmatpush1.bf16.msra.mxu0 0
          %4247 = vmatprep.subr.bf16.mxu0 0
          %4248 = vmatpush1.bf16.msra.mxu0 0
          %4249 = vmatprep.subr.bf16.mxu0 0
          %4250 = vmatpush1.bf16.msra.mxu0 0
          %4251 = vmatprep.subr.bf16.mxu0 0
          %4252 = vmatpush1.bf16.msra.mxu0 0
          %4253 = vmatprep.subr.bf16.mxu0 0
          %4254 = vmatpush1.bf16.msra.mxu0 0
          %4255 = vmatprep.subr.bf16.mxu0 0
          %4256 = vmatpush1.bf16.msra.mxu0 0
          %4257 = vmatprep.subr.bf16.mxu0 0
          %4258 = vmatpush1.bf16.msra.mxu0 0
          %4259 = vmatprep.subr.bf16.mxu0 0
          %4260 = vmatpush1.bf16.msra.mxu0 0
          %4261 = vmatprep.mubr.bf16.mxu0 0
          %4262 = vmatmul.mubr.bf16.gmra.mrb[0].mxu0 %v3585
          %v4263 = vpop.f32.mrb[0].mxu0
          %v4264 = vadd.f32 %v3780, %v4263
          %v4265 = vpop.f32.mrb[0].mxu0
          %v4266 = vadd.f32 %v3782, %v4265
          %v4267 = vpop.f32.mrb[0].mxu0
          %v4268 = vpop.f32.mrb[0].mxu0
          %4269 = vdwg.mxu0
          %4270 = vmatprep.subr.bf16.mxu0 %v4065
          %4271 = vmatpush1.bf16.msra.mxu0 %v4064
          %4272 = vmatprep.subr.bf16.mxu0 %v4073
          %4273 = vmatpush1.bf16.msra.mxu0 %v4072
          %4274 = vmatprep.subr.bf16.mxu0 %v4081
          %4275 = vmatpush1.bf16.msra.mxu0 %v4080
          %4276 = vmatprep.subr.bf16.mxu0 %v4089
          %4277 = vmatpush1.bf16.msra.mxu0 %v4088
          %4278 = vmatprep.subr.bf16.mxu0 %v4097
          %4279 = vmatpush1.bf16.msra.mxu0 %v4096
          %4280 = vmatprep.subr.bf16.mxu0 %v4105
          %4281 = vmatpush1.bf16.msra.mxu0 %v4104
          %4282 = vmatprep.subr.bf16.mxu0 %v4113
          %4283 = vmatpush1.bf16.msra.mxu0 %v4112
          %4284 = vmatprep.subr.bf16.mxu0 %v4121
          %4285 = vmatpush1.bf16.msra.mxu0 %v4120
          %4286 = vmatprep.subr.bf16.mxu0 0
          %4287 = vmatpush1.bf16.msra.mxu0 0
          %4288 = vmatprep.subr.bf16.mxu0 0
          %4289 = vmatpush1.bf16.msra.mxu0 0
          %4290 = vmatprep.subr.bf16.mxu0 0
          %4291 = vmatpush1.bf16.msra.mxu0 0
          %4292 = vmatprep.subr.bf16.mxu0 0
          %4293 = vmatpush1.bf16.msra.mxu0 0
          %4294 = vmatprep.subr.bf16.mxu0 0
          %4295 = vmatpush1.bf16.msra.mxu0 0
          %4296 = vmatprep.subr.bf16.mxu0 0
          %4297 = vmatpush1.bf16.msra.mxu0 0
          %4298 = vmatprep.subr.bf16.mxu0 0
          %4299 = vmatpush1.bf16.msra.mxu0 0
          %4300 = vmatprep.subr.bf16.mxu0 0
          %4301 = vmatpush1.bf16.msra.mxu0 0
          %4302 = vmatprep.mubr.bf16.mxu0 0
          %4303 = vmatmul.mubr.bf16.gmra.mrb[0].mxu0 %v3585
          %v4304 = vpop.f32.mrb[0].mxu0
          %v4305 = vadd.f32 %v3821, %v4304
          %v4306 = vpop.f32.mrb[0].mxu0
          %v4307 = vadd.f32 %v3823, %v4306
          %v4308 = vpop.f32.mrb[0].mxu0
          %v4309 = vpop.f32.mrb[0].mxu0
          %4310 = vdwg.mxu0
          %4311 = vmatprep.subr.bf16.mxu0 %v4067
          %4312 = vmatpush1.bf16.msra.mxu0 %v4066
          %4313 = vmatprep.subr.bf16.mxu0 %v4075
          %4314 = vmatpush1.bf16.msra.mxu0 %v4074
          %4315 = vmatprep.subr.bf16.mxu0 %v4083
          %4316 = vmatpush1.bf16.msra.mxu0 %v4082
          %4317 = vmatprep.subr.bf16.mxu0 %v4091
          %4318 = vmatpush1.bf16.msra.mxu0 %v4090
          %4319 = vmatprep.subr.bf16.mxu0 %v4099
          %4320 = vmatpush1.bf16.msra.mxu0 %v4098
          %4321 = vmatprep.subr.bf16.mxu0 %v4107
          %4322 = vmatpush1.bf16.msra.mxu0 %v4106
          %4323 = vmatprep.subr.bf16.mxu0 %v4115
          %4324 = vmatpush1.bf16.msra.mxu0 %v4114
          %4325 = vmatprep.subr.bf16.mxu0 %v4123
          %4326 = vmatpush1.bf16.msra.mxu0 %v4122
          %4327 = vmatprep.subr.bf16.mxu0 0
          %4328 = vmatpush1.bf16.msra.mxu0 0
          %4329 = vmatprep.subr.bf16.mxu0 0
          %4330 = vmatpush1.bf16.msra.mxu0 0
          %4331 = vmatprep.subr.bf16.mxu0 0
          %4332 = vmatpush1.bf16.msra.mxu0 0
          %4333 = vmatprep.subr.bf16.mxu0 0
          %4334 = vmatpush1.bf16.msra.mxu0 0
          %4335 = vmatprep.subr.bf16.mxu0 0
          %4336 = vmatpush1.bf16.msra.mxu0 0
          %4337 = vmatprep.subr.bf16.mxu0 0
          %4338 = vmatpush1.bf16.msra.mxu0 0
          %4339 = vmatprep.subr.bf16.mxu0 0
          %4340 = vmatpush1.bf16.msra.mxu0 0
          %4341 = vmatprep.subr.bf16.mxu0 0
          %4342 = vmatpush1.bf16.msra.mxu0 0
          %4343 = vmatprep.mubr.bf16.mxu0 0
          %4344 = vmatmul.mubr.bf16.gmra.mrb[0].mxu0 %v3585
          %v4345 = vpop.f32.mrb[0].mxu0
          %v4346 = vadd.f32 %v3862, %v4345
          %v4347 = vpop.f32.mrb[0].mxu0
          %v4348 = vadd.f32 %v3864, %v4347
          %v4349 = vpop.f32.mrb[0].mxu0
          %v4350 = vpop.f32.mrb[0].mxu0
          %4351 = vdwg.mxu0
          %v4352 = vld [vmem:[#allocation12] sm:$0xff]
          %v4354 = vlaneseq
          %v4355 = vshrl.u32 %v4354, 7
          %v4356 = vsub.s32 0, %v4355
          %v4357 = vrot.slane %v4352, %v4356
          %v4358 = vlaneseq
          %v4359 = vshrl.u32 %v4358, 7
          %v4360 = vsub.s32 1, %v4359
          %v4361 = vrot.slane %v4352, %v4360
          %v4362 = vlaneseq
          %v4363 = vshrl.u32 %v4362, 7
          %v4364 = vsub.s32 2, %v4363
          %v4365 = vrot.slane %v4352, %v4364
          %v4366 = vlaneseq
          %v4367 = vshrl.u32 %v4366, 7
          %v4368 = vsub.s32 3, %v4367
          %v4369 = vrot.slane %v4352, %v4368
          %v4370 = vlaneseq
          %v4371 = vshrl.u32 %v4370, 7
          %v4372 = vsub.s32 4, %v4371
          %v4373 = vrot.slane %v4352, %v4372
          %v4374 = vlaneseq
          %v4375 = vshrl.u32 %v4374, 7
          %v4376 = vsub.s32 5, %v4375
          %v4377 = vrot.slane %v4352, %v4376
          %v4378 = vlaneseq
          %v4379 = vshrl.u32 %v4378, 7
          %v4380 = vsub.s32 6, %v4379
          %v4381 = vrot.slane %v4352, %v4380
          %v4382 = vlaneseq
          %v4383 = vshrl.u32 %v4382, 7
          %v4384 = vsub.s32 7, %v4383
          %v4385 = vrot.slane %v4352, %v4384
          %v4394 = vadd.f32 %v4223, %v4357
          %v4395 = vadd.f32 %v4225, %v4361
          %v4396 = vadd.f32 %v4264, %v4365
          %v4397 = vadd.f32 %v4266, %v4369
          %v4398 = vadd.f32 %v4305, %v4373
          %v4399 = vadd.f32 %v4307, %v4377
          %v4400 = vadd.f32 %v4346, %v4381
          %v4401 = vadd.f32 %v4348, %v4385
          %v4410 = vcombine.low %v4394, %v4395
          %v4411 = vcombine.low %v4396, %v4397
          %v4413 = vunpack.c.l.s4 1983009808
          %v4414 = vunpack.c.0.s8 %v4413
          %v4415 = vlaneseq
          %v4416 = vshrl.u32 %v4415, 7
          %v4417 = vsub.s32 %v4414, %v4416
          %v4418 = vrot.slane %v4410, %v4417
          %v4420 = vunpack.c.l.s4 1983009808
          %v4421 = vunpack.c.0.s8 %v4420
          %v4422 = vlaneseq
          %v4423 = vshrl.u32 %v4422, 7
          %v4424 = vsub.s32 %v4421, %v4423
          %v4425 = vrot.slane %v4411, %v4424
          %v4426 = vcombine.low %v4418, %v4425
          %v4427 = vcombine.low %v4398, %v4399
          %v4428 = vcombine.low %v4400, %v4401
          %v4430 = vunpack.c.l.s4 1983009808
          %v4431 = vunpack.c.0.s8 %v4430
          %v4432 = vlaneseq
          %v4433 = vshrl.u32 %v4432, 7
          %v4434 = vsub.s32 %v4431, %v4433
          %v4435 = vrot.slane %v4427, %v4434
          %v4437 = vunpack.c.l.s4 1983009808
          %v4438 = vunpack.c.0.s8 %v4437
          %v4439 = vlaneseq
          %v4440 = vshrl.u32 %v4439, 7
          %v4441 = vsub.s32 %v4438, %v4440
          %v4442 = vrot.slane %v4428, %v4441
          %v4443 = vcombine.low %v4435, %v4442
          %4446 = vst [vmem:[#allocation14] sm:$0xff] %v4426
          %vm4447 = vcmask 1041408
          %vm4448 = vcmask 1043458
          %vm4449 = vmor %vm4448, %vm4447
          %vm4450 = vcmask 1045508
          %vm4451 = vmor %vm4450, %vm4449
          %vm4452 = vcmask 556038
          %vm4453 = vmor %vm4452, %vm4451
          %4454 = vst.msk [vmem:[#allocation14 + $0x8] sm:$0xff] %vm4453, %v4443
        $region88: #{two_input_net_forward.3} parent=55 // pred_fallthru
          _
        // Predicated region
        $region89: #{two_input_net_forward.3} parent=55 // pred_check
          %p4455 = pneg %p239
        $region90: #{two_input_net_forward.3} parent=55 // pred_check_branch
          %4457 = sbr.rel (%p4455) target = $region92
        $region91: #{two_input_net_forward.3} parent=55 // pred_region
          %s4459 = ssub.s32 256, 256
          %4460 = vsyncadd [#allocation5], %s4459
          %s4462 = sshll.u32 [#allocation14], 4
          %s4463 = int_to_ptr.vmem [resolvable:$true] %s4462
          %4465 = dma.vmem_to_hbm [thread:$0]  %s4463, 256, %s9, [#allocation5]
        $region92: #{two_input_net_forward.3} parent=55 // pred_fallthru
          _
        // Predicated region
        $region93: #{two_input_net_forward.3} parent=55 // pred_check
          %p4466 = pneg %p239
        $region94: #{two_input_net_forward.3} parent=55 // pred_check_branch
          %4468 = sbr.rel (%p4466) target = $region96
        $region95: #{two_input_net_forward.3} parent=55 // pred_region
          %4469 = dma.done [#allocation5], 256
        $region96: #{two_input_net_forward.3} parent=55 // pred_fallthru
          _
      $region56: #{two_input_net_forward.3} parent=5 // pred_fallthru
        _
      %p4470 = scmp.le.s32.totalorder 2, %s22
      // Predicated region
      $region97: #{two_input_net_forward.3} parent=5 // pred_check
        %p4471 = pneg %p4470
      $region98: #{two_input_net_forward.3} parent=5 // pred_check_branch
        %4473 = sbr.rel (%p4471) target = $region100
      $region99: #{two_input_net_forward.3} parent=5 // pred_region
        %s4474 = ssub.s32 %s22, 2
      $region100: #{two_input_net_forward.3} parent=5 // pred_fallthru
        _
    $region6: #{two_input_net_forward.3} parent=1 // loop_footer
      %s26 = sadd.s32 1, %s22
    $region7: #{two_input_net_forward.3} parent=1 // loop_footer_branch
      %21 = sbr.rel target = $region3
    $region8: #{two_input_net_forward.3} parent=1 // loop_exit
      _
    %4475 = vsyncpa [#allocation4], 1
    %s4476 = scalar_lea.sflag [#allocation4], 1
    %4477 = vsyncpa %s4476, 1
    %4478 = vsyncpa [#allocation7], 1
    %4479 = vsyncpa [#allocation10], 1
    %4480 = vsyncpa [#allocation13], 1
    %4481 = vsyncpa [#allocation5], 1
    %s4482 = scalar_lea.sflag [#allocation5], 1
    %4483 = vsyncpa %s4482, 1

</llo_original>
